<compile_context>
chip_gen: v6e
topology: v6e:2x2x1
jax: 0.10.0
libtpu: 0.0.40
codegen_flags: <defaults>
</compile_context>

<pallas_src>
import functools

import numpy as np
import jax
import jax.numpy as jnp
from jax.experimental import pallas as pl
from jax.experimental.pallas import tpu as pltpu

LANE = 128


def _round_up(v, m):
    return ((v + m - 1) // m) * m


def _gnn_kernel(adj_ref, x_ref,
                w1_ref, b1_ref, w2_ref, b2_ref, w3_ref, b3_ref,
                wl1_ref, wl2_ref, wl3_ref, bl_ref,
                out_ref,
                *, orders):
    Bb, Np, _ = adj_ref.shape
    adj = adj_ref[...]                       # (Bb, Np, Np) bf16 (0/1 -> exact)
    x0 = x_ref[...]                          # (Bb, Np, Cp) bf16

    # node degree (f32), clamped to >=1; reciprocal on the EUP slot (free vs VPU)
    deg = jnp.sum(adj.astype(jnp.float32), axis=-1, keepdims=True)   # (Bb, Np, 1)
    inv_deg = pl.reciprocal(jnp.maximum(deg, 1.0), approx=True)

    def matmul_w(h_bf16, w_ref):
        # (Bb, Np, Ci) @ (Ci, Co) as one tall 2-D MXU matmul (better row utilization
        # than Bb separate matmuls); reshape is tile-aligned (all dims mult. of 128).
        ci = h_bf16.shape[-1]
        co = w_ref.shape[-1]
        h2 = h_bf16.reshape(Bb * Np, ci)
        y = jnp.dot(h2, w_ref[...], preferred_element_type=jnp.float32)
        return y.reshape(Bb, Np, co)

    def sage_relu(h_bf16, w_ref, b_ref, agg_first):
        b = b_ref[...].reshape(1, 1, -1)     # (1, 1, Co) f32
        if agg_first:
            # ((adj @ h) / deg) @ W + b
            agg = jnp.einsum('bij,bjc->bic', adj, h_bf16,
                             preferred_element_type=jnp.float32)
            agg = (agg * inv_deg).astype(jnp.bfloat16)
            lin = matmul_w(agg, w_ref) + b
        else:
            # (adj @ (h @ W)) / deg + b   (row scaling commutes -> exact)
            hw = matmul_w(h_bf16, w_ref).astype(jnp.bfloat16)
            lin = jnp.einsum('bij,bjc->bic', adj, hw,
                             preferred_element_type=jnp.float32) * inv_deg + b
        return jnp.maximum(lin, 0.0)         # f32

    x1 = sage_relu(x0, w1_ref, b1_ref, orders[0]).astype(jnp.bfloat16)
    x2 = sage_relu(x1, w2_ref, b2_ref, orders[1]).astype(jnp.bfloat16)
    x3 = sage_relu(x2, w3_ref, b3_ref, orders[2]).astype(jnp.bfloat16)

    # final Linear over concat([x1, x2, x3], -1), expressed as split matmuls (exact)
    y = (matmul_w(x1, wl1_ref)
         + matmul_w(x2, wl2_ref)
         + matmul_w(x3, wl3_ref)
         + bl_ref[...].reshape(1, 1, -1))
    out_ref[...] = jnp.maximum(y, 0.0)       # (Bb, Np, Op) f32


def gnn_forward(x, adj, params, *, add_loop=False, block_batch=None):
    """x: (B, N, Cin) f32; adj: (B, N, N) f32. Returns (B, N, out_channels) f32."""
    B, N, Cin = x.shape
    w1, b1, w2, b2, w3, b3, wl, bl = params
    H = w1.shape[1]
    O = w3.shape[1]

    if add_loop:
        adj = adj.at[:, jnp.arange(N), jnp.arange(N)].set(1.0)

    # ---- lane-dense padding: every matmul dim becomes a multiple of 128 ----
    Np, Cp, Hp, Op = (_round_up(d, LANE) for d in (N, Cin, H, O))

    def pad2(a, r, c):
        return jnp.pad(a, ((0, r - a.shape[0]), (0, c - a.shape[1])))

    w1p = pad2(w1, Cp, Hp).astype(jnp.bfloat16)
    w2p = pad2(w2, Hp, Hp).astype(jnp.bfloat16)
    w3p = pad2(w3, Hp, Op).astype(jnp.bfloat16)
    wl1p = pad2(wl[:H], Hp, Op).astype(jnp.bfloat16)
    wl2p = pad2(wl[H:2 * H], Hp, Op).astype(jnp.bfloat16)
    wl3p = pad2(wl[2 * H:], Op, Op).astype(jnp.bfloat16)
    b1p = jnp.pad(b1, (0, Hp - H)).reshape(1, Hp).astype(jnp.float32)
    b2p = jnp.pad(b2, (0, Hp - H)).reshape(1, Hp).astype(jnp.float32)
    b3p = jnp.pad(b3, (0, Op - O)).reshape(1, Op).astype(jnp.float32)
    blp = jnp.pad(bl, (0, Op - O)).reshape(1, Op).astype(jnp.float32)

    # adj is 0/1 -> bf16 cast is exact and halves the dominant HBM stream
    adj_p = jnp.pad(adj, ((0, 0), (0, Np - N), (0, Np - N))).astype(jnp.bfloat16)
    x_p = jnp.pad(x, ((0, 0), (0, Np - N), (0, Cp - Cin))).astype(jnp.bfloat16)

    # ---- graphs per grid step: big enough to amortize per-step overhead, small
    # ---- enough that double-buffered blocks fit the scoped-VMEM budget.
    per_graph_bytes = Np * Np * 2 + Np * Cp * 2 + Np * Op * 4
    if block_batch is None:
        budget = 4 << 20                                  # per-step block budget
        Bb = max(1, min(B, budget // per_graph_bytes))
        if B >= 2:                                        # keep >=2 parallel steps (v7x)
            Bb = min(Bb, -(-B // 2))
    else:
        Bb = block_batch
    B_pad = _round_up(B, Bb)
    if B_pad != B:
        adj_p = jnp.pad(adj_p, ((0, B_pad - B), (0, 0), (0, 0)))
        x_p = jnp.pad(x_p, ((0, B_pad - B), (0, 0), (0, 0)))
    grid = (B_pad // Bb,)

    # static per-layer matmul order: aggregate first unless the output width needs
    # fewer 128-col MXU passes than the input width (row scaling commutes -> exact)
    passes = lambda d: -(-d // LANE)
    orders = (passes(Cp) <= passes(Hp), True, passes(Hp) <= passes(Op))

    # explicit scoped-VMEM limit: override v5e's 16 MiB default, stay <= 48 MiB (v7x-safe)
    w_bytes = 2 * (Cp * Hp + Hp * Hp + 3 * Hp * Op + Op * Op) + 4 * (2 * Hp + 2 * Op)
    blk_bytes = Bb * per_graph_bytes
    tmp_bytes = 8 * Bb * Np * max(Hp, Op) * 4
    vmem_limit = int(min(48 << 20, max(32 << 20, 2 * (blk_bytes + w_bytes) + tmp_bytes)))

    const = lambda shape: pl.BlockSpec(shape, lambda b: tuple(0 for _ in shape))

    out_p = pl.pallas_call(
        functools.partial(_gnn_kernel, orders=orders),
        out_shape=jax.ShapeDtypeStruct((B_pad, Np, Op), jnp.float32),
        grid=grid,
        in_specs=[
            pl.BlockSpec((Bb, Np, Np), lambda b: (b, 0, 0)),     # adj
            pl.BlockSpec((Bb, Np, Cp), lambda b: (b, 0, 0)),     # x
            const((Cp, Hp)), const((1, Hp)),                     # conv1
            const((Hp, Hp)), const((1, Hp)),                     # conv2
            const((Hp, Op)), const((1, Op)),                     # conv3
            const((Hp, Op)), const((Hp, Op)), const((Op, Op)),   # lin (split)
            const((1, Op)),                                      # lin bias
        ],
        out_specs=pl.BlockSpec((Bb, Np, Op), lambda b: (b, 0, 0)),
        compiler_params=pltpu.CompilerParams(
            dimension_semantics=("parallel",),
            vmem_limit_bytes=vmem_limit),
    )(adj_p, x_p, w1p, b1p, w2p, b2p, w3p, b3p, wl1p, wl2p, wl3p, blp)

    return out_p[:B, :N, :O]


def init_params(key, in_channels, hidden_channels, out_channels):
    ks = jax.random.split(key, 8)

    def u(k, shape, fan_in):
        bound = 1.0 / np.sqrt(fan_in)
        return jax.random.uniform(k, shape, jnp.float32, -bound, bound)

    w1 = u(ks[0], (in_channels, hidden_channels), in_channels)
    b1 = u(ks[1], (hidden_channels,), in_channels)
    w2 = u(ks[2], (hidden_channels, hidden_channels), hidden_channels)
    b2 = u(ks[3], (hidden_channels,), hidden_channels)
    w3 = u(ks[4], (hidden_channels, out_channels), hidden_channels)
    b3 = u(ks[5], (out_channels,), hidden_channels)
    lin_in = 2 * hidden_channels + out_channels
    wl = u(ks[6], (lin_in, out_channels), lin_in)
    bl = u(ks[7], (out_channels,), lin_in)
    return (w1, b1, w2, b2, w3, b3, wl, bl)


def gnn_reference(x, adj, params):
    """Pure-JAX f32 reference mirroring the PyTorch forward (defaults)."""
    w1, b1, w2, b2, w3, b3, wl, bl = params
    deg = jnp.clip(jnp.sum(adj, axis=-1, keepdims=True), 1.0, None)

    def conv(h, w, b):
        agg = jnp.matmul(adj, h) / deg
        return jax.nn.relu(jnp.matmul(agg, w) + b)

    x1 = conv(x, w1, b1)
    x2 = conv(x1, w2, b2)
    x3 = conv(x2, w3, b3)
    cat = jnp.concatenate([x1, x2, x3], axis=-1)
    return jax.nn.relu(jnp.matmul(cat, wl) + bl)


if __name__ == "__main__":
    B, N = 4, 128
    in_channels, hidden_channels, out_channels = 16, 32, 16

    key = jax.random.PRNGKey(0)
    k_x, k_adj, k_p = jax.random.split(key, 3)

    x = jax.random.normal(k_x, (B, N, in_channels), jnp.float32)
    # symmetric 0/1 adjacency, deterministic
    a = (jax.random.uniform(k_adj, (B, N, N)) < 0.3).astype(jnp.float32)
    adj = jnp.maximum(a, jnp.swapaxes(a, -1, -2))

    params = init_params(k_p, in_channels, hidden_channels, out_channels)

    out = gnn_forward(x, adj, params, add_loop=False)
    out = jax.block_until_ready(out)

    ref = gnn_reference(x, adj, params)
    # bf16 activations on the MXU -> allow ~1e-2-level deviation from the f32 reference
    np.testing.assert_allclose(np.asarray(out), np.asarray(ref), rtol=2e-2, atol=2e-2)

    print("KERNEL_OK")
</pallas_src>

<mosaic_0001>
module attributes {stable_mosaic.version = 11 : i64} {
  func.func @_gnn_kernel(%arg0: i32, %arg1: memref<2x128x128xbf16, #tpu.memory_space<vmem>>, %arg2: memref<2x128x128xbf16, #tpu.memory_space<vmem>>, %arg3: memref<128x128xbf16, #tpu.memory_space<vmem>>, %arg4: memref<1x128xf32, #tpu.memory_space<vmem>>, %arg5: memref<128x128xbf16, #tpu.memory_space<vmem>>, %arg6: memref<1x128xf32, #tpu.memory_space<vmem>>, %arg7: memref<128x128xbf16, #tpu.memory_space<vmem>>, %arg8: memref<1x128xf32, #tpu.memory_space<vmem>>, %arg9: memref<128x128xbf16, #tpu.memory_space<vmem>>, %arg10: memref<128x128xbf16, #tpu.memory_space<vmem>>, %arg11: memref<128x128xbf16, #tpu.memory_space<vmem>>, %arg12: memref<1x128xf32, #tpu.memory_space<vmem>>, %arg13: memref<2x128x128xf32, #tpu.memory_space<vmem>>) attributes {dimension_semantics = [#tpu.dimension_semantics<parallel>], iteration_bounds = array<i64: 2>, scalar_prefetch = 0 : i64, scratch_operands = 0 : i64, tpu.core_type = #tpu.core_type<tc>, window_params = [{transform_indices = @transform_0, window_bounds = array<i64: 2, 128, 128>}, {transform_indices = @transform_1, window_bounds = array<i64: 2, 128, 128>}, {pipeline_mode = #tpu.pipeline_mode<synchronous>, transform_indices = @transform_2, window_bounds = array<i64: 128, 128>}, {pipeline_mode = #tpu.pipeline_mode<synchronous>, transform_indices = @transform_3, window_bounds = array<i64: 1, 128>}, {pipeline_mode = #tpu.pipeline_mode<synchronous>, transform_indices = @transform_4, window_bounds = array<i64: 128, 128>}, {pipeline_mode = #tpu.pipeline_mode<synchronous>, transform_indices = @transform_5, window_bounds = array<i64: 1, 128>}, {pipeline_mode = #tpu.pipeline_mode<synchronous>, transform_indices = @transform_6, window_bounds = array<i64: 128, 128>}, {pipeline_mode = #tpu.pipeline_mode<synchronous>, transform_indices = @transform_7, window_bounds = array<i64: 1, 128>}, {pipeline_mode = #tpu.pipeline_mode<synchronous>, transform_indices = @transform_8, window_bounds = array<i64: 128, 128>}, {pipeline_mode = #tpu.pipeline_mode<synchronous>, transform_indices = @transform_9, window_bounds = array<i64: 128, 128>}, {pipeline_mode = #tpu.pipeline_mode<synchronous>, transform_indices = @transform_10, window_bounds = array<i64: 128, 128>}, {pipeline_mode = #tpu.pipeline_mode<synchronous>, transform_indices = @transform_11, window_bounds = array<i64: 1, 128>}, {transform_indices = @transform_12, window_bounds = array<i64: 2, 128, 128>}]} {
    %c0 = arith.constant 0 : index
    %c0_0 = arith.constant 0 : index
    %c0_1 = arith.constant 0 : index
    %0 = vector.load %arg1[%c0, %c0_0, %c0_1] : memref<2x128x128xbf16, #tpu.memory_space<vmem>>, vector<2x128x128xbf16>
    %c0_2 = arith.constant 0 : index
    %c0_3 = arith.constant 0 : index
    %c0_4 = arith.constant 0 : index
    %1 = vector.load %arg2[%c0_2, %c0_3, %c0_4] : memref<2x128x128xbf16, #tpu.memory_space<vmem>>, vector<2x128x128xbf16>
    %2 = arith.extf %0 : vector<2x128x128xbf16> to vector<2x128x128xf32>
    %cst = arith.constant dense<0.000000e+00> : vector<2x128xf32>
    %3 = vector.multi_reduction <add>, %2, %cst [2] : vector<2x128x128xf32> to vector<2x128xf32>
    %4 = vector.shape_cast %3 : vector<2x128xf32> to vector<2x128x1xf32>
    %cst_5 = arith.constant 1.000000e+00 : f32
    %5 = vector.broadcast %cst_5 : f32 to vector<2x128x1xf32>
    %6 = arith.maximumf %4, %5 : vector<2x128x1xf32>
    %7 = tpu.reciprocal %6 {approx = true} : vector<2x128x1xf32> -> vector<2x128x1xf32>
    %c0_6 = arith.constant 0 : index
    %c0_7 = arith.constant 0 : index
    %8 = vector.load %arg4[%c0_6, %c0_7] : memref<1x128xf32, #tpu.memory_space<vmem>>, vector<1x128xf32>
    %9 = vector.shape_cast %8 : vector<1x128xf32> to vector<1x1x128xf32>
    "tpu.trace_start"() <{level = 10 : i32, message = "bij,bjc->bic"}> : () -> ()
    %cst_8 = arith.constant dense<0.000000e+00> : vector<2x128x128xf32>
    %10 = tpu.matmul %0, %1, %cst_8 {dimension_numbers = #tpu.dot_dimension_numbers<[2], [1], [1], [2], [0, 0, 0, 1, 1, 2], [0], [0]>} : vector<2x128x128xbf16>, vector<2x128x128xbf16>, vector<2x128x128xf32> -> vector<2x128x128xf32>
    "tpu.trace_stop"() : () -> ()
    %11 = vector.broadcast %7 : vector<2x128x1xf32> to vector<2x128x128xf32>
    %12 = arith.mulf %10, %11 : vector<2x128x128xf32>
    %13 = arith.truncf %12 : vector<2x128x128xf32> to vector<2x128x128xbf16>
    %14 = vector.shape_cast %13 : vector<2x128x128xbf16> to vector<256x128xbf16>
    %c0_9 = arith.constant 0 : index
    %c0_10 = arith.constant 0 : index
    %15 = vector.load %arg3[%c0_9, %c0_10] : memref<128x128xbf16, #tpu.memory_space<vmem>>, vector<128x128xbf16>
    %cst_11 = arith.constant dense<0.000000e+00> : vector<256x128xf32>
    %16 = tpu.matmul %14, %15, %cst_11 {dimension_numbers = #tpu.dot_dimension_numbers<[1], [0], [0], [1], [0, 0, 1, 1], [], []>} : vector<256x128xbf16>, vector<128x128xbf16>, vector<256x128xf32> -> vector<256x128xf32>
    %17 = vector.shape_cast %16 : vector<256x128xf32> to vector<2x128x128xf32>
    %18 = vector.broadcast %9 : vector<1x1x128xf32> to vector<2x128x128xf32>
    %19 = arith.addf %17, %18 : vector<2x128x128xf32>
    %cst_12 = arith.constant 0.000000e+00 : f32
    %20 = vector.broadcast %cst_12 : f32 to vector<2x128x128xf32>
    %21 = arith.maximumf %19, %20 : vector<2x128x128xf32>
    %22 = arith.truncf %21 : vector<2x128x128xf32> to vector<2x128x128xbf16>
    %c0_13 = arith.constant 0 : index
    %c0_14 = arith.constant 0 : index
    %23 = vector.load %arg6[%c0_13, %c0_14] : memref<1x128xf32, #tpu.memory_space<vmem>>, vector<1x128xf32>
    %24 = vector.shape_cast %23 : vector<1x128xf32> to vector<1x1x128xf32>
    "tpu.trace_start"() <{level = 10 : i32, message = "bij,bjc->bic"}> : () -> ()
    %cst_15 = arith.constant dense<0.000000e+00> : vector<2x128x128xf32>
    %25 = tpu.matmul %0, %22, %cst_15 {dimension_numbers = #tpu.dot_dimension_numbers<[2], [1], [1], [2], [0, 0, 0, 1, 1, 2], [0], [0]>} : vector<2x128x128xbf16>, vector<2x128x128xbf16>, vector<2x128x128xf32> -> vector<2x128x128xf32>
    "tpu.trace_stop"() : () -> ()
    %26 = vector.broadcast %7 : vector<2x128x1xf32> to vector<2x128x128xf32>
    %27 = arith.mulf %25, %26 : vector<2x128x128xf32>
    %28 = arith.truncf %27 : vector<2x128x128xf32> to vector<2x128x128xbf16>
    %29 = vector.shape_cast %28 : vector<2x128x128xbf16> to vector<256x128xbf16>
    %c0_16 = arith.constant 0 : index
    %c0_17 = arith.constant 0 : index
    %30 = vector.load %arg5[%c0_16, %c0_17] : memref<128x128xbf16, #tpu.memory_space<vmem>>, vector<128x128xbf16>
    %cst_18 = arith.constant dense<0.000000e+00> : vector<256x128xf32>
    %31 = tpu.matmul %29, %30, %cst_18 {dimension_numbers = #tpu.dot_dimension_numbers<[1], [0], [0], [1], [0, 0, 1, 1], [], []>} : vector<256x128xbf16>, vector<128x128xbf16>, vector<256x128xf32> -> vector<256x128xf32>
    %32 = vector.shape_cast %31 : vector<256x128xf32> to vector<2x128x128xf32>
    %33 = vector.broadcast %24 : vector<1x1x128xf32> to vector<2x128x128xf32>
    %34 = arith.addf %32, %33 : vector<2x128x128xf32>
    %cst_19 = arith.constant 0.000000e+00 : f32
    %35 = vector.broadcast %cst_19 : f32 to vector<2x128x128xf32>
    %36 = arith.maximumf %34, %35 : vector<2x128x128xf32>
    %37 = arith.truncf %36 : vector<2x128x128xf32> to vector<2x128x128xbf16>
    %c0_20 = arith.constant 0 : index
    %c0_21 = arith.constant 0 : index
    %38 = vector.load %arg8[%c0_20, %c0_21] : memref<1x128xf32, #tpu.memory_space<vmem>>, vector<1x128xf32>
    %39 = vector.shape_cast %38 : vector<1x128xf32> to vector<1x1x128xf32>
    "tpu.trace_start"() <{level = 10 : i32, message = "bij,bjc->bic"}> : () -> ()
    %cst_22 = arith.constant dense<0.000000e+00> : vector<2x128x128xf32>
    %40 = tpu.matmul %0, %37, %cst_22 {dimension_numbers = #tpu.dot_dimension_numbers<[2], [1], [1], [2], [0, 0, 0, 1, 1, 2], [0], [0]>} : vector<2x128x128xbf16>, vector<2x128x128xbf16>, vector<2x128x128xf32> -> vector<2x128x128xf32>
    "tpu.trace_stop"() : () -> ()
    %41 = vector.broadcast %7 : vector<2x128x1xf32> to vector<2x128x128xf32>
    %42 = arith.mulf %40, %41 : vector<2x128x128xf32>
    %43 = arith.truncf %42 : vector<2x128x128xf32> to vector<2x128x128xbf16>
    %44 = vector.shape_cast %43 : vector<2x128x128xbf16> to vector<256x128xbf16>
    %c0_23 = arith.constant 0 : index
    %c0_24 = arith.constant 0 : index
    %45 = vector.load %arg7[%c0_23, %c0_24] : memref<128x128xbf16, #tpu.memory_space<vmem>>, vector<128x128xbf16>
    %cst_25 = arith.constant dense<0.000000e+00> : vector<256x128xf32>
    %46 = tpu.matmul %44, %45, %cst_25 {dimension_numbers = #tpu.dot_dimension_numbers<[1], [0], [0], [1], [0, 0, 1, 1], [], []>} : vector<256x128xbf16>, vector<128x128xbf16>, vector<256x128xf32> -> vector<256x128xf32>
    %47 = vector.shape_cast %46 : vector<256x128xf32> to vector<2x128x128xf32>
    %48 = vector.broadcast %39 : vector<1x1x128xf32> to vector<2x128x128xf32>
    %49 = arith.addf %47, %48 : vector<2x128x128xf32>
    %cst_26 = arith.constant 0.000000e+00 : f32
    %50 = vector.broadcast %cst_26 : f32 to vector<2x128x128xf32>
    %51 = arith.maximumf %49, %50 : vector<2x128x128xf32>
    %52 = arith.truncf %51 : vector<2x128x128xf32> to vector<2x128x128xbf16>
    %53 = vector.shape_cast %22 : vector<2x128x128xbf16> to vector<256x128xbf16>
    %c0_27 = arith.constant 0 : index
    %c0_28 = arith.constant 0 : index
    %54 = vector.load %arg9[%c0_27, %c0_28] : memref<128x128xbf16, #tpu.memory_space<vmem>>, vector<128x128xbf16>
    %cst_29 = arith.constant dense<0.000000e+00> : vector<256x128xf32>
    %55 = tpu.matmul %53, %54, %cst_29 {dimension_numbers = #tpu.dot_dimension_numbers<[1], [0], [0], [1], [0, 0, 1, 1], [], []>} : vector<256x128xbf16>, vector<128x128xbf16>, vector<256x128xf32> -> vector<256x128xf32>
    %56 = vector.shape_cast %55 : vector<256x128xf32> to vector<2x128x128xf32>
    %57 = vector.shape_cast %37 : vector<2x128x128xbf16> to vector<256x128xbf16>
    %c0_30 = arith.constant 0 : index
    %c0_31 = arith.constant 0 : index
    %58 = vector.load %arg10[%c0_30, %c0_31] : memref<128x128xbf16, #tpu.memory_space<vmem>>, vector<128x128xbf16>
    %cst_32 = arith.constant dense<0.000000e+00> : vector<256x128xf32>
    %59 = tpu.matmul %57, %58, %cst_32 {dimension_numbers = #tpu.dot_dimension_numbers<[1], [0], [0], [1], [0, 0, 1, 1], [], []>} : vector<256x128xbf16>, vector<128x128xbf16>, vector<256x128xf32> -> vector<256x128xf32>
    %60 = vector.shape_cast %59 : vector<256x128xf32> to vector<2x128x128xf32>
    %61 = arith.addf %56, %60 : vector<2x128x128xf32>
    %62 = vector.shape_cast %52 : vector<2x128x128xbf16> to vector<256x128xbf16>
    %c0_33 = arith.constant 0 : index
    %c0_34 = arith.constant 0 : index
    %63 = vector.load %arg11[%c0_33, %c0_34] : memref<128x128xbf16, #tpu.memory_space<vmem>>, vector<128x128xbf16>
    %cst_35 = arith.constant dense<0.000000e+00> : vector<256x128xf32>
    %64 = tpu.matmul %62, %63, %cst_35 {dimension_numbers = #tpu.dot_dimension_numbers<[1], [0], [0], [1], [0, 0, 1, 1], [], []>} : vector<256x128xbf16>, vector<128x128xbf16>, vector<256x128xf32> -> vector<256x128xf32>
    %65 = vector.shape_cast %64 : vector<256x128xf32> to vector<2x128x128xf32>
    %66 = arith.addf %61, %65 : vector<2x128x128xf32>
    %c0_36 = arith.constant 0 : index
    %c0_37 = arith.constant 0 : index
    %67 = vector.load %arg12[%c0_36, %c0_37] : memref<1x128xf32, #tpu.memory_space<vmem>>, vector<1x128xf32>
    %68 = vector.shape_cast %67 : vector<1x128xf32> to vector<1x1x128xf32>
    %69 = vector.broadcast %68 : vector<1x1x128xf32> to vector<2x128x128xf32>
    %70 = arith.addf %66, %69 : vector<2x128x128xf32>
    %cst_38 = arith.constant 0.000000e+00 : f32
    %71 = vector.broadcast %cst_38 : f32 to vector<2x128x128xf32>
    %72 = arith.maximumf %70, %71 : vector<2x128x128xf32>
    %c0_39 = arith.constant 0 : index
    %c0_40 = arith.constant 0 : index
    %c0_41 = arith.constant 0 : index
    %73 = vector.load %arg13[%c0_39, %c0_40, %c0_41] : memref<2x128x128xf32, #tpu.memory_space<vmem>>, vector<2x128x128xf32>
    tpu.vector_store %arg13[%c0_39, %c0_40, %c0_41], %72 {strides = array<i32>} : memref<2x128x128xf32, #tpu.memory_space<vmem>>, vector<2x128x128xf32>,
    return
  }
  func.func @transform_0(%arg0: i32) -> (i32, i32, i32) {
    %c0_i32 = arith.constant 0 : i32
    %c0_i32_0 = arith.constant 0 : i32
    %c0_i32_1 = arith.constant 0 : i32
    return %arg0, %c0_i32, %c0_i32_0 : i32, i32, i32
  }
  func.func @transform_1(%arg0: i32) -> (i32, i32, i32) {
    %c0_i32 = arith.constant 0 : i32
    %c0_i32_0 = arith.constant 0 : i32
    %c0_i32_1 = arith.constant 0 : i32
    return %arg0, %c0_i32, %c0_i32_0 : i32, i32, i32
  }
  func.func @transform_2(%arg0: i32) -> (i32, i32) {
    %c0_i32 = arith.constant 0 : i32
    %c0_i32_0 = arith.constant 0 : i32
    %c0_i32_1 = arith.constant 0 : i32
    return %c0_i32, %c0_i32_0 : i32, i32
  }
  func.func @transform_3(%arg0: i32) -> (i32, i32) {
    %c0_i32 = arith.constant 0 : i32
    %c0_i32_0 = arith.constant 0 : i32
    %c0_i32_1 = arith.constant 0 : i32
    return %c0_i32, %c0_i32_0 : i32, i32
  }
  func.func @transform_4(%arg0: i32) -> (i32, i32) {
    %c0_i32 = arith.constant 0 : i32
    %c0_i32_0 = arith.constant 0 : i32
    %c0_i32_1 = arith.constant 0 : i32
    return %c0_i32, %c0_i32_0 : i32, i32
  }
  func.func @transform_5(%arg0: i32) -> (i32, i32) {
    %c0_i32 = arith.constant 0 : i32
    %c0_i32_0 = arith.constant 0 : i32
    %c0_i32_1 = arith.constant 0 : i32
    return %c0_i32, %c0_i32_0 : i32, i32
  }
  func.func @transform_6(%arg0: i32) -> (i32, i32) {
    %c0_i32 = arith.constant 0 : i32
    %c0_i32_0 = arith.constant 0 : i32
    %c0_i32_1 = arith.constant 0 : i32
    return %c0_i32, %c0_i32_0 : i32, i32
  }
  func.func @transform_7(%arg0: i32) -> (i32, i32) {
    %c0_i32 = arith.constant 0 : i32
    %c0_i32_0 = arith.constant 0 : i32
    %c0_i32_1 = arith.constant 0 : i32
    return %c0_i32, %c0_i32_0 : i32, i32
  }
  func.func @transform_8(%arg0: i32) -> (i32, i32) {
    %c0_i32 = arith.constant 0 : i32
    %c0_i32_0 = arith.constant 0 : i32
    %c0_i32_1 = arith.constant 0 : i32
    return %c0_i32, %c0_i32_0 : i32, i32
  }
  func.func @transform_9(%arg0: i32) -> (i32, i32) {
    %c0_i32 = arith.constant 0 : i32
    %c0_i32_0 = arith.constant 0 : i32
    %c0_i32_1 = arith.constant 0 : i32
    return %c0_i32, %c0_i32_0 : i32, i32
  }
  func.func @transform_10(%arg0: i32) -> (i32, i32) {
    %c0_i32 = arith.constant 0 : i32
    %c0_i32_0 = arith.constant 0 : i32
    %c0_i32_1 = arith.constant 0 : i32
    return %c0_i32, %c0_i32_0 : i32, i32
  }
  func.func @transform_11(%arg0: i32) -> (i32, i32) {
    %c0_i32 = arith.constant 0 : i32
    %c0_i32_0 = arith.constant 0 : i32
    %c0_i32_1 = arith.constant 0 : i32
    return %c0_i32, %c0_i32_0 : i32, i32
  }
  func.func @transform_12(%arg0: i32) -> (i32, i32, i32) {
    %c0_i32 = arith.constant 0 : i32
    %c0_i32_0 = arith.constant 0 : i32
    %c0_i32_1 = arith.constant 0 : i32
    return %arg0, %c0_i32, %c0_i32_0 : i32, i32, i32
  }
}

</mosaic_0001>

<llo_original>
// kernel: tpu_custom_call.1
$region0: #{tpu_custom_call.1}
  #allocation0 [shape = 'u32[]', space=smem, size = 0x4, offset = 0x4, fixed_abs, tag = 'smem constant byte address 0x4 - core index']
  #allocation1 [shape = 'u32[144,128]{1,0:T(1,128)}', space=vmem, size = 0x12000, scoped, tag = 'internal scratch']
  %s0 = inlined_call_operand.hbm [shape: bf16[4,128,128], index: 0, kind: input, shape index: {}]
  %s1 = inlined_call_operand.hbm [shape: bf16[4,128,128], index: 1, kind: input, shape index: {}]
  %s2 = inlined_call_operand.hbm [shape: bf16[128,128], index: 2, kind: input, shape index: {}]
  %s3 = inlined_call_operand.vmem [shape: f32[1,128], index: 3, kind: input, shape index: {}]
  %s4 = inlined_call_operand.hbm [shape: bf16[128,128], index: 4, kind: input, shape index: {}]
  %s5 = inlined_call_operand.vmem [shape: f32[1,128], index: 5, kind: input, shape index: {}]
  %s6 = inlined_call_operand.hbm [shape: bf16[128,128], index: 6, kind: input, shape index: {}]
  %s7 = inlined_call_operand.vmem [shape: f32[1,128], index: 7, kind: input, shape index: {}]
  %s8 = inlined_call_operand.hbm [shape: bf16[128,128], index: 8, kind: input, shape index: {}]
  %s9 = inlined_call_operand.hbm [shape: bf16[128,128], index: 9, kind: input, shape index: {}]
  %s10 = inlined_call_operand.hbm [shape: bf16[128,128], index: 10, kind: input, shape index: {}]
  %s11 = inlined_call_operand.vmem [shape: f32[1,128], index: 11, kind: input, shape index: {}]
  %s12 = inlined_call_operand.hbm [shape: f32[4,128,128], index: 12, kind: output, shape index: {}]
  %s13 = sld [smem:[#allocation0]]
  $region113: #{tpu_custom_call.1} parent=0
    _
  %s15 = ssub.s32 1, %s13
  %s16 = scalar_select 0, %s15, %s13
  $region1: #{tpu_custom_call.1} parent=0
    #allocation2 [shape = 'u8[131072]{0}', space=vmem, size = 0x20000, scoped, tag = 'input window, operand 0']
    #allocation3 [shape = 's32[2]{0}', space=sflag, size = 0x8, scoped, tag = 'scoped memory for tpu_custom_call.1']
    #allocation4 [shape = 's32[2]{0}', space=sflag, size = 0x8, scoped, tag = 'scoped memory for tpu_custom_call.1']
    #allocation5 [shape = 'u8[131072]{0}', space=vmem, size = 0x20000, scoped, tag = 'input window, operand 1']
    #allocation6 [shape = 's32[2]{0}', space=sflag, size = 0x8, scoped, tag = 'scoped memory for tpu_custom_call.1']
    #allocation7 [shape = 'u8[32768]{0}', space=vmem, size = 0x8000, scoped, tag = 'input window, operand 2, single buffered']
    #allocation8 [shape = 'u8[32768]{0}', space=vmem, size = 0x8000, scoped, tag = 'input window, operand 4, single buffered']
    #allocation9 [shape = 's32[1]{0}', space=sflag, size = 0x4, scoped, tag = 'scoped memory for tpu_custom_call.1']
    #allocation10 [shape = 'u8[32768]{0}', space=vmem, size = 0x8000, scoped, tag = 'input window, operand 6, single buffered']
    #allocation11 [shape = 'u8[32768]{0}', space=vmem, size = 0x8000, scoped, tag = 'input window, operand 8, single buffered']
    #allocation12 [shape = 's32[1]{0}', space=sflag, size = 0x4, scoped, tag = 'scoped memory for tpu_custom_call.1']
    #allocation13 [shape = 'u8[32768]{0}', space=vmem, size = 0x8000, scoped, tag = 'input window, operand 9, single buffered']
    #allocation14 [shape = 'u8[32768]{0}', space=vmem, size = 0x8000, scoped, tag = 'input window, operand 10, single buffered']
    #allocation15 [shape = 's32[1]{0}', space=sflag, size = 0x4, scoped, tag = 'scoped memory for tpu_custom_call.1']
    #allocation16 [shape = 'u8[262144]{0}', space=vmem, size = 0x40000, scoped, tag = 'output window, operand 0']
    %17 = vsyncpa [#allocation3], 0
    %s18 = scalar_lea.sflag [#allocation3], 1
    %19 = vsyncpa %s18, 0
    %20 = vsyncpa [#allocation6], 0
    %s21 = scalar_lea.sflag [#allocation6], 1
    %22 = vsyncpa %s21, 0
    %23 = vsyncpa [#allocation9], 0
    %24 = vsyncpa [#allocation12], 0
    %25 = vsyncpa [#allocation15], 0
    %26 = vsyncpa [#allocation4], 0
    %s27 = scalar_lea.sflag [#allocation4], 1
    %28 = vsyncpa %s27, 0
    loop: start=0, step=1, limit=4
    $region2: #{tpu_custom_call.1} parent=1 // loop_pre_header
      _
    $region3: #{tpu_custom_call.1} parent=1 // loop_header
      %s30 = sphi 0, %s34
      %p31 = scmp.ge.s32.totalorder %s30, 4
      %s40 = sphi 0, %s42
      %s43 = sphi 0, %s40
      %s44 = sphi 0, %s43
      %s60 = sphi 0, %s44
      %s66 = sphi 0, %s68
      %s69 = sphi 0, %s66
      %s70 = sphi 0, %s69
      %s86 = sphi 0, %s70
      %s90 = sphi 0, %s90
      %s92 = sphi 0, %s90
      %s93 = sphi 0, %s92
      %s107 = sphi 0, %s93
      %s111 = sphi 0, %s111
      %s113 = sphi 0, %s111
      %s114 = sphi 0, %s113
      %s128 = sphi 0, %s114
      %s132 = sphi 0, %s132
      %s134 = sphi 0, %s132
      %s135 = sphi 0, %s134
      %s149 = sphi 0, %s135
      %s153 = sphi 0, %s153
      %s155 = sphi 0, %s153
      %s156 = sphi 0, %s155
      %s170 = sphi 0, %s156
      %s174 = sphi 0, %s174
      %s176 = sphi 0, %s174
      %s177 = sphi 0, %s176
      %s191 = sphi 0, %s177
      %s195 = sphi 0, %s195
      %s197 = sphi 0, %s195
      %s198 = sphi 0, %s197
      %s212 = sphi 0, %s198
      %s216 = sphi 0, %s216
      %s218 = sphi 0, %s216
      %s219 = sphi 0, %s218
      %s233 = sphi 0, %s219
      %s237 = sphi 0, %s237
      %s239 = sphi 0, %s237
      %s240 = sphi 0, %s239
      %s254 = sphi 0, %s240
      %s258 = sphi 0, %s258
      %s260 = sphi 0, %s258
      %s261 = sphi 0, %s260
      %s275 = sphi 0, %s261
      %s279 = sphi 0, %s279
      %s281 = sphi 0, %s279
      %s282 = sphi 0, %s281
      %s296 = sphi 0, %s282
      %s302 = sphi 0, %s304
      %s305 = sphi 0, %s302
      %s306 = sphi 0, %s305
      %s322 = sphi 0, %s306
    $region4: #{tpu_custom_call.1} parent=1 // loop_header_branch
      %33 = sbr.rel (%p31) target = $region8
    $region5: #{tpu_custom_call.1} parent=1 // loop_body
      %s35 = ssub.s32 %s30, 1
      %s36 = ssub.s32 %s30, 2
      %s37 = sadd.s32 %s30, 1
      %s38 = ssub.s32 %s30, %s37
      %p39 = scmp.eq.s32.totalorder %s38, 0
      %s41 = sadd.s32 %s40, 1
      %s42 = scalar_select %p39, %s40, %s41
      %p45 = pneg %p39
      %p46 = scmp.eq.s32.totalorder %s30, 1
      %p47 = por %p45, %p46
      %p48 = scmp.ne.s32.totalorder %s40, %s43
      %p49 = scmp.eq.s32.totalorder %s30, 0
      %p50 = por %p48, %p49
      %p51 = scmp.ne.s32.totalorder %s40, %s43
      %p52 = scmp.eq.s32.totalorder %s35, 1
      %p53 = por %p51, %p52
      %p54 = scmp.ne.s32.totalorder %s43, %s44
      %p55 = scmp.eq.s32.totalorder %s35, 0
      %p56 = por %p54, %p55
      %p57 = scmp.ne.s32.totalorder %s43, %s44
      %p58 = scmp.eq.s32.totalorder %s36, 1
      %p59 = por %p57, %p58
      %p61 = scmp.ne.s32.totalorder %s44, %s60
      %p62 = scmp.eq.s32.totalorder %s36, 0
      %p63 = por %p61, %p62
      %s64 = ssub.s32 %s30, %s37
      %p65 = scmp.eq.s32.totalorder %s64, 0
      %s67 = sadd.s32 %s66, 1
      %s68 = scalar_select %p65, %s66, %s67
      %p71 = pneg %p65
      %p72 = scmp.eq.s32.totalorder %s30, 1
      %p73 = por %p71, %p72
      %p74 = scmp.ne.s32.totalorder %s66, %s69
      %p75 = scmp.eq.s32.totalorder %s30, 0
      %p76 = por %p74, %p75
      %p77 = scmp.ne.s32.totalorder %s66, %s69
      %p78 = scmp.eq.s32.totalorder %s35, 1
      %p79 = por %p77, %p78
      %p80 = scmp.ne.s32.totalorder %s69, %s70
      %p81 = scmp.eq.s32.totalorder %s35, 0
      %p82 = por %p80, %p81
      %p83 = scmp.ne.s32.totalorder %s69, %s70
      %p84 = scmp.eq.s32.totalorder %s36, 1
      %p85 = por %p83, %p84
      %p87 = scmp.ne.s32.totalorder %s70, %s86
      %p88 = scmp.eq.s32.totalorder %s36, 0
      %p89 = por %p87, %p88
      %s91 = sadd.s32 %s90, 1
      %p94 = scmp.eq.s32.totalorder %s30, 1
      %p95 = scmp.ne.s32.totalorder %s90, %s92
      %p96 = scmp.eq.s32.totalorder %s30, 0
      %p97 = por %p95, %p96
      %p98 = scmp.ne.s32.totalorder %s90, %s92
      %p99 = scmp.eq.s32.totalorder %s35, 1
      %p100 = por %p98, %p99
      %p101 = scmp.ne.s32.totalorder %s92, %s93
      %p102 = scmp.eq.s32.totalorder %s35, 0
      %p103 = por %p101, %p102
      %p104 = scmp.ne.s32.totalorder %s92, %s93
      %p105 = scmp.eq.s32.totalorder %s36, 1
      %p106 = por %p104, %p105
      %p108 = scmp.ne.s32.totalorder %s93, %s107
      %p109 = scmp.eq.s32.totalorder %s36, 0
      %p110 = por %p108, %p109
      %s112 = sadd.s32 %s111, 1
      %p115 = scmp.eq.s32.totalorder %s30, 1
      %p116 = scmp.ne.s32.totalorder %s111, %s113
      %p117 = scmp.eq.s32.totalorder %s30, 0
      %p118 = por %p116, %p117
      %p119 = scmp.ne.s32.totalorder %s111, %s113
      %p120 = scmp.eq.s32.totalorder %s35, 1
      %p121 = por %p119, %p120
      %p122 = scmp.ne.s32.totalorder %s113, %s114
      %p123 = scmp.eq.s32.totalorder %s35, 0
      %p124 = por %p122, %p123
      %p125 = scmp.ne.s32.totalorder %s113, %s114
      %p126 = scmp.eq.s32.totalorder %s36, 1
      %p127 = por %p125, %p126
      %p129 = scmp.ne.s32.totalorder %s114, %s128
      %p130 = scmp.eq.s32.totalorder %s36, 0
      %p131 = por %p129, %p130
      %s133 = sadd.s32 %s132, 1
      %p136 = scmp.eq.s32.totalorder %s30, 1
      %p137 = scmp.ne.s32.totalorder %s132, %s134
      %p138 = scmp.eq.s32.totalorder %s30, 0
      %p139 = por %p137, %p138
      %p140 = scmp.ne.s32.totalorder %s132, %s134
      %p141 = scmp.eq.s32.totalorder %s35, 1
      %p142 = por %p140, %p141
      %p143 = scmp.ne.s32.totalorder %s134, %s135
      %p144 = scmp.eq.s32.totalorder %s35, 0
      %p145 = por %p143, %p144
      %p146 = scmp.ne.s32.totalorder %s134, %s135
      %p147 = scmp.eq.s32.totalorder %s36, 1
      %p148 = por %p146, %p147
      %p150 = scmp.ne.s32.totalorder %s135, %s149
      %p151 = scmp.eq.s32.totalorder %s36, 0
      %p152 = por %p150, %p151
      %s154 = sadd.s32 %s153, 1
      %p157 = scmp.eq.s32.totalorder %s30, 1
      %p158 = scmp.ne.s32.totalorder %s153, %s155
      %p159 = scmp.eq.s32.totalorder %s30, 0
      %p160 = por %p158, %p159
      %p161 = scmp.ne.s32.totalorder %s153, %s155
      %p162 = scmp.eq.s32.totalorder %s35, 1
      %p163 = por %p161, %p162
      %p164 = scmp.ne.s32.totalorder %s155, %s156
      %p165 = scmp.eq.s32.totalorder %s35, 0
      %p166 = por %p164, %p165
      %p167 = scmp.ne.s32.totalorder %s155, %s156
      %p168 = scmp.eq.s32.totalorder %s36, 1
      %p169 = por %p167, %p168
      %p171 = scmp.ne.s32.totalorder %s156, %s170
      %p172 = scmp.eq.s32.totalorder %s36, 0
      %p173 = por %p171, %p172
      %s175 = sadd.s32 %s174, 1
      %p178 = scmp.eq.s32.totalorder %s30, 1
      %p179 = scmp.ne.s32.totalorder %s174, %s176
      %p180 = scmp.eq.s32.totalorder %s30, 0
      %p181 = por %p179, %p180
      %p182 = scmp.ne.s32.totalorder %s174, %s176
      %p183 = scmp.eq.s32.totalorder %s35, 1
      %p184 = por %p182, %p183
      %p185 = scmp.ne.s32.totalorder %s176, %s177
      %p186 = scmp.eq.s32.totalorder %s35, 0
      %p187 = por %p185, %p186
      %p188 = scmp.ne.s32.totalorder %s176, %s177
      %p189 = scmp.eq.s32.totalorder %s36, 1
      %p190 = por %p188, %p189
      %p192 = scmp.ne.s32.totalorder %s177, %s191
      %p193 = scmp.eq.s32.totalorder %s36, 0
      %p194 = por %p192, %p193
      %s196 = sadd.s32 %s195, 1
      %p199 = scmp.eq.s32.totalorder %s30, 1
      %p200 = scmp.ne.s32.totalorder %s195, %s197
      %p201 = scmp.eq.s32.totalorder %s30, 0
      %p202 = por %p200, %p201
      %p203 = scmp.ne.s32.totalorder %s195, %s197
      %p204 = scmp.eq.s32.totalorder %s35, 1
      %p205 = por %p203, %p204
      %p206 = scmp.ne.s32.totalorder %s197, %s198
      %p207 = scmp.eq.s32.totalorder %s35, 0
      %p208 = por %p206, %p207
      %p209 = scmp.ne.s32.totalorder %s197, %s198
      %p210 = scmp.eq.s32.totalorder %s36, 1
      %p211 = por %p209, %p210
      %p213 = scmp.ne.s32.totalorder %s198, %s212
      %p214 = scmp.eq.s32.totalorder %s36, 0
      %p215 = por %p213, %p214
      %s217 = sadd.s32 %s216, 1
      %p220 = scmp.eq.s32.totalorder %s30, 1
      %p221 = scmp.ne.s32.totalorder %s216, %s218
      %p222 = scmp.eq.s32.totalorder %s30, 0
      %p223 = por %p221, %p222
      %p224 = scmp.ne.s32.totalorder %s216, %s218
      %p225 = scmp.eq.s32.totalorder %s35, 1
      %p226 = por %p224, %p225
      %p227 = scmp.ne.s32.totalorder %s218, %s219
      %p228 = scmp.eq.s32.totalorder %s35, 0
      %p229 = por %p227, %p228
      %p230 = scmp.ne.s32.totalorder %s218, %s219
      %p231 = scmp.eq.s32.totalorder %s36, 1
      %p232 = por %p230, %p231
      %p234 = scmp.ne.s32.totalorder %s219, %s233
      %p235 = scmp.eq.s32.totalorder %s36, 0
      %p236 = por %p234, %p235
      %s238 = sadd.s32 %s237, 1
      %p241 = scmp.eq.s32.totalorder %s30, 1
      %p242 = scmp.ne.s32.totalorder %s237, %s239
      %p243 = scmp.eq.s32.totalorder %s30, 0
      %p244 = por %p242, %p243
      %p245 = scmp.ne.s32.totalorder %s237, %s239
      %p246 = scmp.eq.s32.totalorder %s35, 1
      %p247 = por %p245, %p246
      %p248 = scmp.ne.s32.totalorder %s239, %s240
      %p249 = scmp.eq.s32.totalorder %s35, 0
      %p250 = por %p248, %p249
      %p251 = scmp.ne.s32.totalorder %s239, %s240
      %p252 = scmp.eq.s32.totalorder %s36, 1
      %p253 = por %p251, %p252
      %p255 = scmp.ne.s32.totalorder %s240, %s254
      %p256 = scmp.eq.s32.totalorder %s36, 0
      %p257 = por %p255, %p256
      %s259 = sadd.s32 %s258, 1
      %p262 = scmp.eq.s32.totalorder %s30, 1
      %p263 = scmp.ne.s32.totalorder %s258, %s260
      %p264 = scmp.eq.s32.totalorder %s30, 0
      %p265 = por %p263, %p264
      %p266 = scmp.ne.s32.totalorder %s258, %s260
      %p267 = scmp.eq.s32.totalorder %s35, 1
      %p268 = por %p266, %p267
      %p269 = scmp.ne.s32.totalorder %s260, %s261
      %p270 = scmp.eq.s32.totalorder %s35, 0
      %p271 = por %p269, %p270
      %p272 = scmp.ne.s32.totalorder %s260, %s261
      %p273 = scmp.eq.s32.totalorder %s36, 1
      %p274 = por %p272, %p273
      %p276 = scmp.ne.s32.totalorder %s261, %s275
      %p277 = scmp.eq.s32.totalorder %s36, 0
      %p278 = por %p276, %p277
      %s280 = sadd.s32 %s279, 1
      %p283 = scmp.eq.s32.totalorder %s30, 1
      %p284 = scmp.ne.s32.totalorder %s279, %s281
      %p285 = scmp.eq.s32.totalorder %s30, 0
      %p286 = por %p284, %p285
      %p287 = scmp.ne.s32.totalorder %s279, %s281
      %p288 = scmp.eq.s32.totalorder %s35, 1
      %p289 = por %p287, %p288
      %p290 = scmp.ne.s32.totalorder %s281, %s282
      %p291 = scmp.eq.s32.totalorder %s35, 0
      %p292 = por %p290, %p291
      %p293 = scmp.ne.s32.totalorder %s281, %s282
      %p294 = scmp.eq.s32.totalorder %s36, 1
      %p295 = por %p293, %p294
      %p297 = scmp.ne.s32.totalorder %s282, %s296
      %p298 = scmp.eq.s32.totalorder %s36, 0
      %p299 = por %p297, %p298
      %s300 = ssub.s32 %s30, %s37
      %p301 = scmp.eq.s32.totalorder %s300, 0
      %s303 = sadd.s32 %s302, 1
      %s304 = scalar_select %p301, %s302, %s303
      %p307 = pneg %p301
      %p308 = scmp.eq.s32.totalorder %s30, 1
      %p309 = por %p307, %p308
      %p310 = scmp.ne.s32.totalorder %s302, %s305
      %p311 = scmp.eq.s32.totalorder %s30, 0
      %p312 = por %p310, %p311
      %p313 = scmp.ne.s32.totalorder %s302, %s305
      %p314 = scmp.eq.s32.totalorder %s35, 1
      %p315 = por %p313, %p314
      %p316 = scmp.ne.s32.totalorder %s305, %s306
      %p317 = scmp.eq.s32.totalorder %s35, 0
      %p318 = por %p316, %p317
      %p319 = scmp.ne.s32.totalorder %s305, %s306
      %p320 = scmp.eq.s32.totalorder %s36, 1
      %p321 = por %p319, %p320
      %p323 = scmp.ne.s32.totalorder %s306, %s322
      %p324 = scmp.eq.s32.totalorder %s36, 0
      %p325 = por %p323, %p324
      %p326 = scmp.le.s32.totalorder 1, %s30
      %p327 = scmp.lt.s32.totalorder %s30, 3
      %p328 = pnand %p326, %p327
      %p329 = pneg %p328
      // Predicated region
      $region9: #{tpu_custom_call.1} parent=5 // pred_check
        _
      $region10: #{tpu_custom_call.1} parent=5 // pred_check_branch
        %331 = sbr.rel (%p328) target = $region12
      $region11: #{tpu_custom_call.1} parent=5 // pred_region
        %s332 = ssub.s32 %s30, 1
        // Predicated region
        $region13: #{tpu_custom_call.1} parent=11 // pred_check
          %p333 = pneg %p103
        $region14: #{tpu_custom_call.1} parent=11 // pred_check_branch
          %335 = sbr.rel (%p333) target = $region16
        $region15: #{tpu_custom_call.1} parent=11 // pred_region
          %s337 = ssub.s32 1024, 1024
          %338 = vsyncadd [#allocation6], %s337
          %s339 = sshll.u32 [#allocation7], 4
          %s340 = int_to_ptr.vmem [resolvable:$true] %s339
          %345 = dma.hbm_to_vmem [thread:$0]  %s2, 1024, %s340, [#allocation6], 64, 64, 4
        $region16: #{tpu_custom_call.1} parent=11 // pred_fallthru
          _
        // Predicated region
        $region17: #{tpu_custom_call.1} parent=11 // pred_check
          %p346 = pneg %p124
        $region18: #{tpu_custom_call.1} parent=11 // pred_check_branch
          %348 = sbr.rel (%p346) target = $region20
        $region19: #{tpu_custom_call.1} parent=11 // pred_region
          _
        $region20: #{tpu_custom_call.1} parent=11 // pred_fallthru
          _
        // Predicated region
        $region21: #{tpu_custom_call.1} parent=11 // pred_check
          %p349 = pneg %p145
        $region22: #{tpu_custom_call.1} parent=11 // pred_check_branch
          %351 = sbr.rel (%p349) target = $region24
        $region23: #{tpu_custom_call.1} parent=11 // pred_region
          %s353 = ssub.s32 1024, 1024
          %354 = vsyncadd [#allocation9], %s353
          %s355 = sshll.u32 [#allocation8], 4
          %s356 = int_to_ptr.vmem [resolvable:$true] %s355
          %361 = dma.hbm_to_vmem [thread:$0]  %s4, 1024, %s356, [#allocation9], 64, 64, 4
        $region24: #{tpu_custom_call.1} parent=11 // pred_fallthru
          _
        // Predicated region
        $region25: #{tpu_custom_call.1} parent=11 // pred_check
          %p362 = pneg %p166
        $region26: #{tpu_custom_call.1} parent=11 // pred_check_branch
          %364 = sbr.rel (%p362) target = $region28
        $region27: #{tpu_custom_call.1} parent=11 // pred_region
          _
        $region28: #{tpu_custom_call.1} parent=11 // pred_fallthru
          _
        // Predicated region
        $region29: #{tpu_custom_call.1} parent=11 // pred_check
          %p365 = pneg %p187
        $region30: #{tpu_custom_call.1} parent=11 // pred_check_branch
          %367 = sbr.rel (%p365) target = $region32
        $region31: #{tpu_custom_call.1} parent=11 // pred_region
          %s369 = ssub.s32 1024, 1024
          %370 = vsyncadd [#allocation9], %s369
          %s371 = sshll.u32 [#allocation10], 4
          %s372 = int_to_ptr.vmem [resolvable:$true] %s371
          %377 = dma.hbm_to_vmem [thread:$0]  %s6, 1024, %s372, [#allocation9], 64, 64, 4
        $region32: #{tpu_custom_call.1} parent=11 // pred_fallthru
          _
        // Predicated region
        $region33: #{tpu_custom_call.1} parent=11 // pred_check
          %p378 = pneg %p208
        $region34: #{tpu_custom_call.1} parent=11 // pred_check_branch
          %380 = sbr.rel (%p378) target = $region36
        $region35: #{tpu_custom_call.1} parent=11 // pred_region
          _
        $region36: #{tpu_custom_call.1} parent=11 // pred_fallthru
          _
        // Predicated region
        $region37: #{tpu_custom_call.1} parent=11 // pred_check
          %p381 = pneg %p229
        $region38: #{tpu_custom_call.1} parent=11 // pred_check_branch
          %383 = sbr.rel (%p381) target = $region40
        $region39: #{tpu_custom_call.1} parent=11 // pred_region
          %s385 = ssub.s32 1024, 1024
          %386 = vsyncadd [#allocation12], %s385
          %s387 = sshll.u32 [#allocation11], 4
          %s388 = int_to_ptr.vmem [resolvable:$true] %s387
          %393 = dma.hbm_to_vmem [thread:$0]  %s8, 1024, %s388, [#allocation12], 64, 64, 4
        $region40: #{tpu_custom_call.1} parent=11 // pred_fallthru
          _
        // Predicated region
        $region41: #{tpu_custom_call.1} parent=11 // pred_check
          %p394 = pneg %p250
        $region42: #{tpu_custom_call.1} parent=11 // pred_check_branch
          %396 = sbr.rel (%p394) target = $region44
        $region43: #{tpu_custom_call.1} parent=11 // pred_region
          %s398 = ssub.s32 1024, 1024
          %399 = vsyncadd [#allocation12], %s398
          %s400 = sshll.u32 [#allocation13], 4
          %s401 = int_to_ptr.vmem [resolvable:$true] %s400
          %406 = dma.hbm_to_vmem [thread:$0]  %s9, 1024, %s401, [#allocation12], 64, 64, 4
        $region44: #{tpu_custom_call.1} parent=11 // pred_fallthru
          _
        // Predicated region
        $region45: #{tpu_custom_call.1} parent=11 // pred_check
          %p407 = pneg %p271
        $region46: #{tpu_custom_call.1} parent=11 // pred_check_branch
          %409 = sbr.rel (%p407) target = $region48
        $region47: #{tpu_custom_call.1} parent=11 // pred_region
          %s411 = ssub.s32 1024, 1024
          %412 = vsyncadd [#allocation15], %s411
          %s413 = sshll.u32 [#allocation14], 4
          %s414 = int_to_ptr.vmem [resolvable:$true] %s413
          %419 = dma.hbm_to_vmem [thread:$0]  %s10, 1024, %s414, [#allocation15], 64, 64, 4
        $region48: #{tpu_custom_call.1} parent=11 // pred_fallthru
          _
        // Predicated region
        $region49: #{tpu_custom_call.1} parent=11 // pred_check
          %p420 = pneg %p292
        $region50: #{tpu_custom_call.1} parent=11 // pred_check_branch
          %422 = sbr.rel (%p420) target = $region52
        $region51: #{tpu_custom_call.1} parent=11 // pred_region
          _
        $region52: #{tpu_custom_call.1} parent=11 // pred_fallthru
          _
      $region12: #{tpu_custom_call.1} parent=5 // pred_fallthru
        _
      %p423 = scmp.lt.s32.totalorder %s30, 2
      // Predicated region
      $region53: #{tpu_custom_call.1} parent=5 // pred_check
        %p424 = pneg %p423
      $region54: #{tpu_custom_call.1} parent=5 // pred_check_branch
        %426 = sbr.rel (%p424) target = $region56
      $region55: #{tpu_custom_call.1} parent=5 // pred_region
        // Predicated region
        $region57: #{tpu_custom_call.1} parent=55 // pred_check
          %p427 = pneg %p50
        $region58: #{tpu_custom_call.1} parent=55 // pred_check_branch
          %429 = sbr.rel (%p427) target = $region60
        $region59: #{tpu_custom_call.1} parent=55 // pred_region
          %s430 = sand.u32 %s40, 1
          %s431 = scalar_lea.sflag [#allocation3], %s430
          %s432 = sand.u32 %s40, 1
          %s433 = smul.addr %s432, 128
          %s434 = scalar_lea.vmem [#allocation2], %s433
          %s435 = smul.u32 2, %s30
          %s437 = ssub.s32 2048, 2048
          %438 = vsyncadd %s431, %s437
          %s439 = smul.addr %s435, 16
          %s440 = smul.addr %s439, 64
          %s441 = scalar_lea.hbm %s0, %s440
          %s442 = sshll.u32 %s434, 4
          %s443 = int_to_ptr.vmem [resolvable:$true] %s442
          %448 = dma.hbm_to_vmem [thread:$0]  %s441, 2048, %s443, %s431, 64, 64, 4
        $region60: #{tpu_custom_call.1} parent=55 // pred_fallthru
          _
        // Predicated region
        $region61: #{tpu_custom_call.1} parent=55 // pred_check
          %p449 = pneg %p76
        $region62: #{tpu_custom_call.1} parent=55 // pred_check_branch
          %451 = sbr.rel (%p449) target = $region64
        $region63: #{tpu_custom_call.1} parent=55 // pred_region
          %s452 = sand.u32 %s30, 1
          %s453 = scalar_lea.sflag [#allocation6], %s452
          %s454 = sand.u32 %s66, 1
          %s455 = smul.addr %s454, 128
          %s456 = scalar_lea.vmem [#allocation5], %s455
          %s457 = smul.u32 2, %s30
          %s459 = ssub.s32 2048, 2048
          %460 = vsyncadd %s453, %s459
          %s461 = smul.addr %s457, 16
          %s462 = smul.addr %s461, 64
          %s463 = scalar_lea.hbm %s1, %s462
          %s464 = sshll.u32 %s456, 4
          %s465 = int_to_ptr.vmem [resolvable:$true] %s464
          %470 = dma.hbm_to_vmem [thread:$0]  %s463, 2048, %s465, %s453, 64, 64, 4
        $region64: #{tpu_custom_call.1} parent=55 // pred_fallthru
          _
      $region56: #{tpu_custom_call.1} parent=5 // pred_fallthru
        _
      %p471 = scmp.le.s32.totalorder 1, %s30
      %p472 = scmp.lt.s32.totalorder %s30, 3
      %p473 = pnand %p471, %p472
      %p474 = pneg %p473
      // Predicated region
      $region65: #{tpu_custom_call.1} parent=5 // pred_check
        _
      $region66: #{tpu_custom_call.1} parent=5 // pred_check_branch
        %476 = sbr.rel (%p473) target = $region68
      $region67: #{tpu_custom_call.1} parent=5 // pred_region
        %s477 = ssub.s32 %s30, 1
        %s478 = sand.u32 %s43, 1
        %s479 = scalar_lea.sflag [#allocation3], %s478
        %s480 = sand.u32 %s43, 1
        %s481 = smul.addr %s480, 128
        %s482 = scalar_lea.vmem [#allocation2], %s481
        // Predicated region
        $region69: #{tpu_custom_call.1} parent=67 // pred_check
          %p483 = pneg %p56
        $region70: #{tpu_custom_call.1} parent=67 // pred_check_branch
          %485 = sbr.rel (%p483) target = $region72
        $region71: #{tpu_custom_call.1} parent=67 // pred_region
          %486 = dma.done %s479, 2048
        $region72: #{tpu_custom_call.1} parent=67 // pred_fallthru
          _
        %s487 = sand.u32 %s35, 1
        %s488 = scalar_lea.sflag [#allocation6], %s487
        %s489 = sand.u32 %s69, 1
        %s490 = smul.addr %s489, 128
        %s491 = scalar_lea.vmem [#allocation5], %s490
        // Predicated region
        $region73: #{tpu_custom_call.1} parent=67 // pred_check
          %p492 = pneg %p82
        $region74: #{tpu_custom_call.1} parent=67 // pred_check_branch
          %494 = sbr.rel (%p492) target = $region76
        $region75: #{tpu_custom_call.1} parent=67 // pred_region
          %495 = dma.done %s488, 2048
        $region76: #{tpu_custom_call.1} parent=67 // pred_fallthru
          _
        // Predicated region
        $region77: #{tpu_custom_call.1} parent=67 // pred_check
          %p496 = pneg %p103
        $region78: #{tpu_custom_call.1} parent=67 // pred_check_branch
          %498 = sbr.rel (%p496) target = $region80
        $region79: #{tpu_custom_call.1} parent=67 // pred_region
          %499 = dma.done [#allocation6], 1024
        $region80: #{tpu_custom_call.1} parent=67 // pred_fallthru
          _
        // Predicated region
        $region81: #{tpu_custom_call.1} parent=67 // pred_check
          %p500 = pneg %p145
        $region82: #{tpu_custom_call.1} parent=67 // pred_check_branch
          %502 = sbr.rel (%p500) target = $region84
        $region83: #{tpu_custom_call.1} parent=67 // pred_region
          %503 = dma.done [#allocation9], 1024
        $region84: #{tpu_custom_call.1} parent=67 // pred_fallthru
          _
        // Predicated region
        $region85: #{tpu_custom_call.1} parent=67 // pred_check
          %p504 = pneg %p187
        $region86: #{tpu_custom_call.1} parent=67 // pred_check_branch
          %506 = sbr.rel (%p504) target = $region88
        $region87: #{tpu_custom_call.1} parent=67 // pred_region
          %507 = dma.done [#allocation9], 1024
        $region88: #{tpu_custom_call.1} parent=67 // pred_fallthru
          _
        // Predicated region
        $region89: #{tpu_custom_call.1} parent=67 // pred_check
          %p508 = pneg %p229
        $region90: #{tpu_custom_call.1} parent=67 // pred_check_branch
          %510 = sbr.rel (%p508) target = $region92
        $region91: #{tpu_custom_call.1} parent=67 // pred_region
          %511 = dma.done [#allocation12], 1024
        $region92: #{tpu_custom_call.1} parent=67 // pred_fallthru
          _
        // Predicated region
        $region93: #{tpu_custom_call.1} parent=67 // pred_check
          %p512 = pneg %p250
        $region94: #{tpu_custom_call.1} parent=67 // pred_check_branch
          %514 = sbr.rel (%p512) target = $region96
        $region95: #{tpu_custom_call.1} parent=67 // pred_region
          %515 = dma.done [#allocation12], 1024
        $region96: #{tpu_custom_call.1} parent=67 // pred_fallthru
          _
        // Predicated region
        $region97: #{tpu_custom_call.1} parent=67 // pred_check
          %p516 = pneg %p271
        $region98: #{tpu_custom_call.1} parent=67 // pred_check_branch
          %518 = sbr.rel (%p516) target = $region100
        $region99: #{tpu_custom_call.1} parent=67 // pred_region
          %519 = dma.done [#allocation15], 1024
        $region100: #{tpu_custom_call.1} parent=67 // pred_fallthru
          _
        %s520 = sand.u32 %s43, 1
        %s521 = scalar_lea.sflag [#allocation3], %s520
        %s522 = sand.u32 %s43, 1
        %s523 = smul.addr %s522, 128
        %s524 = scalar_lea.vmem [#allocation2], %s523
        %p525 = pneg %p56
        %p526 = pneg %p53
        %s527 = sand.u32 %s35, 1
        %s528 = scalar_lea.sflag [#allocation6], %s527
        %s529 = sand.u32 %s69, 1
        %s530 = smul.addr %s529, 128
        %s531 = scalar_lea.vmem [#allocation5], %s530
        %p532 = pneg %p82
        %p533 = pneg %p79
        %p534 = pneg %p103
        %p535 = pneg %p100
        %p536 = pneg %p124
        %p537 = pneg %p121
        %p538 = pneg %p145
        %p539 = pneg %p142
        %p540 = pneg %p166
        %p541 = pneg %p163
        %p542 = pneg %p187
        %p543 = pneg %p184
        %p544 = pneg %p208
        %p545 = pneg %p205
        %p546 = pneg %p229
        %p547 = pneg %p226
        %p548 = pneg %p250
        %p549 = pneg %p247
        %p550 = pneg %p271
        %p551 = pneg %p268
        %p552 = pneg %p292
        %p553 = pneg %p289
        %p554 = pneg %p318
        %p555 = pneg %p315
        %s556 = sand.u32 %s305, 1
        %s557 = scalar_lea.sflag [#allocation4], %s556
        %s558 = sand.u32 %s305, 1
        %s559 = smul.addr %s558, 256
        %s560 = scalar_lea.vmem [#allocation16], %s559
        %s561 = smul.u32 2, %s35
        %s562 = smul.u32 2, %s35
        %s563 = smul.u32 2, %s35
        %v565 = vld [vmem:[%s482] sm:$0xf]
        %v566 = vld [vmem:[%s482 + $0x4] sm:$0xf]
        %v567 = vld [vmem:[%s482 + $0x8] sm:$0xf]
        %v568 = vld [vmem:[%s482 + $0xc] sm:$0xf]
        %v569 = vld [vmem:[%s482 + $0x10] sm:$0xf]
        %v570 = vld [vmem:[%s482 + $0x14] sm:$0xf]
        %v571 = vld [vmem:[%s482 + $0x18] sm:$0xf]
        %v572 = vld [vmem:[%s482 + $0x1c] sm:$0xf]
        %v573 = vld [vmem:[%s482 + $0x20] sm:$0xf]
        %v574 = vld [vmem:[%s482 + $0x24] sm:$0xf]
        %v575 = vld [vmem:[%s482 + $0x28] sm:$0xf]
        %v576 = vld [vmem:[%s482 + $0x2c] sm:$0xf]
        %v577 = vld [vmem:[%s482 + $0x30] sm:$0xf]
        %v578 = vld [vmem:[%s482 + $0x34] sm:$0xf]
        %v579 = vld [vmem:[%s482 + $0x38] sm:$0xf]
        %v580 = vld [vmem:[%s482 + $0x3c] sm:$0xf]
        %v581 = vld [vmem:[%s482 + $0x40] sm:$0xf]
        %v582 = vld [vmem:[%s482 + $0x44] sm:$0xf]
        %v583 = vld [vmem:[%s482 + $0x48] sm:$0xf]
        %v584 = vld [vmem:[%s482 + $0x4c] sm:$0xf]
        %v585 = vld [vmem:[%s482 + $0x50] sm:$0xf]
        %v586 = vld [vmem:[%s482 + $0x54] sm:$0xf]
        %v587 = vld [vmem:[%s482 + $0x58] sm:$0xf]
        %v588 = vld [vmem:[%s482 + $0x5c] sm:$0xf]
        %v589 = vld [vmem:[%s482 + $0x60] sm:$0xf]
        %v590 = vld [vmem:[%s482 + $0x64] sm:$0xf]
        %v591 = vld [vmem:[%s482 + $0x68] sm:$0xf]
        %v592 = vld [vmem:[%s482 + $0x6c] sm:$0xf]
        %v593 = vld [vmem:[%s482 + $0x70] sm:$0xf]
        %v594 = vld [vmem:[%s482 + $0x74] sm:$0xf]
        %v595 = vld [vmem:[%s482 + $0x78] sm:$0xf]
        %v596 = vld [vmem:[%s482 + $0x7c] sm:$0xf]
        %v597 = vld [vmem:[%s491] sm:$0xf]
        %v598 = vld [vmem:[%s491 + $0x4] sm:$0xf]
        %v599 = vld [vmem:[%s491 + $0x8] sm:$0xf]
        %v600 = vld [vmem:[%s491 + $0xc] sm:$0xf]
        %v601 = vld [vmem:[%s491 + $0x10] sm:$0xf]
        %v602 = vld [vmem:[%s491 + $0x14] sm:$0xf]
        %v603 = vld [vmem:[%s491 + $0x18] sm:$0xf]
        %v604 = vld [vmem:[%s491 + $0x1c] sm:$0xf]
        %v605 = vld [vmem:[%s491 + $0x20] sm:$0xf]
        %v606 = vld [vmem:[%s491 + $0x24] sm:$0xf]
        %v607 = vld [vmem:[%s491 + $0x28] sm:$0xf]
        %v608 = vld [vmem:[%s491 + $0x2c] sm:$0xf]
        %v609 = vld [vmem:[%s491 + $0x30] sm:$0xf]
        %v610 = vld [vmem:[%s491 + $0x34] sm:$0xf]
        %v611 = vld [vmem:[%s491 + $0x38] sm:$0xf]
        %v612 = vld [vmem:[%s491 + $0x3c] sm:$0xf]
        %v613 = vld [vmem:[%s491 + $0x40] sm:$0xf]
        %v614 = vld [vmem:[%s491 + $0x44] sm:$0xf]
        %v615 = vld [vmem:[%s491 + $0x48] sm:$0xf]
        %v616 = vld [vmem:[%s491 + $0x4c] sm:$0xf]
        %v617 = vld [vmem:[%s491 + $0x50] sm:$0xf]
        %v618 = vld [vmem:[%s491 + $0x54] sm:$0xf]
        %v619 = vld [vmem:[%s491 + $0x58] sm:$0xf]
        %v620 = vld [vmem:[%s491 + $0x5c] sm:$0xf]
        %v621 = vld [vmem:[%s491 + $0x60] sm:$0xf]
        %v622 = vld [vmem:[%s491 + $0x64] sm:$0xf]
        %v623 = vld [vmem:[%s491 + $0x68] sm:$0xf]
        %v624 = vld [vmem:[%s491 + $0x6c] sm:$0xf]
        %v625 = vld [vmem:[%s491 + $0x70] sm:$0xf]
        %v626 = vld [vmem:[%s491 + $0x74] sm:$0xf]
        %v627 = vld [vmem:[%s491 + $0x78] sm:$0xf]
        %v628 = vld [vmem:[%s491 + $0x7c] sm:$0xf]
        %v629 = vunpack.c.l.bf16 %v565
        %v630 = vunpack.c.l.bf16 %v566
        %v631 = vunpack.c.l.bf16 %v567
        %v632 = vunpack.c.l.bf16 %v568
        %v633 = vunpack.c.l.bf16 %v569
        %v634 = vunpack.c.l.bf16 %v570
        %v635 = vunpack.c.l.bf16 %v571
        %v636 = vunpack.c.l.bf16 %v572
        %v637 = vunpack.c.l.bf16 %v573
        %v638 = vunpack.c.l.bf16 %v574
        %v639 = vunpack.c.l.bf16 %v575
        %v640 = vunpack.c.l.bf16 %v576
        %v641 = vunpack.c.l.bf16 %v577
        %v642 = vunpack.c.l.bf16 %v578
        %v643 = vunpack.c.l.bf16 %v579
        %v644 = vunpack.c.l.bf16 %v580
        %v645 = vunpack.c.l.bf16 %v581
        %v646 = vunpack.c.l.bf16 %v582
        %v647 = vunpack.c.l.bf16 %v583
        %v648 = vunpack.c.l.bf16 %v584
        %v649 = vunpack.c.l.bf16 %v585
        %v650 = vunpack.c.l.bf16 %v586
        %v651 = vunpack.c.l.bf16 %v587
        %v652 = vunpack.c.l.bf16 %v588
        %v653 = vunpack.c.l.bf16 %v589
        %v654 = vunpack.c.l.bf16 %v590
        %v655 = vunpack.c.l.bf16 %v591
        %v656 = vunpack.c.l.bf16 %v592
        %v657 = vunpack.c.l.bf16 %v593
        %v658 = vunpack.c.l.bf16 %v594
        %v659 = vunpack.c.l.bf16 %v595
        %v660 = vunpack.c.l.bf16 %v596
        %661 = vadd.xlane.f32.xlu0 %v629
        %v662 = vpop.xlane.xlu0 %661
        %663 = vadd.xlane.f32.xlu0 %v630
        %v664 = vpop.xlane.xlu0 %663
        %665 = vadd.xlane.f32.xlu0 %v631
        %v666 = vpop.xlane.xlu0 %665
        %667 = vadd.xlane.f32.xlu0 %v632
        %v668 = vpop.xlane.xlu0 %667
        %669 = vadd.xlane.f32.xlu0 %v633
        %v670 = vpop.xlane.xlu0 %669
        %671 = vadd.xlane.f32.xlu0 %v634
        %v672 = vpop.xlane.xlu0 %671
        %673 = vadd.xlane.f32.xlu0 %v635
        %v674 = vpop.xlane.xlu0 %673
        %675 = vadd.xlane.f32.xlu0 %v636
        %v676 = vpop.xlane.xlu0 %675
        %677 = vadd.xlane.f32.xlu0 %v637
        %v678 = vpop.xlane.xlu0 %677
        %679 = vadd.xlane.f32.xlu0 %v638
        %v680 = vpop.xlane.xlu0 %679
        %681 = vadd.xlane.f32.xlu0 %v639
        %v682 = vpop.xlane.xlu0 %681
        %683 = vadd.xlane.f32.xlu0 %v640
        %v684 = vpop.xlane.xlu0 %683
        %685 = vadd.xlane.f32.xlu0 %v641
        %v686 = vpop.xlane.xlu0 %685
        %687 = vadd.xlane.f32.xlu0 %v642
        %v688 = vpop.xlane.xlu0 %687
        %689 = vadd.xlane.f32.xlu0 %v643
        %v690 = vpop.xlane.xlu0 %689
        %691 = vadd.xlane.f32.xlu0 %v644
        %v692 = vpop.xlane.xlu0 %691
        %693 = vadd.xlane.f32.xlu0 %v645
        %v694 = vpop.xlane.xlu0 %693
        %695 = vadd.xlane.f32.xlu0 %v646
        %v696 = vpop.xlane.xlu0 %695
        %697 = vadd.xlane.f32.xlu0 %v647
        %v698 = vpop.xlane.xlu0 %697
        %699 = vadd.xlane.f32.xlu0 %v648
        %v700 = vpop.xlane.xlu0 %699
        %701 = vadd.xlane.f32.xlu0 %v649
        %v702 = vpop.xlane.xlu0 %701
        %703 = vadd.xlane.f32.xlu0 %v650
        %v704 = vpop.xlane.xlu0 %703
        %705 = vadd.xlane.f32.xlu0 %v651
        %v706 = vpop.xlane.xlu0 %705
        %707 = vadd.xlane.f32.xlu0 %v652
        %v708 = vpop.xlane.xlu0 %707
        %709 = vadd.xlane.f32.xlu0 %v653
        %v710 = vpop.xlane.xlu0 %709
        %711 = vadd.xlane.f32.xlu0 %v654
        %v712 = vpop.xlane.xlu0 %711
        %713 = vadd.xlane.f32.xlu0 %v655
        %v714 = vpop.xlane.xlu0 %713
        %715 = vadd.xlane.f32.xlu0 %v656
        %v716 = vpop.xlane.xlu0 %715
        %717 = vadd.xlane.f32.xlu0 %v657
        %v718 = vpop.xlane.xlu0 %717
        %719 = vadd.xlane.f32.xlu0 %v658
        %v720 = vpop.xlane.xlu0 %719
        %721 = vadd.xlane.f32.xlu0 %v659
        %v722 = vpop.xlane.xlu0 %721
        %723 = vadd.xlane.f32.xlu0 %v660
        %v724 = vpop.xlane.xlu0 %723
        %v725 = vmax.f32 %v662, 1.0
        %v726 = vmax.f32 %v664, 1.0
        %v727 = vmax.f32 %v666, 1.0
        %v728 = vmax.f32 %v668, 1.0
        %v729 = vmax.f32 %v670, 1.0
        %v730 = vmax.f32 %v672, 1.0
        %v731 = vmax.f32 %v674, 1.0
        %v732 = vmax.f32 %v676, 1.0
        %v733 = vmax.f32 %v678, 1.0
        %v734 = vmax.f32 %v680, 1.0
        %v735 = vmax.f32 %v682, 1.0
        %v736 = vmax.f32 %v684, 1.0
        %v737 = vmax.f32 %v686, 1.0
        %v738 = vmax.f32 %v688, 1.0
        %v739 = vmax.f32 %v690, 1.0
        %v740 = vmax.f32 %v692, 1.0
        %v741 = vmax.f32 %v694, 1.0
        %v742 = vmax.f32 %v696, 1.0
        %v743 = vmax.f32 %v698, 1.0
        %v744 = vmax.f32 %v700, 1.0
        %v745 = vmax.f32 %v702, 1.0
        %v746 = vmax.f32 %v704, 1.0
        %v747 = vmax.f32 %v706, 1.0
        %v748 = vmax.f32 %v708, 1.0
        %v749 = vmax.f32 %v710, 1.0
        %v750 = vmax.f32 %v712, 1.0
        %v751 = vmax.f32 %v714, 1.0
        %v752 = vmax.f32 %v716, 1.0
        %v753 = vmax.f32 %v718, 1.0
        %v754 = vmax.f32 %v720, 1.0
        %v755 = vmax.f32 %v722, 1.0
        %v756 = vmax.f32 %v724, 1.0
        %v757 = vrcp.pop %v725
        %v758 = vrcp.pop %v726
        %v759 = vrcp.pop %v727
        %v760 = vrcp.pop %v728
        %v761 = vrcp.pop %v729
        %v762 = vrcp.pop %v730
        %v763 = vrcp.pop %v731
        %v764 = vrcp.pop %v732
        %v765 = vrcp.pop %v733
        %v766 = vrcp.pop %v734
        %v767 = vrcp.pop %v735
        %v768 = vrcp.pop %v736
        %v769 = vrcp.pop %v737
        %v770 = vrcp.pop %v738
        %v771 = vrcp.pop %v739
        %v772 = vrcp.pop %v740
        %v773 = vrcp.pop %v741
        %v774 = vrcp.pop %v742
        %v775 = vrcp.pop %v743
        %v776 = vrcp.pop %v744
        %v777 = vrcp.pop %v745
        %v778 = vrcp.pop %v746
        %v779 = vrcp.pop %v747
        %v780 = vrcp.pop %v748
        %v781 = vrcp.pop %v749
        %v782 = vrcp.pop %v750
        %v783 = vrcp.pop %v751
        %v784 = vrcp.pop %v752
        %v785 = vrcp.pop %v753
        %v786 = vrcp.pop %v754
        %v787 = vrcp.pop %v755
        %v788 = vrcp.pop %v756
        %v789 = vld [vmem:[%s3] sm:$0x1]
        %v806 = vunpack.c.l.b16 %v565
        %v807 = vunpack.c.l.b16 %v566
        %v808 = vunpack.c.l.b16 %v567
        %v809 = vunpack.c.l.b16 %v568
        %v810 = vunpack.c.l.b16 %v569
        %v811 = vunpack.c.l.b16 %v570
        %v812 = vunpack.c.l.b16 %v571
        %v813 = vunpack.c.l.b16 %v572
        %v814 = vunpack.c.l.b16 %v573
        %v815 = vunpack.c.l.b16 %v574
        %v816 = vunpack.c.l.b16 %v575
        %v817 = vunpack.c.l.b16 %v576
        %v818 = vunpack.c.l.b16 %v577
        %v819 = vunpack.c.l.b16 %v578
        %v820 = vunpack.c.l.b16 %v579
        %v821 = vunpack.c.l.b16 %v580
        %v822 = vpack.c.b16 %v807, %v806
        %v823 = vpack.c.b16 %v809, %v808
        %v824 = vpack.c.b16 %v811, %v810
        %v825 = vpack.c.b16 %v813, %v812
        %v826 = vpack.c.b16 %v815, %v814
        %v827 = vpack.c.b16 %v817, %v816
        %v828 = vpack.c.b16 %v819, %v818
        %v829 = vpack.c.b16 %v821, %v820
        %v854 = vunpack.c.l.b16 %v597
        %v855 = vunpack.c.l.b16 %v598
        %v856 = vunpack.c.l.b16 %v599
        %v857 = vunpack.c.l.b16 %v600
        %v858 = vunpack.c.l.b16 %v601
        %v859 = vunpack.c.l.b16 %v602
        %v860 = vunpack.c.l.b16 %v603
        %v861 = vunpack.c.l.b16 %v604
        %v862 = vunpack.c.l.b16 %v605
        %v863 = vunpack.c.l.b16 %v606
        %v864 = vunpack.c.l.b16 %v607
        %v865 = vunpack.c.l.b16 %v608
        %v866 = vunpack.c.l.b16 %v609
        %v867 = vunpack.c.l.b16 %v610
        %v868 = vunpack.c.l.b16 %v611
        %v869 = vunpack.c.l.b16 %v612
        %v870 = vpack.c.b16 %v855, %v854
        %v871 = vpack.c.b16 %v857, %v856
        %v872 = vpack.c.b16 %v859, %v858
        %v873 = vpack.c.b16 %v861, %v860
        %v874 = vpack.c.b16 %v863, %v862
        %v875 = vpack.c.b16 %v865, %v864
        %v876 = vpack.c.b16 %v867, %v866
        %v877 = vpack.c.b16 %v869, %v868
        %886 = vmatprep.subr.bf16.mxu0 0
        %887 = vmatpush1.bf16.msra.mxu0 %v877
        %888 = vmatprep.subr.bf16.mxu0 0
        %889 = vmatpush1.bf16.msra.mxu0 %v876
        %890 = vmatprep.subr.bf16.mxu0 0
        %891 = vmatpush1.bf16.msra.mxu0 %v875
        %892 = vmatprep.subr.bf16.mxu0 0
        %893 = vmatpush1.bf16.msra.mxu0 %v874
        %894 = vmatprep.subr.bf16.mxu0 0
        %895 = vmatpush1.bf16.msra.mxu0 %v873
        %896 = vmatprep.subr.bf16.mxu0 0
        %897 = vmatpush1.bf16.msra.mxu0 %v872
        %898 = vmatprep.subr.bf16.mxu0 0
        %899 = vmatpush1.bf16.msra.mxu0 %v871
        %900 = vmatprep.subr.bf16.mxu0 0
        %901 = vmatpush1.bf16.msra.mxu0 %v870
        %902 = vmatprep.subr.bf16.mxu0 0
        %903 = vmatpush2.bf16.msra.mxu0 0
        %904 = vmatprep.subr.bf16.mxu0 0
        %905 = vmatpush2.bf16.msra.mxu0 0
        %906 = vmatprep.subr.bf16.mxu0 0
        %907 = vmatpush2.bf16.msra.mxu0 0
        %908 = vmatprep.subr.bf16.mxu0 0
        %909 = vmatpush2.bf16.msra.mxu0 0
        %910 = vmatprep.subr.bf16.mxu0 0
        %911 = vmatpush2.bf16.msra.mxu0 0
        %912 = vmatprep.subr.bf16.mxu0 0
        %913 = vmatpush2.bf16.msra.mxu0 0
        %914 = vmatprep.subr.bf16.mxu0 0
        %915 = vmatpush2.bf16.msra.mxu0 0
        %916 = vmatprep.subr.bf16.mxu0 0
        %917 = vmatpush2.bf16.msra.mxu0 0
        %918 = vmatprep.mubr.bf16.mxu0 0
        %919 = vmatmul.mubr.bf16.gmra.mxu0 %v822
        %v920 = vpop.f32.mrf.mxu0
        %v921 = vadd.f32 0.0, %v920
        %v922 = vpop.f32.mrf.mxu0
        %v923 = vpop.f32.mrf.mxu0
        %v924 = vadd.f32 0.0, %v923
        %v925 = vpop.f32.mrf.mxu0
        %926 = vmatprep.mubr.bf16.mxu0 0
        %927 = vmatmul.mubr.bf16.gmra.mxu0 %v823
        %v928 = vpop.f32.mrf.mxu0
        %v929 = vadd.f32 0.0, %v928
        %v930 = vpop.f32.mrf.mxu0
        %v931 = vpop.f32.mrf.mxu0
        %v932 = vadd.f32 0.0, %v931
        %v933 = vpop.f32.mrf.mxu0
        %934 = vmatprep.mubr.bf16.mxu0 0
        %935 = vmatmul.mubr.bf16.gmra.mxu0 %v824
        %v936 = vpop.f32.mrf.mxu0
        %v937 = vadd.f32 0.0, %v936
        %v938 = vpop.f32.mrf.mxu0
        %v939 = vpop.f32.mrf.mxu0
        %v940 = vadd.f32 0.0, %v939
        %v941 = vpop.f32.mrf.mxu0
        %942 = vmatprep.mubr.bf16.mxu0 0
        %943 = vmatmul.mubr.bf16.gmra.mxu0 %v825
        %v944 = vpop.f32.mrf.mxu0
        %v945 = vadd.f32 0.0, %v944
        %v946 = vpop.f32.mrf.mxu0
        %v947 = vpop.f32.mrf.mxu0
        %v948 = vadd.f32 0.0, %v947
        %v949 = vpop.f32.mrf.mxu0
        %950 = vmatprep.mubr.bf16.mxu0 0
        %951 = vmatmul.mubr.bf16.gmra.mxu0 %v826
        %v952 = vpop.f32.mrf.mxu0
        %v953 = vadd.f32 0.0, %v952
        %v954 = vpop.f32.mrf.mxu0
        %v955 = vpop.f32.mrf.mxu0
        %v956 = vadd.f32 0.0, %v955
        %v957 = vpop.f32.mrf.mxu0
        %958 = vmatprep.mubr.bf16.mxu0 0
        %959 = vmatmul.mubr.bf16.gmra.mxu0 %v827
        %v960 = vpop.f32.mrf.mxu0
        %v961 = vadd.f32 0.0, %v960
        %v962 = vpop.f32.mrf.mxu0
        %v963 = vpop.f32.mrf.mxu0
        %v964 = vadd.f32 0.0, %v963
        %v965 = vpop.f32.mrf.mxu0
        %966 = vmatprep.mubr.bf16.mxu0 0
        %967 = vmatmul.mubr.bf16.gmra.mxu0 %v828
        %v968 = vpop.f32.mrf.mxu0
        %v969 = vadd.f32 0.0, %v968
        %v970 = vpop.f32.mrf.mxu0
        %v971 = vpop.f32.mrf.mxu0
        %v972 = vadd.f32 0.0, %v971
        %v973 = vpop.f32.mrf.mxu0
        %974 = vmatprep.mubr.bf16.mxu0 0
        %975 = vmatmul.mubr.bf16.gmra.mxu0 %v829
        %v976 = vpop.f32.mrf.mxu0
        %v977 = vadd.f32 0.0, %v976
        %v978 = vpop.f32.mrf.mxu0
        %v979 = vpop.f32.mrf.mxu0
        %v980 = vadd.f32 0.0, %v979
        %v981 = vpop.f32.mrf.mxu0
        %982 = vdwg.mxu0
        %v999 = vunpack.c.l.b16 %v581
        %v1000 = vunpack.c.l.b16 %v582
        %v1001 = vunpack.c.l.b16 %v583
        %v1002 = vunpack.c.l.b16 %v584
        %v1003 = vunpack.c.l.b16 %v585
        %v1004 = vunpack.c.l.b16 %v586
        %v1005 = vunpack.c.l.b16 %v587
        %v1006 = vunpack.c.l.b16 %v588
        %v1007 = vunpack.c.l.b16 %v589
        %v1008 = vunpack.c.l.b16 %v590
        %v1009 = vunpack.c.l.b16 %v591
        %v1010 = vunpack.c.l.b16 %v592
        %v1011 = vunpack.c.l.b16 %v593
        %v1012 = vunpack.c.l.b16 %v594
        %v1013 = vunpack.c.l.b16 %v595
        %v1014 = vunpack.c.l.b16 %v596
        %v1015 = vpack.c.b16 %v1000, %v999
        %v1016 = vpack.c.b16 %v1002, %v1001
        %v1017 = vpack.c.b16 %v1004, %v1003
        %v1018 = vpack.c.b16 %v1006, %v1005
        %v1019 = vpack.c.b16 %v1008, %v1007
        %v1020 = vpack.c.b16 %v1010, %v1009
        %v1021 = vpack.c.b16 %v1012, %v1011
        %v1022 = vpack.c.b16 %v1014, %v1013
        %v1047 = vunpack.c.l.b16 %v613
        %v1048 = vunpack.c.l.b16 %v614
        %v1049 = vunpack.c.l.b16 %v615
        %v1050 = vunpack.c.l.b16 %v616
        %v1051 = vunpack.c.l.b16 %v617
        %v1052 = vunpack.c.l.b16 %v618
        %v1053 = vunpack.c.l.b16 %v619
        %v1054 = vunpack.c.l.b16 %v620
        %v1055 = vunpack.c.l.b16 %v621
        %v1056 = vunpack.c.l.b16 %v622
        %v1057 = vunpack.c.l.b16 %v623
        %v1058 = vunpack.c.l.b16 %v624
        %v1059 = vunpack.c.l.b16 %v625
        %v1060 = vunpack.c.l.b16 %v626
        %v1061 = vunpack.c.l.b16 %v627
        %v1062 = vunpack.c.l.b16 %v628
        %v1063 = vpack.c.b16 %v1048, %v1047
        %v1064 = vpack.c.b16 %v1050, %v1049
        %v1065 = vpack.c.b16 %v1052, %v1051
        %v1066 = vpack.c.b16 %v1054, %v1053
        %v1067 = vpack.c.b16 %v1056, %v1055
        %v1068 = vpack.c.b16 %v1058, %v1057
        %v1069 = vpack.c.b16 %v1060, %v1059
        %v1070 = vpack.c.b16 %v1062, %v1061
        %1079 = vmatprep.subr.bf16.mxu0 0
        %1080 = vmatpush1.bf16.msra.mxu0 %v1070
        %1081 = vmatprep.subr.bf16.mxu0 0
        %1082 = vmatpush1.bf16.msra.mxu0 %v1069
        %1083 = vmatprep.subr.bf16.mxu0 0
        %1084 = vmatpush1.bf16.msra.mxu0 %v1068
        %1085 = vmatprep.subr.bf16.mxu0 0
        %1086 = vmatpush1.bf16.msra.mxu0 %v1067
        %1087 = vmatprep.subr.bf16.mxu0 0
        %1088 = vmatpush1.bf16.msra.mxu0 %v1066
        %1089 = vmatprep.subr.bf16.mxu0 0
        %1090 = vmatpush1.bf16.msra.mxu0 %v1065
        %1091 = vmatprep.subr.bf16.mxu0 0
        %1092 = vmatpush1.bf16.msra.mxu0 %v1064
        %1093 = vmatprep.subr.bf16.mxu0 0
        %1094 = vmatpush1.bf16.msra.mxu0 %v1063
        %1095 = vmatprep.subr.bf16.mxu0 0
        %1096 = vmatpush2.bf16.msra.mxu0 0
        %1097 = vmatprep.subr.bf16.mxu0 0
        %1098 = vmatpush2.bf16.msra.mxu0 0
        %1099 = vmatprep.subr.bf16.mxu0 0
        %1100 = vmatpush2.bf16.msra.mxu0 0
        %1101 = vmatprep.subr.bf16.mxu0 0
        %1102 = vmatpush2.bf16.msra.mxu0 0
        %1103 = vmatprep.subr.bf16.mxu0 0
        %1104 = vmatpush2.bf16.msra.mxu0 0
        %1105 = vmatprep.subr.bf16.mxu0 0
        %1106 = vmatpush2.bf16.msra.mxu0 0
        %1107 = vmatprep.subr.bf16.mxu0 0
        %1108 = vmatpush2.bf16.msra.mxu0 0
        %1109 = vmatprep.subr.bf16.mxu0 0
        %1110 = vmatpush2.bf16.msra.mxu0 0
        %1111 = vmatprep.mubr.bf16.mxu0 0
        %1112 = vmatmul.mubr.bf16.gmra.mxu0 %v1015
        %v1113 = vpop.f32.mrf.mxu0
        %v1114 = vadd.f32 0.0, %v1113
        %v1115 = vpop.f32.mrf.mxu0
        %v1116 = vpop.f32.mrf.mxu0
        %v1117 = vadd.f32 0.0, %v1116
        %v1118 = vpop.f32.mrf.mxu0
        %1119 = vmatprep.mubr.bf16.mxu0 0
        %1120 = vmatmul.mubr.bf16.gmra.mxu0 %v1016
        %v1121 = vpop.f32.mrf.mxu0
        %v1122 = vadd.f32 0.0, %v1121
        %v1123 = vpop.f32.mrf.mxu0
        %v1124 = vpop.f32.mrf.mxu0
        %v1125 = vadd.f32 0.0, %v1124
        %v1126 = vpop.f32.mrf.mxu0
        %1127 = vmatprep.mubr.bf16.mxu0 0
        %1128 = vmatmul.mubr.bf16.gmra.mxu0 %v1017
        %v1129 = vpop.f32.mrf.mxu0
        %v1130 = vadd.f32 0.0, %v1129
        %v1131 = vpop.f32.mrf.mxu0
        %v1132 = vpop.f32.mrf.mxu0
        %v1133 = vadd.f32 0.0, %v1132
        %v1134 = vpop.f32.mrf.mxu0
        %1135 = vmatprep.mubr.bf16.mxu0 0
        %1136 = vmatmul.mubr.bf16.gmra.mxu0 %v1018
        %v1137 = vpop.f32.mrf.mxu0
        %v1138 = vadd.f32 0.0, %v1137
        %v1139 = vpop.f32.mrf.mxu0
        %v1140 = vpop.f32.mrf.mxu0
        %v1141 = vadd.f32 0.0, %v1140
        %v1142 = vpop.f32.mrf.mxu0
        %1143 = vmatprep.mubr.bf16.mxu0 0
        %1144 = vmatmul.mubr.bf16.gmra.mxu0 %v1019
        %v1145 = vpop.f32.mrf.mxu0
        %v1146 = vadd.f32 0.0, %v1145
        %v1147 = vpop.f32.mrf.mxu0
        %v1148 = vpop.f32.mrf.mxu0
        %v1149 = vadd.f32 0.0, %v1148
        %v1150 = vpop.f32.mrf.mxu0
        %1151 = vmatprep.mubr.bf16.mxu0 0
        %1152 = vmatmul.mubr.bf16.gmra.mxu0 %v1020
        %v1153 = vpop.f32.mrf.mxu0
        %v1154 = vadd.f32 0.0, %v1153
        %v1155 = vpop.f32.mrf.mxu0
        %v1156 = vpop.f32.mrf.mxu0
        %v1157 = vadd.f32 0.0, %v1156
        %v1158 = vpop.f32.mrf.mxu0
        %1159 = vmatprep.mubr.bf16.mxu0 0
        %1160 = vmatmul.mubr.bf16.gmra.mxu0 %v1021
        %v1161 = vpop.f32.mrf.mxu0
        %v1162 = vadd.f32 0.0, %v1161
        %v1163 = vpop.f32.mrf.mxu0
        %v1164 = vpop.f32.mrf.mxu0
        %v1165 = vadd.f32 0.0, %v1164
        %v1166 = vpop.f32.mrf.mxu0
        %1167 = vmatprep.mubr.bf16.mxu0 0
        %1168 = vmatmul.mubr.bf16.gmra.mxu0 %v1022
        %v1169 = vpop.f32.mrf.mxu0
        %v1170 = vadd.f32 0.0, %v1169
        %v1171 = vpop.f32.mrf.mxu0
        %v1172 = vpop.f32.mrf.mxu0
        %v1173 = vadd.f32 0.0, %v1172
        %v1174 = vpop.f32.mrf.mxu0
        %1175 = vdwg.mxu0
        %v1176 = vmul.f32 %v921, %v757
        %v1177 = vmul.f32 %v924, %v758
        %v1178 = vmul.f32 %v929, %v759
        %v1179 = vmul.f32 %v932, %v760
        %v1180 = vmul.f32 %v937, %v761
        %v1181 = vmul.f32 %v940, %v762
        %v1182 = vmul.f32 %v945, %v763
        %v1183 = vmul.f32 %v948, %v764
        %v1184 = vmul.f32 %v953, %v765
        %v1185 = vmul.f32 %v956, %v766
        %v1186 = vmul.f32 %v961, %v767
        %v1187 = vmul.f32 %v964, %v768
        %v1188 = vmul.f32 %v969, %v769
        %v1189 = vmul.f32 %v972, %v770
        %v1190 = vmul.f32 %v977, %v771
        %v1191 = vmul.f32 %v980, %v772
        %v1192 = vmul.f32 %v1114, %v773
        %v1193 = vmul.f32 %v1117, %v774
        %v1194 = vmul.f32 %v1122, %v775
        %v1195 = vmul.f32 %v1125, %v776
        %v1196 = vmul.f32 %v1130, %v777
        %v1197 = vmul.f32 %v1133, %v778
        %v1198 = vmul.f32 %v1138, %v779
        %v1199 = vmul.f32 %v1141, %v780
        %v1200 = vmul.f32 %v1146, %v781
        %v1201 = vmul.f32 %v1149, %v782
        %v1202 = vmul.f32 %v1154, %v783
        %v1203 = vmul.f32 %v1157, %v784
        %v1204 = vmul.f32 %v1162, %v785
        %v1205 = vmul.f32 %v1165, %v786
        %v1206 = vmul.f32 %v1170, %v787
        %v1207 = vmul.f32 %v1173, %v788
        %v1208 = vpack.c.bf16 %v1177, %v1176
        %v1209 = vpack.c.bf16 %v1179, %v1178
        %v1210 = vpack.c.bf16 %v1181, %v1180
        %v1211 = vpack.c.bf16 %v1183, %v1182
        %v1212 = vpack.c.bf16 %v1185, %v1184
        %v1213 = vpack.c.bf16 %v1187, %v1186
        %v1214 = vpack.c.bf16 %v1189, %v1188
        %v1215 = vpack.c.bf16 %v1191, %v1190
        %v1216 = vpack.c.bf16 %v1193, %v1192
        %v1217 = vpack.c.bf16 %v1195, %v1194
        %v1218 = vpack.c.bf16 %v1197, %v1196
        %v1219 = vpack.c.bf16 %v1199, %v1198
        %v1220 = vpack.c.bf16 %v1201, %v1200
        %v1221 = vpack.c.bf16 %v1203, %v1202
        %v1222 = vpack.c.bf16 %v1205, %v1204
        %v1223 = vpack.c.bf16 %v1207, %v1206
        %v1224 = vld [vmem:[#allocation7] sm:$0xf]
        %v1225 = vld [vmem:[#allocation7 + $0x4] sm:$0xf]
        %v1226 = vld [vmem:[#allocation7 + $0x8] sm:$0xf]
        %v1227 = vld [vmem:[#allocation7 + $0xc] sm:$0xf]
        %v1228 = vld [vmem:[#allocation7 + $0x10] sm:$0xf]
        %v1229 = vld [vmem:[#allocation7 + $0x14] sm:$0xf]
        %v1230 = vld [vmem:[#allocation7 + $0x18] sm:$0xf]
        %v1231 = vld [vmem:[#allocation7 + $0x1c] sm:$0xf]
        %v1232 = vld [vmem:[#allocation7 + $0x20] sm:$0xf]
        %v1233 = vld [vmem:[#allocation7 + $0x24] sm:$0xf]
        %v1234 = vld [vmem:[#allocation7 + $0x28] sm:$0xf]
        %v1235 = vld [vmem:[#allocation7 + $0x2c] sm:$0xf]
        %v1236 = vld [vmem:[#allocation7 + $0x30] sm:$0xf]
        %v1237 = vld [vmem:[#allocation7 + $0x34] sm:$0xf]
        %v1238 = vld [vmem:[#allocation7 + $0x38] sm:$0xf]
        %v1239 = vld [vmem:[#allocation7 + $0x3c] sm:$0xf]
        %v1256 = vunpack.c.l.b16 %v1224
        %v1257 = vunpack.c.l.b16 %v1225
        %v1258 = vunpack.c.l.b16 %v1226
        %v1259 = vunpack.c.l.b16 %v1227
        %v1260 = vunpack.c.l.b16 %v1228
        %v1261 = vunpack.c.l.b16 %v1229
        %v1262 = vunpack.c.l.b16 %v1230
        %v1263 = vunpack.c.l.b16 %v1231
        %v1264 = vunpack.c.l.b16 %v1232
        %v1265 = vunpack.c.l.b16 %v1233
        %v1266 = vunpack.c.l.b16 %v1234
        %v1267 = vunpack.c.l.b16 %v1235
        %v1268 = vunpack.c.l.b16 %v1236
        %v1269 = vunpack.c.l.b16 %v1237
        %v1270 = vunpack.c.l.b16 %v1238
        %v1271 = vunpack.c.l.b16 %v1239
        %v1272 = vpack.c.b16 %v1257, %v1256
        %v1273 = vpack.c.b16 %v1259, %v1258
        %v1274 = vpack.c.b16 %v1261, %v1260
        %v1275 = vpack.c.b16 %v1263, %v1262
        %v1276 = vpack.c.b16 %v1265, %v1264
        %v1277 = vpack.c.b16 %v1267, %v1266
        %v1278 = vpack.c.b16 %v1269, %v1268
        %v1279 = vpack.c.b16 %v1271, %v1270
        %1288 = vmatprep.subr.bf16.mxu0 0
        %1289 = vmatpush1.bf16.msra.mxu0 %v1279
        %1290 = vmatprep.subr.bf16.mxu0 0
        %1291 = vmatpush1.bf16.msra.mxu0 %v1278
        %1292 = vmatprep.subr.bf16.mxu0 0
        %1293 = vmatpush1.bf16.msra.mxu0 %v1277
        %1294 = vmatprep.subr.bf16.mxu0 0
        %1295 = vmatpush1.bf16.msra.mxu0 %v1276
        %1296 = vmatprep.subr.bf16.mxu0 0
        %1297 = vmatpush1.bf16.msra.mxu0 %v1275
        %1298 = vmatprep.subr.bf16.mxu0 0
        %1299 = vmatpush1.bf16.msra.mxu0 %v1274
        %1300 = vmatprep.subr.bf16.mxu0 0
        %1301 = vmatpush1.bf16.msra.mxu0 %v1273
        %1302 = vmatprep.subr.bf16.mxu0 0
        %1303 = vmatpush1.bf16.msra.mxu0 %v1272
        %1304 = vmatprep.subr.bf16.mxu0 0
        %1305 = vmatpush2.bf16.msra.mxu0 0
        %1306 = vmatprep.subr.bf16.mxu0 0
        %1307 = vmatpush2.bf16.msra.mxu0 0
        %1308 = vmatprep.subr.bf16.mxu0 0
        %1309 = vmatpush2.bf16.msra.mxu0 0
        %1310 = vmatprep.subr.bf16.mxu0 0
        %1311 = vmatpush2.bf16.msra.mxu0 0
        %1312 = vmatprep.subr.bf16.mxu0 0
        %1313 = vmatpush2.bf16.msra.mxu0 0
        %1314 = vmatprep.subr.bf16.mxu0 0
        %1315 = vmatpush2.bf16.msra.mxu0 0
        %1316 = vmatprep.subr.bf16.mxu0 0
        %1317 = vmatpush2.bf16.msra.mxu0 0
        %1318 = vmatprep.subr.bf16.mxu0 0
        %1319 = vmatpush2.bf16.msra.mxu0 0
        %1320 = vmatprep.mubr.bf16.mxu0 0
        %1321 = vmatmul.mubr.bf16.gmra.mxu0 %v1208
        %v1322 = vpop.f32.mrf.mxu0
        %v1323 = vadd.f32 0.0, %v1322
        %v1324 = vpop.f32.mrf.mxu0
        %v1325 = vpop.f32.mrf.mxu0
        %v1326 = vadd.f32 0.0, %v1325
        %v1327 = vpop.f32.mrf.mxu0
        %1328 = vmatprep.mubr.bf16.mxu0 0
        %1329 = vmatmul.mubr.bf16.gmra.mxu0 %v1209
        %v1330 = vpop.f32.mrf.mxu0
        %v1331 = vadd.f32 0.0, %v1330
        %v1332 = vpop.f32.mrf.mxu0
        %v1333 = vpop.f32.mrf.mxu0
        %v1334 = vadd.f32 0.0, %v1333
        %v1335 = vpop.f32.mrf.mxu0
        %1336 = vmatprep.mubr.bf16.mxu0 0
        %1337 = vmatmul.mubr.bf16.gmra.mxu0 %v1210
        %v1338 = vpop.f32.mrf.mxu0
        %v1339 = vadd.f32 0.0, %v1338
        %v1340 = vpop.f32.mrf.mxu0
        %v1341 = vpop.f32.mrf.mxu0
        %v1342 = vadd.f32 0.0, %v1341
        %v1343 = vpop.f32.mrf.mxu0
        %1344 = vmatprep.mubr.bf16.mxu0 0
        %1345 = vmatmul.mubr.bf16.gmra.mxu0 %v1211
        %v1346 = vpop.f32.mrf.mxu0
        %v1347 = vadd.f32 0.0, %v1346
        %v1348 = vpop.f32.mrf.mxu0
        %v1349 = vpop.f32.mrf.mxu0
        %v1350 = vadd.f32 0.0, %v1349
        %v1351 = vpop.f32.mrf.mxu0
        %1352 = vmatprep.mubr.bf16.mxu0 0
        %1353 = vmatmul.mubr.bf16.gmra.mxu0 %v1212
        %v1354 = vpop.f32.mrf.mxu0
        %v1355 = vadd.f32 0.0, %v1354
        %v1356 = vpop.f32.mrf.mxu0
        %v1357 = vpop.f32.mrf.mxu0
        %v1358 = vadd.f32 0.0, %v1357
        %v1359 = vpop.f32.mrf.mxu0
        %1360 = vmatprep.mubr.bf16.mxu0 0
        %1361 = vmatmul.mubr.bf16.gmra.mxu0 %v1213
        %v1362 = vpop.f32.mrf.mxu0
        %v1363 = vadd.f32 0.0, %v1362
        %v1364 = vpop.f32.mrf.mxu0
        %v1365 = vpop.f32.mrf.mxu0
        %v1366 = vadd.f32 0.0, %v1365
        %v1367 = vpop.f32.mrf.mxu0
        %1368 = vmatprep.mubr.bf16.mxu0 0
        %1369 = vmatmul.mubr.bf16.gmra.mxu0 %v1214
        %v1370 = vpop.f32.mrf.mxu0
        %v1371 = vadd.f32 0.0, %v1370
        %v1372 = vpop.f32.mrf.mxu0
        %v1373 = vpop.f32.mrf.mxu0
        %v1374 = vadd.f32 0.0, %v1373
        %v1375 = vpop.f32.mrf.mxu0
        %1376 = vmatprep.mubr.bf16.mxu0 0
        %1377 = vmatmul.mubr.bf16.gmra.mxu0 %v1215
        %v1378 = vpop.f32.mrf.mxu0
        %v1379 = vadd.f32 0.0, %v1378
        %v1380 = vpop.f32.mrf.mxu0
        %v1381 = vpop.f32.mrf.mxu0
        %v1382 = vadd.f32 0.0, %v1381
        %v1383 = vpop.f32.mrf.mxu0
        %1384 = vmatprep.mubr.bf16.mxu0 0
        %1385 = vmatmul.mubr.bf16.gmra.mxu0 %v1216
        %v1386 = vpop.f32.mrf.mxu0
        %v1387 = vadd.f32 0.0, %v1386
        %v1388 = vpop.f32.mrf.mxu0
        %v1389 = vpop.f32.mrf.mxu0
        %v1390 = vadd.f32 0.0, %v1389
        %v1391 = vpop.f32.mrf.mxu0
        %1392 = vmatprep.mubr.bf16.mxu0 0
        %1393 = vmatmul.mubr.bf16.gmra.mxu0 %v1217
        %v1394 = vpop.f32.mrf.mxu0
        %v1395 = vadd.f32 0.0, %v1394
        %v1396 = vpop.f32.mrf.mxu0
        %v1397 = vpop.f32.mrf.mxu0
        %v1398 = vadd.f32 0.0, %v1397
        %v1399 = vpop.f32.mrf.mxu0
        %1400 = vmatprep.mubr.bf16.mxu0 0
        %1401 = vmatmul.mubr.bf16.gmra.mxu0 %v1218
        %v1402 = vpop.f32.mrf.mxu0
        %v1403 = vadd.f32 0.0, %v1402
        %v1404 = vpop.f32.mrf.mxu0
        %v1405 = vpop.f32.mrf.mxu0
        %v1406 = vadd.f32 0.0, %v1405
        %v1407 = vpop.f32.mrf.mxu0
        %1408 = vmatprep.mubr.bf16.mxu0 0
        %1409 = vmatmul.mubr.bf16.gmra.mxu0 %v1219
        %v1410 = vpop.f32.mrf.mxu0
        %v1411 = vadd.f32 0.0, %v1410
        %v1412 = vpop.f32.mrf.mxu0
        %v1413 = vpop.f32.mrf.mxu0
        %v1414 = vadd.f32 0.0, %v1413
        %v1415 = vpop.f32.mrf.mxu0
        %1416 = vmatprep.mubr.bf16.mxu0 0
        %1417 = vmatmul.mubr.bf16.gmra.mxu0 %v1220
        %v1418 = vpop.f32.mrf.mxu0
        %v1419 = vadd.f32 0.0, %v1418
        %v1420 = vpop.f32.mrf.mxu0
        %v1421 = vpop.f32.mrf.mxu0
        %v1422 = vadd.f32 0.0, %v1421
        %v1423 = vpop.f32.mrf.mxu0
        %1424 = vmatprep.mubr.bf16.mxu0 0
        %1425 = vmatmul.mubr.bf16.gmra.mxu0 %v1221
        %v1426 = vpop.f32.mrf.mxu0
        %v1427 = vadd.f32 0.0, %v1426
        %v1428 = vpop.f32.mrf.mxu0
        %v1429 = vpop.f32.mrf.mxu0
        %v1430 = vadd.f32 0.0, %v1429
        %v1431 = vpop.f32.mrf.mxu0
        %1432 = vmatprep.mubr.bf16.mxu0 0
        %1433 = vmatmul.mubr.bf16.gmra.mxu0 %v1222
        %v1434 = vpop.f32.mrf.mxu0
        %v1435 = vadd.f32 0.0, %v1434
        %v1436 = vpop.f32.mrf.mxu0
        %v1437 = vpop.f32.mrf.mxu0
        %v1438 = vadd.f32 0.0, %v1437
        %v1439 = vpop.f32.mrf.mxu0
        %1440 = vmatprep.mubr.bf16.mxu0 0
        %1441 = vmatmul.mubr.bf16.gmra.mxu0 %v1223
        %v1442 = vpop.f32.mrf.mxu0
        %v1443 = vadd.f32 0.0, %v1442
        %v1444 = vpop.f32.mrf.mxu0
        %v1445 = vpop.f32.mrf.mxu0
        %v1446 = vadd.f32 0.0, %v1445
        %v1447 = vpop.f32.mrf.mxu0
        %1448 = vdwg.mxu0
        %v1450 = vlaneseq
        %v1451 = vshrl.u32 %v1450, 7
        %v1452 = vsub.s32 0, %v1451
        %v1453 = vrot.slane %v789, %v1452
        %v1455 = vadd.f32 %v1323, %v1453
        %v1456 = vadd.f32 %v1326, %v1453
        %v1457 = vadd.f32 %v1331, %v1453
        %v1458 = vadd.f32 %v1334, %v1453
        %v1459 = vadd.f32 %v1339, %v1453
        %v1460 = vadd.f32 %v1342, %v1453
        %v1461 = vadd.f32 %v1347, %v1453
        %v1462 = vadd.f32 %v1350, %v1453
        %v1463 = vadd.f32 %v1355, %v1453
        %v1464 = vadd.f32 %v1358, %v1453
        %v1465 = vadd.f32 %v1363, %v1453
        %v1466 = vadd.f32 %v1366, %v1453
        %v1467 = vadd.f32 %v1371, %v1453
        %v1468 = vadd.f32 %v1374, %v1453
        %v1469 = vadd.f32 %v1379, %v1453
        %v1470 = vadd.f32 %v1382, %v1453
        %v1471 = vadd.f32 %v1387, %v1453
        %v1472 = vadd.f32 %v1390, %v1453
        %v1473 = vadd.f32 %v1395, %v1453
        %v1474 = vadd.f32 %v1398, %v1453
        %v1475 = vadd.f32 %v1403, %v1453
        %v1476 = vadd.f32 %v1406, %v1453
        %v1477 = vadd.f32 %v1411, %v1453
        %v1478 = vadd.f32 %v1414, %v1453
        %v1479 = vadd.f32 %v1419, %v1453
        %v1480 = vadd.f32 %v1422, %v1453
        %v1481 = vadd.f32 %v1427, %v1453
        %v1482 = vadd.f32 %v1430, %v1453
        %v1483 = vadd.f32 %v1435, %v1453
        %v1484 = vadd.f32 %v1438, %v1453
        %v1485 = vadd.f32 %v1443, %v1453
        %v1486 = vadd.f32 %v1446, %v1453
        %v1487 = vmax.f32 %v1455, 0.0
        %v1488 = vmax.f32 %v1456, 0.0
        %v1489 = vmax.f32 %v1457, 0.0
        %v1490 = vmax.f32 %v1458, 0.0
        %v1491 = vmax.f32 %v1459, 0.0
        %v1492 = vmax.f32 %v1460, 0.0
        %v1493 = vmax.f32 %v1461, 0.0
        %v1494 = vmax.f32 %v1462, 0.0
        %v1495 = vmax.f32 %v1463, 0.0
        %v1496 = vmax.f32 %v1464, 0.0
        %v1497 = vmax.f32 %v1465, 0.0
        %v1498 = vmax.f32 %v1466, 0.0
        %v1499 = vmax.f32 %v1467, 0.0
        %v1500 = vmax.f32 %v1468, 0.0
        %v1501 = vmax.f32 %v1469, 0.0
        %v1502 = vmax.f32 %v1470, 0.0
        %v1503 = vmax.f32 %v1471, 0.0
        %v1504 = vmax.f32 %v1472, 0.0
        %v1505 = vmax.f32 %v1473, 0.0
        %v1506 = vmax.f32 %v1474, 0.0
        %v1507 = vmax.f32 %v1475, 0.0
        %v1508 = vmax.f32 %v1476, 0.0
        %v1509 = vmax.f32 %v1477, 0.0
        %v1510 = vmax.f32 %v1478, 0.0
        %v1511 = vmax.f32 %v1479, 0.0
        %v1512 = vmax.f32 %v1480, 0.0
        %v1513 = vmax.f32 %v1481, 0.0
        %v1514 = vmax.f32 %v1482, 0.0
        %v1515 = vmax.f32 %v1483, 0.0
        %v1516 = vmax.f32 %v1484, 0.0
        %v1517 = vmax.f32 %v1485, 0.0
        %v1518 = vmax.f32 %v1486, 0.0
        %v1519 = vpack.c.bf16 %v1488, %v1487
        %v1520 = vpack.c.bf16 %v1490, %v1489
        %v1521 = vpack.c.bf16 %v1492, %v1491
        %v1522 = vpack.c.bf16 %v1494, %v1493
        %v1523 = vpack.c.bf16 %v1496, %v1495
        %v1524 = vpack.c.bf16 %v1498, %v1497
        %v1525 = vpack.c.bf16 %v1500, %v1499
        %v1526 = vpack.c.bf16 %v1502, %v1501
        %v1527 = vpack.c.bf16 %v1504, %v1503
        %v1528 = vpack.c.bf16 %v1506, %v1505
        %v1529 = vpack.c.bf16 %v1508, %v1507
        %v1530 = vpack.c.bf16 %v1510, %v1509
        %v1531 = vpack.c.bf16 %v1512, %v1511
        %v1532 = vpack.c.bf16 %v1514, %v1513
        %v1533 = vpack.c.bf16 %v1516, %v1515
        %v1534 = vpack.c.bf16 %v1518, %v1517
        %v1535 = vld [vmem:[%s5] sm:$0x1]
        %1536 = vmatprep.subr.bf16.mxu0 0
        %1537 = vmatpush1.bf16.msra.mxu0 %v1526
        %1538 = vmatprep.subr.bf16.mxu0 0
        %1539 = vmatpush1.bf16.msra.mxu0 %v1525
        %1540 = vmatprep.subr.bf16.mxu0 0
        %1541 = vmatpush1.bf16.msra.mxu0 %v1524
        %1542 = vmatprep.subr.bf16.mxu0 0
        %1543 = vmatpush1.bf16.msra.mxu0 %v1523
        %1544 = vmatprep.subr.bf16.mxu0 0
        %1545 = vmatpush1.bf16.msra.mxu0 %v1522
        %1546 = vmatprep.subr.bf16.mxu0 0
        %1547 = vmatpush1.bf16.msra.mxu0 %v1521
        %1548 = vmatprep.subr.bf16.mxu0 0
        %1549 = vmatpush1.bf16.msra.mxu0 %v1520
        %1550 = vmatprep.subr.bf16.mxu0 0
        %1551 = vmatpush1.bf16.msra.mxu0 %v1519
        %1552 = vmatprep.subr.bf16.mxu0 0
        %1553 = vmatpush2.bf16.msra.mxu0 0
        %1554 = vmatprep.subr.bf16.mxu0 0
        %1555 = vmatpush2.bf16.msra.mxu0 0
        %1556 = vmatprep.subr.bf16.mxu0 0
        %1557 = vmatpush2.bf16.msra.mxu0 0
        %1558 = vmatprep.subr.bf16.mxu0 0
        %1559 = vmatpush2.bf16.msra.mxu0 0
        %1560 = vmatprep.subr.bf16.mxu0 0
        %1561 = vmatpush2.bf16.msra.mxu0 0
        %1562 = vmatprep.subr.bf16.mxu0 0
        %1563 = vmatpush2.bf16.msra.mxu0 0
        %1564 = vmatprep.subr.bf16.mxu0 0
        %1565 = vmatpush2.bf16.msra.mxu0 0
        %1566 = vmatprep.subr.bf16.mxu0 0
        %1567 = vmatpush2.bf16.msra.mxu0 0
        %1568 = vmatprep.mubr.bf16.mxu0 0
        %1569 = vmatmul.mubr.bf16.gmra.mxu0 %v822
        %v1570 = vpop.f32.mrf.mxu0
        %v1571 = vadd.f32 0.0, %v1570
        %v1572 = vpop.f32.mrf.mxu0
        %v1573 = vpop.f32.mrf.mxu0
        %v1574 = vadd.f32 0.0, %v1573
        %v1575 = vpop.f32.mrf.mxu0
        %1576 = vmatprep.mubr.bf16.mxu0 0
        %1577 = vmatmul.mubr.bf16.gmra.mxu0 %v823
        %v1578 = vpop.f32.mrf.mxu0
        %v1579 = vadd.f32 0.0, %v1578
        %v1580 = vpop.f32.mrf.mxu0
        %v1581 = vpop.f32.mrf.mxu0
        %v1582 = vadd.f32 0.0, %v1581
        %v1583 = vpop.f32.mrf.mxu0
        %1584 = vmatprep.mubr.bf16.mxu0 0
        %1585 = vmatmul.mubr.bf16.gmra.mxu0 %v824
        %v1586 = vpop.f32.mrf.mxu0
        %v1587 = vadd.f32 0.0, %v1586
        %v1588 = vpop.f32.mrf.mxu0
        %v1589 = vpop.f32.mrf.mxu0
        %v1590 = vadd.f32 0.0, %v1589
        %v1591 = vpop.f32.mrf.mxu0
        %1592 = vmatprep.mubr.bf16.mxu0 0
        %1593 = vmatmul.mubr.bf16.gmra.mxu0 %v825
        %v1594 = vpop.f32.mrf.mxu0
        %v1595 = vadd.f32 0.0, %v1594
        %v1596 = vpop.f32.mrf.mxu0
        %v1597 = vpop.f32.mrf.mxu0
        %v1598 = vadd.f32 0.0, %v1597
        %v1599 = vpop.f32.mrf.mxu0
        %1600 = vmatprep.mubr.bf16.mxu0 0
        %1601 = vmatmul.mubr.bf16.gmra.mxu0 %v826
        %v1602 = vpop.f32.mrf.mxu0
        %v1603 = vadd.f32 0.0, %v1602
        %v1604 = vpop.f32.mrf.mxu0
        %v1605 = vpop.f32.mrf.mxu0
        %v1606 = vadd.f32 0.0, %v1605
        %v1607 = vpop.f32.mrf.mxu0
        %1608 = vmatprep.mubr.bf16.mxu0 0
        %1609 = vmatmul.mubr.bf16.gmra.mxu0 %v827
        %v1610 = vpop.f32.mrf.mxu0
        %v1611 = vadd.f32 0.0, %v1610
        %v1612 = vpop.f32.mrf.mxu0
        %v1613 = vpop.f32.mrf.mxu0
        %v1614 = vadd.f32 0.0, %v1613
        %v1615 = vpop.f32.mrf.mxu0
        %1616 = vmatprep.mubr.bf16.mxu0 0
        %1617 = vmatmul.mubr.bf16.gmra.mxu0 %v828
        %v1618 = vpop.f32.mrf.mxu0
        %v1619 = vadd.f32 0.0, %v1618
        %v1620 = vpop.f32.mrf.mxu0
        %v1621 = vpop.f32.mrf.mxu0
        %v1622 = vadd.f32 0.0, %v1621
        %v1623 = vpop.f32.mrf.mxu0
        %1624 = vmatprep.mubr.bf16.mxu0 0
        %1625 = vmatmul.mubr.bf16.gmra.mxu0 %v829
        %v1626 = vpop.f32.mrf.mxu0
        %v1627 = vadd.f32 0.0, %v1626
        %v1628 = vpop.f32.mrf.mxu0
        %v1629 = vpop.f32.mrf.mxu0
        %v1630 = vadd.f32 0.0, %v1629
        %v1631 = vpop.f32.mrf.mxu0
        %1632 = vdwg.mxu0
        %1633 = vmatprep.subr.bf16.mxu0 0
        %1634 = vmatpush1.bf16.msra.mxu0 %v1534
        %1635 = vmatprep.subr.bf16.mxu0 0
        %1636 = vmatpush1.bf16.msra.mxu0 %v1533
        %1637 = vmatprep.subr.bf16.mxu0 0
        %1638 = vmatpush1.bf16.msra.mxu0 %v1532
        %1639 = vmatprep.subr.bf16.mxu0 0
        %1640 = vmatpush1.bf16.msra.mxu0 %v1531
        %1641 = vmatprep.subr.bf16.mxu0 0
        %1642 = vmatpush1.bf16.msra.mxu0 %v1530
        %1643 = vmatprep.subr.bf16.mxu0 0
        %1644 = vmatpush1.bf16.msra.mxu0 %v1529
        %1645 = vmatprep.subr.bf16.mxu0 0
        %1646 = vmatpush1.bf16.msra.mxu0 %v1528
        %1647 = vmatprep.subr.bf16.mxu0 0
        %1648 = vmatpush1.bf16.msra.mxu0 %v1527
        %1649 = vmatprep.subr.bf16.mxu0 0
        %1650 = vmatpush2.bf16.msra.mxu0 0
        %1651 = vmatprep.subr.bf16.mxu0 0
        %1652 = vmatpush2.bf16.msra.mxu0 0
        %1653 = vmatprep.subr.bf16.mxu0 0
        %1654 = vmatpush2.bf16.msra.mxu0 0
        %1655 = vmatprep.subr.bf16.mxu0 0
        %1656 = vmatpush2.bf16.msra.mxu0 0
        %1657 = vmatprep.subr.bf16.mxu0 0
        %1658 = vmatpush2.bf16.msra.mxu0 0
        %1659 = vmatprep.subr.bf16.mxu0 0
        %1660 = vmatpush2.bf16.msra.mxu0 0
        %1661 = vmatprep.subr.bf16.mxu0 0
        %1662 = vmatpush2.bf16.msra.mxu0 0
        %1663 = vmatprep.subr.bf16.mxu0 0
        %1664 = vmatpush2.bf16.msra.mxu0 0
        %1665 = vmatprep.mubr.bf16.mxu0 0
        %1666 = vmatmul.mubr.bf16.gmra.mxu0 %v1015
        %v1667 = vpop.f32.mrf.mxu0
        %v1668 = vadd.f32 0.0, %v1667
        %v1669 = vpop.f32.mrf.mxu0
        %v1670 = vpop.f32.mrf.mxu0
        %v1671 = vadd.f32 0.0, %v1670
        %v1672 = vpop.f32.mrf.mxu0
        %1673 = vmatprep.mubr.bf16.mxu0 0
        %1674 = vmatmul.mubr.bf16.gmra.mxu0 %v1016
        %v1675 = vpop.f32.mrf.mxu0
        %v1676 = vadd.f32 0.0, %v1675
        %v1677 = vpop.f32.mrf.mxu0
        %v1678 = vpop.f32.mrf.mxu0
        %v1679 = vadd.f32 0.0, %v1678
        %v1680 = vpop.f32.mrf.mxu0
        %1681 = vmatprep.mubr.bf16.mxu0 0
        %1682 = vmatmul.mubr.bf16.gmra.mxu0 %v1017
        %v1683 = vpop.f32.mrf.mxu0
        %v1684 = vadd.f32 0.0, %v1683
        %v1685 = vpop.f32.mrf.mxu0
        %v1686 = vpop.f32.mrf.mxu0
        %v1687 = vadd.f32 0.0, %v1686
        %v1688 = vpop.f32.mrf.mxu0
        %1689 = vmatprep.mubr.bf16.mxu0 0
        %1690 = vmatmul.mubr.bf16.gmra.mxu0 %v1018
        %v1691 = vpop.f32.mrf.mxu0
        %v1692 = vadd.f32 0.0, %v1691
        %v1693 = vpop.f32.mrf.mxu0
        %v1694 = vpop.f32.mrf.mxu0
        %v1695 = vadd.f32 0.0, %v1694
        %v1696 = vpop.f32.mrf.mxu0
        %1697 = vmatprep.mubr.bf16.mxu0 0
        %1698 = vmatmul.mubr.bf16.gmra.mxu0 %v1019
        %v1699 = vpop.f32.mrf.mxu0
        %v1700 = vadd.f32 0.0, %v1699
        %v1701 = vpop.f32.mrf.mxu0
        %v1702 = vpop.f32.mrf.mxu0
        %v1703 = vadd.f32 0.0, %v1702
        %v1704 = vpop.f32.mrf.mxu0
        %1705 = vmatprep.mubr.bf16.mxu0 0
        %1706 = vmatmul.mubr.bf16.gmra.mxu0 %v1020
        %v1707 = vpop.f32.mrf.mxu0
        %v1708 = vadd.f32 0.0, %v1707
        %v1709 = vpop.f32.mrf.mxu0
        %v1710 = vpop.f32.mrf.mxu0
        %v1711 = vadd.f32 0.0, %v1710
        %v1712 = vpop.f32.mrf.mxu0
        %1713 = vmatprep.mubr.bf16.mxu0 0
        %1714 = vmatmul.mubr.bf16.gmra.mxu0 %v1021
        %v1715 = vpop.f32.mrf.mxu0
        %v1716 = vadd.f32 0.0, %v1715
        %v1717 = vpop.f32.mrf.mxu0
        %v1718 = vpop.f32.mrf.mxu0
        %v1719 = vadd.f32 0.0, %v1718
        %v1720 = vpop.f32.mrf.mxu0
        %1721 = vmatprep.mubr.bf16.mxu0 0
        %1722 = vmatmul.mubr.bf16.gmra.mxu0 %v1022
        %v1723 = vpop.f32.mrf.mxu0
        %v1724 = vadd.f32 0.0, %v1723
        %v1725 = vpop.f32.mrf.mxu0
        %v1726 = vpop.f32.mrf.mxu0
        %v1727 = vadd.f32 0.0, %v1726
        %v1728 = vpop.f32.mrf.mxu0
        %1729 = vdwg.mxu0
        %v1730 = vmul.f32 %v1571, %v757
        %v1731 = vmul.f32 %v1574, %v758
        %v1732 = vmul.f32 %v1579, %v759
        %v1733 = vmul.f32 %v1582, %v760
        %v1734 = vmul.f32 %v1587, %v761
        %v1735 = vmul.f32 %v1590, %v762
        %v1736 = vmul.f32 %v1595, %v763
        %v1737 = vmul.f32 %v1598, %v764
        %v1738 = vmul.f32 %v1603, %v765
        %v1739 = vmul.f32 %v1606, %v766
        %v1740 = vmul.f32 %v1611, %v767
        %v1741 = vmul.f32 %v1614, %v768
        %v1742 = vmul.f32 %v1619, %v769
        %v1743 = vmul.f32 %v1622, %v770
        %v1744 = vmul.f32 %v1627, %v771
        %v1745 = vmul.f32 %v1630, %v772
        %v1746 = vmul.f32 %v1668, %v773
        %v1747 = vmul.f32 %v1671, %v774
        %v1748 = vmul.f32 %v1676, %v775
        %v1749 = vmul.f32 %v1679, %v776
        %v1750 = vmul.f32 %v1684, %v777
        %v1751 = vmul.f32 %v1687, %v778
        %v1752 = vmul.f32 %v1692, %v779
        %v1753 = vmul.f32 %v1695, %v780
        %v1754 = vmul.f32 %v1700, %v781
        %v1755 = vmul.f32 %v1703, %v782
        %v1756 = vmul.f32 %v1708, %v783
        %v1757 = vmul.f32 %v1711, %v784
        %v1758 = vmul.f32 %v1716, %v785
        %v1759 = vmul.f32 %v1719, %v786
        %v1760 = vmul.f32 %v1724, %v787
        %v1761 = vmul.f32 %v1727, %v788
        %v1762 = vpack.c.bf16 %v1731, %v1730
        %v1763 = vpack.c.bf16 %v1733, %v1732
        %v1764 = vpack.c.bf16 %v1735, %v1734
        %v1765 = vpack.c.bf16 %v1737, %v1736
        %v1766 = vpack.c.bf16 %v1739, %v1738
        %v1767 = vpack.c.bf16 %v1741, %v1740
        %v1768 = vpack.c.bf16 %v1743, %v1742
        %v1769 = vpack.c.bf16 %v1745, %v1744
        %v1770 = vpack.c.bf16 %v1747, %v1746
        %v1771 = vpack.c.bf16 %v1749, %v1748
        %v1772 = vpack.c.bf16 %v1751, %v1750
        %v1773 = vpack.c.bf16 %v1753, %v1752
        %v1774 = vpack.c.bf16 %v1755, %v1754
        %v1775 = vpack.c.bf16 %v1757, %v1756
        %v1776 = vpack.c.bf16 %v1759, %v1758
        %v1777 = vpack.c.bf16 %v1761, %v1760
        %v1778 = vld [vmem:[#allocation8] sm:$0xf]
        %v1779 = vld [vmem:[#allocation8 + $0x4] sm:$0xf]
        %v1780 = vld [vmem:[#allocation8 + $0x8] sm:$0xf]
        %v1781 = vld [vmem:[#allocation8 + $0xc] sm:$0xf]
        %v1782 = vld [vmem:[#allocation8 + $0x10] sm:$0xf]
        %v1783 = vld [vmem:[#allocation8 + $0x14] sm:$0xf]
        %v1784 = vld [vmem:[#allocation8 + $0x18] sm:$0xf]
        %v1785 = vld [vmem:[#allocation8 + $0x1c] sm:$0xf]
        %v1786 = vld [vmem:[#allocation8 + $0x20] sm:$0xf]
        %v1787 = vld [vmem:[#allocation8 + $0x24] sm:$0xf]
        %v1788 = vld [vmem:[#allocation8 + $0x28] sm:$0xf]
        %v1789 = vld [vmem:[#allocation8 + $0x2c] sm:$0xf]
        %v1790 = vld [vmem:[#allocation8 + $0x30] sm:$0xf]
        %v1791 = vld [vmem:[#allocation8 + $0x34] sm:$0xf]
        %v1792 = vld [vmem:[#allocation8 + $0x38] sm:$0xf]
        %v1793 = vld [vmem:[#allocation8 + $0x3c] sm:$0xf]
        %v1810 = vunpack.c.l.b16 %v1778
        %v1811 = vunpack.c.l.b16 %v1779
        %v1812 = vunpack.c.l.b16 %v1780
        %v1813 = vunpack.c.l.b16 %v1781
        %v1814 = vunpack.c.l.b16 %v1782
        %v1815 = vunpack.c.l.b16 %v1783
        %v1816 = vunpack.c.l.b16 %v1784
        %v1817 = vunpack.c.l.b16 %v1785
        %v1818 = vunpack.c.l.b16 %v1786
        %v1819 = vunpack.c.l.b16 %v1787
        %v1820 = vunpack.c.l.b16 %v1788
        %v1821 = vunpack.c.l.b16 %v1789
        %v1822 = vunpack.c.l.b16 %v1790
        %v1823 = vunpack.c.l.b16 %v1791
        %v1824 = vunpack.c.l.b16 %v1792
        %v1825 = vunpack.c.l.b16 %v1793
        %v1826 = vpack.c.b16 %v1811, %v1810
        %v1827 = vpack.c.b16 %v1813, %v1812
        %v1828 = vpack.c.b16 %v1815, %v1814
        %v1829 = vpack.c.b16 %v1817, %v1816
        %v1830 = vpack.c.b16 %v1819, %v1818
        %v1831 = vpack.c.b16 %v1821, %v1820
        %v1832 = vpack.c.b16 %v1823, %v1822
        %v1833 = vpack.c.b16 %v1825, %v1824
        %1842 = vmatprep.subr.bf16.mxu0 0
        %1843 = vmatpush1.bf16.msra.mxu0 %v1833
        %1844 = vmatprep.subr.bf16.mxu0 0
        %1845 = vmatpush1.bf16.msra.mxu0 %v1832
        %1846 = vmatprep.subr.bf16.mxu0 0
        %1847 = vmatpush1.bf16.msra.mxu0 %v1831
        %1848 = vmatprep.subr.bf16.mxu0 0
        %1849 = vmatpush1.bf16.msra.mxu0 %v1830
        %1850 = vmatprep.subr.bf16.mxu0 0
        %1851 = vmatpush1.bf16.msra.mxu0 %v1829
        %1852 = vmatprep.subr.bf16.mxu0 0
        %1853 = vmatpush1.bf16.msra.mxu0 %v1828
        %1854 = vmatprep.subr.bf16.mxu0 0
        %1855 = vmatpush1.bf16.msra.mxu0 %v1827
        %1856 = vmatprep.subr.bf16.mxu0 0
        %1857 = vmatpush1.bf16.msra.mxu0 %v1826
        %1858 = vmatprep.subr.bf16.mxu0 0
        %1859 = vmatpush2.bf16.msra.mxu0 0
        %1860 = vmatprep.subr.bf16.mxu0 0
        %1861 = vmatpush2.bf16.msra.mxu0 0
        %1862 = vmatprep.subr.bf16.mxu0 0
        %1863 = vmatpush2.bf16.msra.mxu0 0
        %1864 = vmatprep.subr.bf16.mxu0 0
        %1865 = vmatpush2.bf16.msra.mxu0 0
        %1866 = vmatprep.subr.bf16.mxu0 0
        %1867 = vmatpush2.bf16.msra.mxu0 0
        %1868 = vmatprep.subr.bf16.mxu0 0
        %1869 = vmatpush2.bf16.msra.mxu0 0
        %1870 = vmatprep.subr.bf16.mxu0 0
        %1871 = vmatpush2.bf16.msra.mxu0 0
        %1872 = vmatprep.subr.bf16.mxu0 0
        %1873 = vmatpush2.bf16.msra.mxu0 0
        %1874 = vmatprep.mubr.bf16.mxu0 0
        %1875 = vmatmul.mubr.bf16.gmra.mxu0 %v1762
        %v1876 = vpop.f32.mrf.mxu0
        %v1877 = vadd.f32 0.0, %v1876
        %v1878 = vpop.f32.mrf.mxu0
        %v1879 = vpop.f32.mrf.mxu0
        %v1880 = vadd.f32 0.0, %v1879
        %v1881 = vpop.f32.mrf.mxu0
        %1882 = vmatprep.mubr.bf16.mxu0 0
        %1883 = vmatmul.mubr.bf16.gmra.mxu0 %v1763
        %v1884 = vpop.f32.mrf.mxu0
        %v1885 = vadd.f32 0.0, %v1884
        %v1886 = vpop.f32.mrf.mxu0
        %v1887 = vpop.f32.mrf.mxu0
        %v1888 = vadd.f32 0.0, %v1887
        %v1889 = vpop.f32.mrf.mxu0
        %1890 = vmatprep.mubr.bf16.mxu0 0
        %1891 = vmatmul.mubr.bf16.gmra.mxu0 %v1764
        %v1892 = vpop.f32.mrf.mxu0
        %v1893 = vadd.f32 0.0, %v1892
        %v1894 = vpop.f32.mrf.mxu0
        %v1895 = vpop.f32.mrf.mxu0
        %v1896 = vadd.f32 0.0, %v1895
        %v1897 = vpop.f32.mrf.mxu0
        %1898 = vmatprep.mubr.bf16.mxu0 0
        %1899 = vmatmul.mubr.bf16.gmra.mxu0 %v1765
        %v1900 = vpop.f32.mrf.mxu0
        %v1901 = vadd.f32 0.0, %v1900
        %v1902 = vpop.f32.mrf.mxu0
        %v1903 = vpop.f32.mrf.mxu0
        %v1904 = vadd.f32 0.0, %v1903
        %v1905 = vpop.f32.mrf.mxu0
        %1906 = vmatprep.mubr.bf16.mxu0 0
        %1907 = vmatmul.mubr.bf16.gmra.mxu0 %v1766
        %v1908 = vpop.f32.mrf.mxu0
        %v1909 = vadd.f32 0.0, %v1908
        %v1910 = vpop.f32.mrf.mxu0
        %v1911 = vpop.f32.mrf.mxu0
        %v1912 = vadd.f32 0.0, %v1911
        %v1913 = vpop.f32.mrf.mxu0
        %1914 = vmatprep.mubr.bf16.mxu0 0
        %1915 = vmatmul.mubr.bf16.gmra.mxu0 %v1767
        %v1916 = vpop.f32.mrf.mxu0
        %v1917 = vadd.f32 0.0, %v1916
        %v1918 = vpop.f32.mrf.mxu0
        %v1919 = vpop.f32.mrf.mxu0
        %v1920 = vadd.f32 0.0, %v1919
        %v1921 = vpop.f32.mrf.mxu0
        %1922 = vmatprep.mubr.bf16.mxu0 0
        %1923 = vmatmul.mubr.bf16.gmra.mxu0 %v1768
        %v1924 = vpop.f32.mrf.mxu0
        %v1925 = vadd.f32 0.0, %v1924
        %v1926 = vpop.f32.mrf.mxu0
        %v1927 = vpop.f32.mrf.mxu0
        %v1928 = vadd.f32 0.0, %v1927
        %v1929 = vpop.f32.mrf.mxu0
        %1930 = vmatprep.mubr.bf16.mxu0 0
        %1931 = vmatmul.mubr.bf16.gmra.mxu0 %v1769
        %v1932 = vpop.f32.mrf.mxu0
        %v1933 = vadd.f32 0.0, %v1932
        %v1934 = vpop.f32.mrf.mxu0
        %v1935 = vpop.f32.mrf.mxu0
        %v1936 = vadd.f32 0.0, %v1935
        %v1937 = vpop.f32.mrf.mxu0
        %1938 = vmatprep.mubr.bf16.mxu0 0
        %1939 = vmatmul.mubr.bf16.gmra.mxu0 %v1770
        %v1940 = vpop.f32.mrf.mxu0
        %v1941 = vadd.f32 0.0, %v1940
        %v1942 = vpop.f32.mrf.mxu0
        %v1943 = vpop.f32.mrf.mxu0
        %v1944 = vadd.f32 0.0, %v1943
        %v1945 = vpop.f32.mrf.mxu0
        %1946 = vmatprep.mubr.bf16.mxu0 0
        %1947 = vmatmul.mubr.bf16.gmra.mxu0 %v1771
        %v1948 = vpop.f32.mrf.mxu0
        %v1949 = vadd.f32 0.0, %v1948
        %v1950 = vpop.f32.mrf.mxu0
        %v1951 = vpop.f32.mrf.mxu0
        %v1952 = vadd.f32 0.0, %v1951
        %v1953 = vpop.f32.mrf.mxu0
        %1954 = vmatprep.mubr.bf16.mxu0 0
        %1955 = vmatmul.mubr.bf16.gmra.mxu0 %v1772
        %v1956 = vpop.f32.mrf.mxu0
        %v1957 = vadd.f32 0.0, %v1956
        %v1958 = vpop.f32.mrf.mxu0
        %v1959 = vpop.f32.mrf.mxu0
        %v1960 = vadd.f32 0.0, %v1959
        %v1961 = vpop.f32.mrf.mxu0
        %1962 = vmatprep.mubr.bf16.mxu0 0
        %1963 = vmatmul.mubr.bf16.gmra.mxu0 %v1773
        %v1964 = vpop.f32.mrf.mxu0
        %v1965 = vadd.f32 0.0, %v1964
        %v1966 = vpop.f32.mrf.mxu0
        %v1967 = vpop.f32.mrf.mxu0
        %v1968 = vadd.f32 0.0, %v1967
        %v1969 = vpop.f32.mrf.mxu0
        %1970 = vmatprep.mubr.bf16.mxu0 0
        %1971 = vmatmul.mubr.bf16.gmra.mxu0 %v1774
        %v1972 = vpop.f32.mrf.mxu0
        %v1973 = vadd.f32 0.0, %v1972
        %v1974 = vpop.f32.mrf.mxu0
        %v1975 = vpop.f32.mrf.mxu0
        %v1976 = vadd.f32 0.0, %v1975
        %v1977 = vpop.f32.mrf.mxu0
        %1978 = vmatprep.mubr.bf16.mxu0 0
        %1979 = vmatmul.mubr.bf16.gmra.mxu0 %v1775
        %v1980 = vpop.f32.mrf.mxu0
        %v1981 = vadd.f32 0.0, %v1980
        %v1982 = vpop.f32.mrf.mxu0
        %v1983 = vpop.f32.mrf.mxu0
        %v1984 = vadd.f32 0.0, %v1983
        %v1985 = vpop.f32.mrf.mxu0
        %1986 = vmatprep.mubr.bf16.mxu0 0
        %1987 = vmatmul.mubr.bf16.gmra.mxu0 %v1776
        %v1988 = vpop.f32.mrf.mxu0
        %v1989 = vadd.f32 0.0, %v1988
        %v1990 = vpop.f32.mrf.mxu0
        %v1991 = vpop.f32.mrf.mxu0
        %v1992 = vadd.f32 0.0, %v1991
        %v1993 = vpop.f32.mrf.mxu0
        %1994 = vmatprep.mubr.bf16.mxu0 0
        %1995 = vmatmul.mubr.bf16.gmra.mxu0 %v1777
        %v1996 = vpop.f32.mrf.mxu0
        %v1997 = vadd.f32 0.0, %v1996
        %v1998 = vpop.f32.mrf.mxu0
        %v1999 = vpop.f32.mrf.mxu0
        %v2000 = vadd.f32 0.0, %v1999
        %v2001 = vpop.f32.mrf.mxu0
        %2002 = vdwg.mxu0
        %v2004 = vlaneseq
        %v2005 = vshrl.u32 %v2004, 7
        %v2006 = vsub.s32 0, %v2005
        %v2007 = vrot.slane %v1535, %v2006
        %v2009 = vadd.f32 %v1877, %v2007
        %v2010 = vadd.f32 %v1880, %v2007
        %v2011 = vadd.f32 %v1885, %v2007
        %v2012 = vadd.f32 %v1888, %v2007
        %v2013 = vadd.f32 %v1893, %v2007
        %v2014 = vadd.f32 %v1896, %v2007
        %v2015 = vadd.f32 %v1901, %v2007
        %v2016 = vadd.f32 %v1904, %v2007
        %v2017 = vadd.f32 %v1909, %v2007
        %v2018 = vadd.f32 %v1912, %v2007
        %v2019 = vadd.f32 %v1917, %v2007
        %v2020 = vadd.f32 %v1920, %v2007
        %v2021 = vadd.f32 %v1925, %v2007
        %v2022 = vadd.f32 %v1928, %v2007
        %v2023 = vadd.f32 %v1933, %v2007
        %v2024 = vadd.f32 %v1936, %v2007
        %v2025 = vadd.f32 %v1941, %v2007
        %v2026 = vadd.f32 %v1944, %v2007
        %v2027 = vadd.f32 %v1949, %v2007
        %v2028 = vadd.f32 %v1952, %v2007
        %v2029 = vadd.f32 %v1957, %v2007
        %v2030 = vadd.f32 %v1960, %v2007
        %v2031 = vadd.f32 %v1965, %v2007
        %v2032 = vadd.f32 %v1968, %v2007
        %v2033 = vadd.f32 %v1973, %v2007
        %v2034 = vadd.f32 %v1976, %v2007
        %v2035 = vadd.f32 %v1981, %v2007
        %v2036 = vadd.f32 %v1984, %v2007
        %v2037 = vadd.f32 %v1989, %v2007
        %v2038 = vadd.f32 %v1992, %v2007
        %v2039 = vadd.f32 %v1997, %v2007
        %v2040 = vadd.f32 %v2000, %v2007
        %v2041 = vmax.f32 %v2009, 0.0
        %v2042 = vmax.f32 %v2010, 0.0
        %v2043 = vmax.f32 %v2011, 0.0
        %v2044 = vmax.f32 %v2012, 0.0
        %v2045 = vmax.f32 %v2013, 0.0
        %v2046 = vmax.f32 %v2014, 0.0
        %v2047 = vmax.f32 %v2015, 0.0
        %v2048 = vmax.f32 %v2016, 0.0
        %v2049 = vmax.f32 %v2017, 0.0
        %v2050 = vmax.f32 %v2018, 0.0
        %v2051 = vmax.f32 %v2019, 0.0
        %v2052 = vmax.f32 %v2020, 0.0
        %v2053 = vmax.f32 %v2021, 0.0
        %v2054 = vmax.f32 %v2022, 0.0
        %v2055 = vmax.f32 %v2023, 0.0
        %v2056 = vmax.f32 %v2024, 0.0
        %v2057 = vmax.f32 %v2025, 0.0
        %v2058 = vmax.f32 %v2026, 0.0
        %v2059 = vmax.f32 %v2027, 0.0
        %v2060 = vmax.f32 %v2028, 0.0
        %v2061 = vmax.f32 %v2029, 0.0
        %v2062 = vmax.f32 %v2030, 0.0
        %v2063 = vmax.f32 %v2031, 0.0
        %v2064 = vmax.f32 %v2032, 0.0
        %v2065 = vmax.f32 %v2033, 0.0
        %v2066 = vmax.f32 %v2034, 0.0
        %v2067 = vmax.f32 %v2035, 0.0
        %v2068 = vmax.f32 %v2036, 0.0
        %v2069 = vmax.f32 %v2037, 0.0
        %v2070 = vmax.f32 %v2038, 0.0
        %v2071 = vmax.f32 %v2039, 0.0
        %v2072 = vmax.f32 %v2040, 0.0
        %v2073 = vpack.c.bf16 %v2042, %v2041
        %v2074 = vpack.c.bf16 %v2044, %v2043
        %v2075 = vpack.c.bf16 %v2046, %v2045
        %v2076 = vpack.c.bf16 %v2048, %v2047
        %v2077 = vpack.c.bf16 %v2050, %v2049
        %v2078 = vpack.c.bf16 %v2052, %v2051
        %v2079 = vpack.c.bf16 %v2054, %v2053
        %v2080 = vpack.c.bf16 %v2056, %v2055
        %v2081 = vpack.c.bf16 %v2058, %v2057
        %v2082 = vpack.c.bf16 %v2060, %v2059
        %v2083 = vpack.c.bf16 %v2062, %v2061
        %v2084 = vpack.c.bf16 %v2064, %v2063
        %v2085 = vpack.c.bf16 %v2066, %v2065
        %v2086 = vpack.c.bf16 %v2068, %v2067
        %v2087 = vpack.c.bf16 %v2070, %v2069
        %v2088 = vpack.c.bf16 %v2072, %v2071
        %v2089 = vld [vmem:[%s7] sm:$0x1]
        %2090 = vmatprep.subr.bf16.mxu0 0
        %2091 = vmatpush1.bf16.msra.mxu0 %v2080
        %2092 = vmatprep.subr.bf16.mxu0 0
        %2093 = vmatpush1.bf16.msra.mxu0 %v2079
        %2094 = vmatprep.subr.bf16.mxu0 0
        %2095 = vmatpush1.bf16.msra.mxu0 %v2078
        %2096 = vmatprep.subr.bf16.mxu0 0
        %2097 = vmatpush1.bf16.msra.mxu0 %v2077
        %2098 = vmatprep.subr.bf16.mxu0 0
        %2099 = vmatpush1.bf16.msra.mxu0 %v2076
        %2100 = vmatprep.subr.bf16.mxu0 0
        %2101 = vmatpush1.bf16.msra.mxu0 %v2075
        %2102 = vmatprep.subr.bf16.mxu0 0
        %2103 = vmatpush1.bf16.msra.mxu0 %v2074
        %2104 = vmatprep.subr.bf16.mxu0 0
        %2105 = vmatpush1.bf16.msra.mxu0 %v2073
        %2106 = vmatprep.subr.bf16.mxu0 0
        %2107 = vmatpush2.bf16.msra.mxu0 0
        %2108 = vmatprep.subr.bf16.mxu0 0
        %2109 = vmatpush2.bf16.msra.mxu0 0
        %2110 = vmatprep.subr.bf16.mxu0 0
        %2111 = vmatpush2.bf16.msra.mxu0 0
        %2112 = vmatprep.subr.bf16.mxu0 0
        %2113 = vmatpush2.bf16.msra.mxu0 0
        %2114 = vmatprep.subr.bf16.mxu0 0
        %2115 = vmatpush2.bf16.msra.mxu0 0
        %2116 = vmatprep.subr.bf16.mxu0 0
        %2117 = vmatpush2.bf16.msra.mxu0 0
        %2118 = vmatprep.subr.bf16.mxu0 0
        %2119 = vmatpush2.bf16.msra.mxu0 0
        %2120 = vmatprep.subr.bf16.mxu0 0
        %2121 = vmatpush2.bf16.msra.mxu0 0
        %2122 = vmatprep.mubr.bf16.mxu0 0
        %2123 = vmatmul.mubr.bf16.gmra.mxu0 %v822
        %v2124 = vpop.f32.mrf.mxu0
        %v2125 = vadd.f32 0.0, %v2124
        %v2126 = vpop.f32.mrf.mxu0
        %v2127 = vpop.f32.mrf.mxu0
        %v2128 = vadd.f32 0.0, %v2127
        %v2129 = vpop.f32.mrf.mxu0
        %2130 = vmatprep.mubr.bf16.mxu0 0
        %2131 = vmatmul.mubr.bf16.gmra.mxu0 %v823
        %v2132 = vpop.f32.mrf.mxu0
        %v2133 = vadd.f32 0.0, %v2132
        %v2134 = vpop.f32.mrf.mxu0
        %v2135 = vpop.f32.mrf.mxu0
        %v2136 = vadd.f32 0.0, %v2135
        %v2137 = vpop.f32.mrf.mxu0
        %2138 = vmatprep.mubr.bf16.mxu0 0
        %2139 = vmatmul.mubr.bf16.gmra.mxu0 %v824
        %v2140 = vpop.f32.mrf.mxu0
        %v2141 = vadd.f32 0.0, %v2140
        %v2142 = vpop.f32.mrf.mxu0
        %v2143 = vpop.f32.mrf.mxu0
        %v2144 = vadd.f32 0.0, %v2143
        %v2145 = vpop.f32.mrf.mxu0
        %2146 = vmatprep.mubr.bf16.mxu0 0
        %2147 = vmatmul.mubr.bf16.gmra.mxu0 %v825
        %v2148 = vpop.f32.mrf.mxu0
        %v2149 = vadd.f32 0.0, %v2148
        %v2150 = vpop.f32.mrf.mxu0
        %v2151 = vpop.f32.mrf.mxu0
        %v2152 = vadd.f32 0.0, %v2151
        %v2153 = vpop.f32.mrf.mxu0
        %2154 = vmatprep.mubr.bf16.mxu0 0
        %2155 = vmatmul.mubr.bf16.gmra.mxu0 %v826
        %v2156 = vpop.f32.mrf.mxu0
        %v2157 = vadd.f32 0.0, %v2156
        %v2158 = vpop.f32.mrf.mxu0
        %v2159 = vpop.f32.mrf.mxu0
        %v2160 = vadd.f32 0.0, %v2159
        %v2161 = vpop.f32.mrf.mxu0
        %2162 = vmatprep.mubr.bf16.mxu0 0
        %2163 = vmatmul.mubr.bf16.gmra.mxu0 %v827
        %v2164 = vpop.f32.mrf.mxu0
        %v2165 = vadd.f32 0.0, %v2164
        %v2166 = vpop.f32.mrf.mxu0
        %v2167 = vpop.f32.mrf.mxu0
        %v2168 = vadd.f32 0.0, %v2167
        %v2169 = vpop.f32.mrf.mxu0
        %2170 = vmatprep.mubr.bf16.mxu0 0
        %2171 = vmatmul.mubr.bf16.gmra.mxu0 %v828
        %v2172 = vpop.f32.mrf.mxu0
        %v2173 = vadd.f32 0.0, %v2172
        %v2174 = vpop.f32.mrf.mxu0
        %v2175 = vpop.f32.mrf.mxu0
        %v2176 = vadd.f32 0.0, %v2175
        %v2177 = vpop.f32.mrf.mxu0
        %2178 = vmatprep.mubr.bf16.mxu0 0
        %2179 = vmatmul.mubr.bf16.gmra.mxu0 %v829
        %v2180 = vpop.f32.mrf.mxu0
        %v2181 = vadd.f32 0.0, %v2180
        %v2182 = vpop.f32.mrf.mxu0
        %v2183 = vpop.f32.mrf.mxu0
        %v2184 = vadd.f32 0.0, %v2183
        %v2185 = vpop.f32.mrf.mxu0
        %2186 = vdwg.mxu0
        %2187 = vmatprep.subr.bf16.mxu0 0
        %2188 = vmatpush1.bf16.msra.mxu0 %v2088
        %2189 = vmatprep.subr.bf16.mxu0 0
        %2190 = vmatpush1.bf16.msra.mxu0 %v2087
        %2191 = vmatprep.subr.bf16.mxu0 0
        %2192 = vmatpush1.bf16.msra.mxu0 %v2086
        %2193 = vmatprep.subr.bf16.mxu0 0
        %2194 = vmatpush1.bf16.msra.mxu0 %v2085
        %2195 = vmatprep.subr.bf16.mxu0 0
        %2196 = vmatpush1.bf16.msra.mxu0 %v2084
        %2197 = vmatprep.subr.bf16.mxu0 0
        %2198 = vmatpush1.bf16.msra.mxu0 %v2083
        %2199 = vmatprep.subr.bf16.mxu0 0
        %2200 = vmatpush1.bf16.msra.mxu0 %v2082
        %2201 = vmatprep.subr.bf16.mxu0 0
        %2202 = vmatpush1.bf16.msra.mxu0 %v2081
        %2203 = vmatprep.subr.bf16.mxu0 0
        %2204 = vmatpush2.bf16.msra.mxu0 0
        %2205 = vmatprep.subr.bf16.mxu0 0
        %2206 = vmatpush2.bf16.msra.mxu0 0
        %2207 = vmatprep.subr.bf16.mxu0 0
        %2208 = vmatpush2.bf16.msra.mxu0 0
        %2209 = vmatprep.subr.bf16.mxu0 0
        %2210 = vmatpush2.bf16.msra.mxu0 0
        %2211 = vmatprep.subr.bf16.mxu0 0
        %2212 = vmatpush2.bf16.msra.mxu0 0
        %2213 = vmatprep.subr.bf16.mxu0 0
        %2214 = vmatpush2.bf16.msra.mxu0 0
        %2215 = vmatprep.subr.bf16.mxu0 0
        %2216 = vmatpush2.bf16.msra.mxu0 0
        %2217 = vmatprep.subr.bf16.mxu0 0
        %2218 = vmatpush2.bf16.msra.mxu0 0
        %2219 = vmatprep.mubr.bf16.mxu0 0
        %2220 = vmatmul.mubr.bf16.gmra.mxu0 %v1015
        %v2221 = vpop.f32.mrf.mxu0
        %v2222 = vadd.f32 0.0, %v2221
        %v2223 = vpop.f32.mrf.mxu0
        %v2224 = vpop.f32.mrf.mxu0
        %v2225 = vadd.f32 0.0, %v2224
        %v2226 = vpop.f32.mrf.mxu0
        %2227 = vmatprep.mubr.bf16.mxu0 0
        %2228 = vmatmul.mubr.bf16.gmra.mxu0 %v1016
        %v2229 = vpop.f32.mrf.mxu0
        %v2230 = vadd.f32 0.0, %v2229
        %v2231 = vpop.f32.mrf.mxu0
        %v2232 = vpop.f32.mrf.mxu0
        %v2233 = vadd.f32 0.0, %v2232
        %v2234 = vpop.f32.mrf.mxu0
        %2235 = vmatprep.mubr.bf16.mxu0 0
        %2236 = vmatmul.mubr.bf16.gmra.mxu0 %v1017
        %v2237 = vpop.f32.mrf.mxu0
        %v2238 = vadd.f32 0.0, %v2237
        %v2239 = vpop.f32.mrf.mxu0
        %v2240 = vpop.f32.mrf.mxu0
        %v2241 = vadd.f32 0.0, %v2240
        %v2242 = vpop.f32.mrf.mxu0
        %2243 = vmatprep.mubr.bf16.mxu0 0
        %2244 = vmatmul.mubr.bf16.gmra.mxu0 %v1018
        %v2245 = vpop.f32.mrf.mxu0
        %v2246 = vadd.f32 0.0, %v2245
        %v2247 = vpop.f32.mrf.mxu0
        %v2248 = vpop.f32.mrf.mxu0
        %v2249 = vadd.f32 0.0, %v2248
        %v2250 = vpop.f32.mrf.mxu0
        %2251 = vmatprep.mubr.bf16.mxu0 0
        %2252 = vmatmul.mubr.bf16.gmra.mxu0 %v1019
        %v2253 = vpop.f32.mrf.mxu0
        %v2254 = vadd.f32 0.0, %v2253
        %v2255 = vpop.f32.mrf.mxu0
        %v2256 = vpop.f32.mrf.mxu0
        %v2257 = vadd.f32 0.0, %v2256
        %v2258 = vpop.f32.mrf.mxu0
        %2259 = vmatprep.mubr.bf16.mxu0 0
        %2260 = vmatmul.mubr.bf16.gmra.mxu0 %v1020
        %v2261 = vpop.f32.mrf.mxu0
        %v2262 = vadd.f32 0.0, %v2261
        %v2263 = vpop.f32.mrf.mxu0
        %v2264 = vpop.f32.mrf.mxu0
        %v2265 = vadd.f32 0.0, %v2264
        %v2266 = vpop.f32.mrf.mxu0
        %2267 = vmatprep.mubr.bf16.mxu0 0
        %2268 = vmatmul.mubr.bf16.gmra.mxu0 %v1021
        %v2269 = vpop.f32.mrf.mxu0
        %v2270 = vadd.f32 0.0, %v2269
        %v2271 = vpop.f32.mrf.mxu0
        %v2272 = vpop.f32.mrf.mxu0
        %v2273 = vadd.f32 0.0, %v2272
        %v2274 = vpop.f32.mrf.mxu0
        %2275 = vmatprep.mubr.bf16.mxu0 0
        %2276 = vmatmul.mubr.bf16.gmra.mxu0 %v1022
        %v2277 = vpop.f32.mrf.mxu0
        %v2278 = vadd.f32 0.0, %v2277
        %v2279 = vpop.f32.mrf.mxu0
        %v2280 = vpop.f32.mrf.mxu0
        %v2281 = vadd.f32 0.0, %v2280
        %v2282 = vpop.f32.mrf.mxu0
        %2283 = vdwg.mxu0
        %v2284 = vmul.f32 %v2125, %v757
        %v2285 = vmul.f32 %v2128, %v758
        %v2286 = vmul.f32 %v2133, %v759
        %v2287 = vmul.f32 %v2136, %v760
        %v2288 = vmul.f32 %v2141, %v761
        %v2289 = vmul.f32 %v2144, %v762
        %v2290 = vmul.f32 %v2149, %v763
        %v2291 = vmul.f32 %v2152, %v764
        %v2292 = vmul.f32 %v2157, %v765
        %v2293 = vmul.f32 %v2160, %v766
        %v2294 = vmul.f32 %v2165, %v767
        %v2295 = vmul.f32 %v2168, %v768
        %v2296 = vmul.f32 %v2173, %v769
        %v2297 = vmul.f32 %v2176, %v770
        %v2298 = vmul.f32 %v2181, %v771
        %v2299 = vmul.f32 %v2184, %v772
        %v2300 = vmul.f32 %v2222, %v773
        %v2301 = vmul.f32 %v2225, %v774
        %v2302 = vmul.f32 %v2230, %v775
        %v2303 = vmul.f32 %v2233, %v776
        %v2304 = vmul.f32 %v2238, %v777
        %v2305 = vmul.f32 %v2241, %v778
        %v2306 = vmul.f32 %v2246, %v779
        %v2307 = vmul.f32 %v2249, %v780
        %v2308 = vmul.f32 %v2254, %v781
        %v2309 = vmul.f32 %v2257, %v782
        %v2310 = vmul.f32 %v2262, %v783
        %v2311 = vmul.f32 %v2265, %v784
        %v2312 = vmul.f32 %v2270, %v785
        %v2313 = vmul.f32 %v2273, %v786
        %v2314 = vmul.f32 %v2278, %v787
        %v2315 = vmul.f32 %v2281, %v788
        %v2316 = vpack.c.bf16 %v2285, %v2284
        %v2317 = vpack.c.bf16 %v2287, %v2286
        %v2318 = vpack.c.bf16 %v2289, %v2288
        %v2319 = vpack.c.bf16 %v2291, %v2290
        %v2320 = vpack.c.bf16 %v2293, %v2292
        %v2321 = vpack.c.bf16 %v2295, %v2294
        %v2322 = vpack.c.bf16 %v2297, %v2296
        %v2323 = vpack.c.bf16 %v2299, %v2298
        %v2324 = vpack.c.bf16 %v2301, %v2300
        %v2325 = vpack.c.bf16 %v2303, %v2302
        %v2326 = vpack.c.bf16 %v2305, %v2304
        %v2327 = vpack.c.bf16 %v2307, %v2306
        %v2328 = vpack.c.bf16 %v2309, %v2308
        %v2329 = vpack.c.bf16 %v2311, %v2310
        %v2330 = vpack.c.bf16 %v2313, %v2312
        %v2331 = vpack.c.bf16 %v2315, %v2314
        %v2332 = vld [vmem:[#allocation10] sm:$0xf]
        %v2333 = vld [vmem:[#allocation10 + $0x4] sm:$0xf]
        %v2334 = vld [vmem:[#allocation10 + $0x8] sm:$0xf]
        %v2335 = vld [vmem:[#allocation10 + $0xc] sm:$0xf]
        %v2336 = vld [vmem:[#allocation10 + $0x10] sm:$0xf]
        %v2337 = vld [vmem:[#allocation10 + $0x14] sm:$0xf]
        %v2338 = vld [vmem:[#allocation10 + $0x18] sm:$0xf]
        %v2339 = vld [vmem:[#allocation10 + $0x1c] sm:$0xf]
        %v2340 = vld [vmem:[#allocation10 + $0x20] sm:$0xf]
        %v2341 = vld [vmem:[#allocation10 + $0x24] sm:$0xf]
        %v2342 = vld [vmem:[#allocation10 + $0x28] sm:$0xf]
        %v2343 = vld [vmem:[#allocation10 + $0x2c] sm:$0xf]
        %v2344 = vld [vmem:[#allocation10 + $0x30] sm:$0xf]
        %v2345 = vld [vmem:[#allocation10 + $0x34] sm:$0xf]
        %v2346 = vld [vmem:[#allocation10 + $0x38] sm:$0xf]
        %v2347 = vld [vmem:[#allocation10 + $0x3c] sm:$0xf]
        %v2364 = vunpack.c.l.b16 %v2332
        %v2365 = vunpack.c.l.b16 %v2333
        %v2366 = vunpack.c.l.b16 %v2334
        %v2367 = vunpack.c.l.b16 %v2335
        %v2368 = vunpack.c.l.b16 %v2336
        %v2369 = vunpack.c.l.b16 %v2337
        %v2370 = vunpack.c.l.b16 %v2338
        %v2371 = vunpack.c.l.b16 %v2339
        %v2372 = vunpack.c.l.b16 %v2340
        %v2373 = vunpack.c.l.b16 %v2341
        %v2374 = vunpack.c.l.b16 %v2342
        %v2375 = vunpack.c.l.b16 %v2343
        %v2376 = vunpack.c.l.b16 %v2344
        %v2377 = vunpack.c.l.b16 %v2345
        %v2378 = vunpack.c.l.b16 %v2346
        %v2379 = vunpack.c.l.b16 %v2347
        %v2380 = vpack.c.b16 %v2365, %v2364
        %v2381 = vpack.c.b16 %v2367, %v2366
        %v2382 = vpack.c.b16 %v2369, %v2368
        %v2383 = vpack.c.b16 %v2371, %v2370
        %v2384 = vpack.c.b16 %v2373, %v2372
        %v2385 = vpack.c.b16 %v2375, %v2374
        %v2386 = vpack.c.b16 %v2377, %v2376
        %v2387 = vpack.c.b16 %v2379, %v2378
        %2396 = vmatprep.subr.bf16.mxu0 0
        %2397 = vmatpush1.bf16.msra.mxu0 %v2387
        %2398 = vmatprep.subr.bf16.mxu0 0
        %2399 = vmatpush1.bf16.msra.mxu0 %v2386
        %2400 = vmatprep.subr.bf16.mxu0 0
        %2401 = vmatpush1.bf16.msra.mxu0 %v2385
        %2402 = vmatprep.subr.bf16.mxu0 0
        %2403 = vmatpush1.bf16.msra.mxu0 %v2384
        %2404 = vmatprep.subr.bf16.mxu0 0
        %2405 = vmatpush1.bf16.msra.mxu0 %v2383
        %2406 = vmatprep.subr.bf16.mxu0 0
        %2407 = vmatpush1.bf16.msra.mxu0 %v2382
        %2408 = vmatprep.subr.bf16.mxu0 0
        %2409 = vmatpush1.bf16.msra.mxu0 %v2381
        %2410 = vmatprep.subr.bf16.mxu0 0
        %2411 = vmatpush1.bf16.msra.mxu0 %v2380
        %2412 = vmatprep.subr.bf16.mxu0 0
        %2413 = vmatpush2.bf16.msra.mxu0 0
        %2414 = vmatprep.subr.bf16.mxu0 0
        %2415 = vmatpush2.bf16.msra.mxu0 0
        %2416 = vmatprep.subr.bf16.mxu0 0
        %2417 = vmatpush2.bf16.msra.mxu0 0
        %2418 = vmatprep.subr.bf16.mxu0 0
        %2419 = vmatpush2.bf16.msra.mxu0 0
        %2420 = vmatprep.subr.bf16.mxu0 0
        %2421 = vmatpush2.bf16.msra.mxu0 0
        %2422 = vmatprep.subr.bf16.mxu0 0
        %2423 = vmatpush2.bf16.msra.mxu0 0
        %2424 = vmatprep.subr.bf16.mxu0 0
        %2425 = vmatpush2.bf16.msra.mxu0 0
        %2426 = vmatprep.subr.bf16.mxu0 0
        %2427 = vmatpush2.bf16.msra.mxu0 0
        %2428 = vmatprep.mubr.bf16.mxu0 0
        %2429 = vmatmul.mubr.bf16.gmra.mxu0 %v2316
        %v2430 = vpop.f32.mrf.mxu0
        %v2431 = vadd.f32 0.0, %v2430
        %v2432 = vpop.f32.mrf.mxu0
        %v2433 = vpop.f32.mrf.mxu0
        %v2434 = vadd.f32 0.0, %v2433
        %v2435 = vpop.f32.mrf.mxu0
        %2436 = vmatprep.mubr.bf16.mxu0 0
        %2437 = vmatmul.mubr.bf16.gmra.mxu0 %v2317
        %v2438 = vpop.f32.mrf.mxu0
        %v2439 = vadd.f32 0.0, %v2438
        %v2440 = vpop.f32.mrf.mxu0
        %v2441 = vpop.f32.mrf.mxu0
        %v2442 = vadd.f32 0.0, %v2441
        %v2443 = vpop.f32.mrf.mxu0
        %2444 = vmatprep.mubr.bf16.mxu0 0
        %2445 = vmatmul.mubr.bf16.gmra.mxu0 %v2318
        %v2446 = vpop.f32.mrf.mxu0
        %v2447 = vadd.f32 0.0, %v2446
        %v2448 = vpop.f32.mrf.mxu0
        %v2449 = vpop.f32.mrf.mxu0
        %v2450 = vadd.f32 0.0, %v2449
        %v2451 = vpop.f32.mrf.mxu0
        %2452 = vmatprep.mubr.bf16.mxu0 0
        %2453 = vmatmul.mubr.bf16.gmra.mxu0 %v2319
        %v2454 = vpop.f32.mrf.mxu0
        %v2455 = vadd.f32 0.0, %v2454
        %v2456 = vpop.f32.mrf.mxu0
        %v2457 = vpop.f32.mrf.mxu0
        %v2458 = vadd.f32 0.0, %v2457
        %v2459 = vpop.f32.mrf.mxu0
        %2460 = vmatprep.mubr.bf16.mxu0 0
        %2461 = vmatmul.mubr.bf16.gmra.mxu0 %v2320
        %v2462 = vpop.f32.mrf.mxu0
        %v2463 = vadd.f32 0.0, %v2462
        %v2464 = vpop.f32.mrf.mxu0
        %v2465 = vpop.f32.mrf.mxu0
        %v2466 = vadd.f32 0.0, %v2465
        %v2467 = vpop.f32.mrf.mxu0
        %2468 = vmatprep.mubr.bf16.mxu0 0
        %2469 = vmatmul.mubr.bf16.gmra.mxu0 %v2321
        %v2470 = vpop.f32.mrf.mxu0
        %v2471 = vadd.f32 0.0, %v2470
        %v2472 = vpop.f32.mrf.mxu0
        %v2473 = vpop.f32.mrf.mxu0
        %v2474 = vadd.f32 0.0, %v2473
        %v2475 = vpop.f32.mrf.mxu0
        %2476 = vmatprep.mubr.bf16.mxu0 0
        %2477 = vmatmul.mubr.bf16.gmra.mxu0 %v2322
        %v2478 = vpop.f32.mrf.mxu0
        %v2479 = vadd.f32 0.0, %v2478
        %v2480 = vpop.f32.mrf.mxu0
        %v2481 = vpop.f32.mrf.mxu0
        %v2482 = vadd.f32 0.0, %v2481
        %v2483 = vpop.f32.mrf.mxu0
        %2484 = vmatprep.mubr.bf16.mxu0 0
        %2485 = vmatmul.mubr.bf16.gmra.mxu0 %v2323
        %v2486 = vpop.f32.mrf.mxu0
        %v2487 = vadd.f32 0.0, %v2486
        %v2488 = vpop.f32.mrf.mxu0
        %v2489 = vpop.f32.mrf.mxu0
        %v2490 = vadd.f32 0.0, %v2489
        %v2491 = vpop.f32.mrf.mxu0
        %2492 = vmatprep.mubr.bf16.mxu0 0
        %2493 = vmatmul.mubr.bf16.gmra.mxu0 %v2324
        %v2494 = vpop.f32.mrf.mxu0
        %v2495 = vadd.f32 0.0, %v2494
        %v2496 = vpop.f32.mrf.mxu0
        %v2497 = vpop.f32.mrf.mxu0
        %v2498 = vadd.f32 0.0, %v2497
        %v2499 = vpop.f32.mrf.mxu0
        %2500 = vmatprep.mubr.bf16.mxu0 0
        %2501 = vmatmul.mubr.bf16.gmra.mxu0 %v2325
        %v2502 = vpop.f32.mrf.mxu0
        %v2503 = vadd.f32 0.0, %v2502
        %v2504 = vpop.f32.mrf.mxu0
        %v2505 = vpop.f32.mrf.mxu0
        %v2506 = vadd.f32 0.0, %v2505
        %v2507 = vpop.f32.mrf.mxu0
        %2508 = vmatprep.mubr.bf16.mxu0 0
        %2509 = vmatmul.mubr.bf16.gmra.mxu0 %v2326
        %v2510 = vpop.f32.mrf.mxu0
        %v2511 = vadd.f32 0.0, %v2510
        %v2512 = vpop.f32.mrf.mxu0
        %v2513 = vpop.f32.mrf.mxu0
        %v2514 = vadd.f32 0.0, %v2513
        %v2515 = vpop.f32.mrf.mxu0
        %2516 = vmatprep.mubr.bf16.mxu0 0
        %2517 = vmatmul.mubr.bf16.gmra.mxu0 %v2327
        %v2518 = vpop.f32.mrf.mxu0
        %v2519 = vadd.f32 0.0, %v2518
        %v2520 = vpop.f32.mrf.mxu0
        %v2521 = vpop.f32.mrf.mxu0
        %v2522 = vadd.f32 0.0, %v2521
        %v2523 = vpop.f32.mrf.mxu0
        %2524 = vmatprep.mubr.bf16.mxu0 0
        %2525 = vmatmul.mubr.bf16.gmra.mxu0 %v2328
        %v2526 = vpop.f32.mrf.mxu0
        %v2527 = vadd.f32 0.0, %v2526
        %v2528 = vpop.f32.mrf.mxu0
        %v2529 = vpop.f32.mrf.mxu0
        %v2530 = vadd.f32 0.0, %v2529
        %v2531 = vpop.f32.mrf.mxu0
        %2532 = vmatprep.mubr.bf16.mxu0 0
        %2533 = vmatmul.mubr.bf16.gmra.mxu0 %v2329
        %v2534 = vpop.f32.mrf.mxu0
        %v2535 = vadd.f32 0.0, %v2534
        %v2536 = vpop.f32.mrf.mxu0
        %v2537 = vpop.f32.mrf.mxu0
        %v2538 = vadd.f32 0.0, %v2537
        %v2539 = vpop.f32.mrf.mxu0
        %2540 = vmatprep.mubr.bf16.mxu0 0
        %2541 = vmatmul.mubr.bf16.gmra.mxu0 %v2330
        %v2542 = vpop.f32.mrf.mxu0
        %v2543 = vadd.f32 0.0, %v2542
        %v2544 = vpop.f32.mrf.mxu0
        %v2545 = vpop.f32.mrf.mxu0
        %v2546 = vadd.f32 0.0, %v2545
        %v2547 = vpop.f32.mrf.mxu0
        %2548 = vmatprep.mubr.bf16.mxu0 0
        %2549 = vmatmul.mubr.bf16.gmra.mxu0 %v2331
        %v2550 = vpop.f32.mrf.mxu0
        %v2551 = vadd.f32 0.0, %v2550
        %v2552 = vpop.f32.mrf.mxu0
        %v2553 = vpop.f32.mrf.mxu0
        %v2554 = vadd.f32 0.0, %v2553
        %v2555 = vpop.f32.mrf.mxu0
        %2556 = vdwg.mxu0
        %v2558 = vlaneseq
        %v2559 = vshrl.u32 %v2558, 7
        %v2560 = vsub.s32 0, %v2559
        %v2561 = vrot.slane %v2089, %v2560
        %v2563 = vadd.f32 %v2431, %v2561
        %v2564 = vadd.f32 %v2434, %v2561
        %v2565 = vadd.f32 %v2439, %v2561
        %v2566 = vadd.f32 %v2442, %v2561
        %v2567 = vadd.f32 %v2447, %v2561
        %v2568 = vadd.f32 %v2450, %v2561
        %v2569 = vadd.f32 %v2455, %v2561
        %v2570 = vadd.f32 %v2458, %v2561
        %v2571 = vadd.f32 %v2463, %v2561
        %v2572 = vadd.f32 %v2466, %v2561
        %v2573 = vadd.f32 %v2471, %v2561
        %v2574 = vadd.f32 %v2474, %v2561
        %v2575 = vadd.f32 %v2479, %v2561
        %v2576 = vadd.f32 %v2482, %v2561
        %v2577 = vadd.f32 %v2487, %v2561
        %v2578 = vadd.f32 %v2490, %v2561
        %v2579 = vadd.f32 %v2495, %v2561
        %v2580 = vadd.f32 %v2498, %v2561
        %v2581 = vadd.f32 %v2503, %v2561
        %v2582 = vadd.f32 %v2506, %v2561
        %v2583 = vadd.f32 %v2511, %v2561
        %v2584 = vadd.f32 %v2514, %v2561
        %v2585 = vadd.f32 %v2519, %v2561
        %v2586 = vadd.f32 %v2522, %v2561
        %v2587 = vadd.f32 %v2527, %v2561
        %v2588 = vadd.f32 %v2530, %v2561
        %v2589 = vadd.f32 %v2535, %v2561
        %v2590 = vadd.f32 %v2538, %v2561
        %v2591 = vadd.f32 %v2543, %v2561
        %v2592 = vadd.f32 %v2546, %v2561
        %v2593 = vadd.f32 %v2551, %v2561
        %v2594 = vadd.f32 %v2554, %v2561
        %v2595 = vmax.f32 %v2563, 0.0
        %v2596 = vmax.f32 %v2564, 0.0
        %v2597 = vmax.f32 %v2565, 0.0
        %v2598 = vmax.f32 %v2566, 0.0
        %v2599 = vmax.f32 %v2567, 0.0
        %v2600 = vmax.f32 %v2568, 0.0
        %v2601 = vmax.f32 %v2569, 0.0
        %v2602 = vmax.f32 %v2570, 0.0
        %v2603 = vmax.f32 %v2571, 0.0
        %v2604 = vmax.f32 %v2572, 0.0
        %v2605 = vmax.f32 %v2573, 0.0
        %v2606 = vmax.f32 %v2574, 0.0
        %v2607 = vmax.f32 %v2575, 0.0
        %v2608 = vmax.f32 %v2576, 0.0
        %v2609 = vmax.f32 %v2577, 0.0
        %v2610 = vmax.f32 %v2578, 0.0
        %v2611 = vmax.f32 %v2579, 0.0
        %v2612 = vmax.f32 %v2580, 0.0
        %v2613 = vmax.f32 %v2581, 0.0
        %v2614 = vmax.f32 %v2582, 0.0
        %v2615 = vmax.f32 %v2583, 0.0
        %v2616 = vmax.f32 %v2584, 0.0
        %v2617 = vmax.f32 %v2585, 0.0
        %v2618 = vmax.f32 %v2586, 0.0
        %v2619 = vmax.f32 %v2587, 0.0
        %v2620 = vmax.f32 %v2588, 0.0
        %v2621 = vmax.f32 %v2589, 0.0
        %v2622 = vmax.f32 %v2590, 0.0
        %v2623 = vmax.f32 %v2591, 0.0
        %v2624 = vmax.f32 %v2592, 0.0
        %v2625 = vmax.f32 %v2593, 0.0
        %v2626 = vmax.f32 %v2594, 0.0
        %v2627 = vpack.c.bf16 %v2596, %v2595
        %v2628 = vpack.c.bf16 %v2598, %v2597
        %v2629 = vpack.c.bf16 %v2600, %v2599
        %v2630 = vpack.c.bf16 %v2602, %v2601
        %v2631 = vpack.c.bf16 %v2604, %v2603
        %v2632 = vpack.c.bf16 %v2606, %v2605
        %v2633 = vpack.c.bf16 %v2608, %v2607
        %v2634 = vpack.c.bf16 %v2610, %v2609
        %v2635 = vpack.c.bf16 %v2612, %v2611
        %v2636 = vpack.c.bf16 %v2614, %v2613
        %v2637 = vpack.c.bf16 %v2616, %v2615
        %v2638 = vpack.c.bf16 %v2618, %v2617
        %v2639 = vpack.c.bf16 %v2620, %v2619
        %v2640 = vpack.c.bf16 %v2622, %v2621
        %v2641 = vpack.c.bf16 %v2624, %v2623
        %v2642 = vpack.c.bf16 %v2626, %v2625
        %v2643 = vld [vmem:[#allocation11] sm:$0xf]
        %v2644 = vld [vmem:[#allocation11 + $0x4] sm:$0xf]
        %v2645 = vld [vmem:[#allocation11 + $0x8] sm:$0xf]
        %v2646 = vld [vmem:[#allocation11 + $0xc] sm:$0xf]
        %v2647 = vld [vmem:[#allocation11 + $0x10] sm:$0xf]
        %v2648 = vld [vmem:[#allocation11 + $0x14] sm:$0xf]
        %v2649 = vld [vmem:[#allocation11 + $0x18] sm:$0xf]
        %v2650 = vld [vmem:[#allocation11 + $0x1c] sm:$0xf]
        %v2651 = vld [vmem:[#allocation11 + $0x20] sm:$0xf]
        %v2652 = vld [vmem:[#allocation11 + $0x24] sm:$0xf]
        %v2653 = vld [vmem:[#allocation11 + $0x28] sm:$0xf]
        %v2654 = vld [vmem:[#allocation11 + $0x2c] sm:$0xf]
        %v2655 = vld [vmem:[#allocation11 + $0x30] sm:$0xf]
        %v2656 = vld [vmem:[#allocation11 + $0x34] sm:$0xf]
        %v2657 = vld [vmem:[#allocation11 + $0x38] sm:$0xf]
        %v2658 = vld [vmem:[#allocation11 + $0x3c] sm:$0xf]
        %v2675 = vunpack.c.l.b16 %v2643
        %v2676 = vunpack.c.l.b16 %v2644
        %v2677 = vunpack.c.l.b16 %v2645
        %v2678 = vunpack.c.l.b16 %v2646
        %v2679 = vunpack.c.l.b16 %v2647
        %v2680 = vunpack.c.l.b16 %v2648
        %v2681 = vunpack.c.l.b16 %v2649
        %v2682 = vunpack.c.l.b16 %v2650
        %v2683 = vunpack.c.l.b16 %v2651
        %v2684 = vunpack.c.l.b16 %v2652
        %v2685 = vunpack.c.l.b16 %v2653
        %v2686 = vunpack.c.l.b16 %v2654
        %v2687 = vunpack.c.l.b16 %v2655
        %v2688 = vunpack.c.l.b16 %v2656
        %v2689 = vunpack.c.l.b16 %v2657
        %v2690 = vunpack.c.l.b16 %v2658
        %v2691 = vpack.c.b16 %v2676, %v2675
        %v2692 = vpack.c.b16 %v2678, %v2677
        %v2693 = vpack.c.b16 %v2680, %v2679
        %v2694 = vpack.c.b16 %v2682, %v2681
        %v2695 = vpack.c.b16 %v2684, %v2683
        %v2696 = vpack.c.b16 %v2686, %v2685
        %v2697 = vpack.c.b16 %v2688, %v2687
        %v2698 = vpack.c.b16 %v2690, %v2689
        %2707 = vmatprep.subr.bf16.mxu0 0
        %2708 = vmatpush1.bf16.msra.mxu0 %v2698
        %2709 = vmatprep.subr.bf16.mxu0 0
        %2710 = vmatpush1.bf16.msra.mxu0 %v2697
        %2711 = vmatprep.subr.bf16.mxu0 0
        %2712 = vmatpush1.bf16.msra.mxu0 %v2696
        %2713 = vmatprep.subr.bf16.mxu0 0
        %2714 = vmatpush1.bf16.msra.mxu0 %v2695
        %2715 = vmatprep.subr.bf16.mxu0 0
        %2716 = vmatpush1.bf16.msra.mxu0 %v2694
        %2717 = vmatprep.subr.bf16.mxu0 0
        %2718 = vmatpush1.bf16.msra.mxu0 %v2693
        %2719 = vmatprep.subr.bf16.mxu0 0
        %2720 = vmatpush1.bf16.msra.mxu0 %v2692
        %2721 = vmatprep.subr.bf16.mxu0 0
        %2722 = vmatpush1.bf16.msra.mxu0 %v2691
        %2723 = vmatprep.subr.bf16.mxu0 0
        %2724 = vmatpush2.bf16.msra.mxu0 0
        %2725 = vmatprep.subr.bf16.mxu0 0
        %2726 = vmatpush2.bf16.msra.mxu0 0
        %2727 = vmatprep.subr.bf16.mxu0 0
        %2728 = vmatpush2.bf16.msra.mxu0 0
        %2729 = vmatprep.subr.bf16.mxu0 0
        %2730 = vmatpush2.bf16.msra.mxu0 0
        %2731 = vmatprep.subr.bf16.mxu0 0
        %2732 = vmatpush2.bf16.msra.mxu0 0
        %2733 = vmatprep.subr.bf16.mxu0 0
        %2734 = vmatpush2.bf16.msra.mxu0 0
        %2735 = vmatprep.subr.bf16.mxu0 0
        %2736 = vmatpush2.bf16.msra.mxu0 0
        %2737 = vmatprep.subr.bf16.mxu0 0
        %2738 = vmatpush2.bf16.msra.mxu0 0
        %2739 = vmatprep.mubr.bf16.mxu0 0
        %2740 = vmatmul.mubr.bf16.gmra.mxu0 %v1519
        %v2741 = vpop.f32.mrf.mxu0
        %v2742 = vadd.f32 0.0, %v2741
        %v2743 = vpop.f32.mrf.mxu0
        %v2744 = vpop.f32.mrf.mxu0
        %v2745 = vadd.f32 0.0, %v2744
        %v2746 = vpop.f32.mrf.mxu0
        %2747 = vmatprep.mubr.bf16.mxu0 0
        %2748 = vmatmul.mubr.bf16.gmra.mxu0 %v1520
        %v2749 = vpop.f32.mrf.mxu0
        %v2750 = vadd.f32 0.0, %v2749
        %v2751 = vpop.f32.mrf.mxu0
        %v2752 = vpop.f32.mrf.mxu0
        %v2753 = vadd.f32 0.0, %v2752
        %v2754 = vpop.f32.mrf.mxu0
        %2755 = vmatprep.mubr.bf16.mxu0 0
        %2756 = vmatmul.mubr.bf16.gmra.mxu0 %v1521
        %v2757 = vpop.f32.mrf.mxu0
        %v2758 = vadd.f32 0.0, %v2757
        %v2759 = vpop.f32.mrf.mxu0
        %v2760 = vpop.f32.mrf.mxu0
        %v2761 = vadd.f32 0.0, %v2760
        %v2762 = vpop.f32.mrf.mxu0
        %2763 = vmatprep.mubr.bf16.mxu0 0
        %2764 = vmatmul.mubr.bf16.gmra.mxu0 %v1522
        %v2765 = vpop.f32.mrf.mxu0
        %v2766 = vadd.f32 0.0, %v2765
        %v2767 = vpop.f32.mrf.mxu0
        %v2768 = vpop.f32.mrf.mxu0
        %v2769 = vadd.f32 0.0, %v2768
        %v2770 = vpop.f32.mrf.mxu0
        %2771 = vmatprep.mubr.bf16.mxu0 0
        %2772 = vmatmul.mubr.bf16.gmra.mxu0 %v1523
        %v2773 = vpop.f32.mrf.mxu0
        %v2774 = vadd.f32 0.0, %v2773
        %v2775 = vpop.f32.mrf.mxu0
        %v2776 = vpop.f32.mrf.mxu0
        %v2777 = vadd.f32 0.0, %v2776
        %v2778 = vpop.f32.mrf.mxu0
        %2779 = vmatprep.mubr.bf16.mxu0 0
        %2780 = vmatmul.mubr.bf16.gmra.mxu0 %v1524
        %v2781 = vpop.f32.mrf.mxu0
        %v2782 = vadd.f32 0.0, %v2781
        %v2783 = vpop.f32.mrf.mxu0
        %v2784 = vpop.f32.mrf.mxu0
        %v2785 = vadd.f32 0.0, %v2784
        %v2786 = vpop.f32.mrf.mxu0
        %2787 = vmatprep.mubr.bf16.mxu0 0
        %2788 = vmatmul.mubr.bf16.gmra.mxu0 %v1525
        %v2789 = vpop.f32.mrf.mxu0
        %v2790 = vadd.f32 0.0, %v2789
        %v2791 = vpop.f32.mrf.mxu0
        %v2792 = vpop.f32.mrf.mxu0
        %v2793 = vadd.f32 0.0, %v2792
        %v2794 = vpop.f32.mrf.mxu0
        %2795 = vmatprep.mubr.bf16.mxu0 0
        %2796 = vmatmul.mubr.bf16.gmra.mxu0 %v1526
        %v2797 = vpop.f32.mrf.mxu0
        %v2798 = vadd.f32 0.0, %v2797
        %v2799 = vpop.f32.mrf.mxu0
        %v2800 = vpop.f32.mrf.mxu0
        %v2801 = vadd.f32 0.0, %v2800
        %v2802 = vpop.f32.mrf.mxu0
        %2803 = vmatprep.mubr.bf16.mxu0 0
        %2804 = vmatmul.mubr.bf16.gmra.mxu0 %v1527
        %v2805 = vpop.f32.mrf.mxu0
        %v2806 = vadd.f32 0.0, %v2805
        %v2807 = vpop.f32.mrf.mxu0
        %v2808 = vpop.f32.mrf.mxu0
        %v2809 = vadd.f32 0.0, %v2808
        %v2810 = vpop.f32.mrf.mxu0
        %2811 = vmatprep.mubr.bf16.mxu0 0
        %2812 = vmatmul.mubr.bf16.gmra.mxu0 %v1528
        %v2813 = vpop.f32.mrf.mxu0
        %v2814 = vadd.f32 0.0, %v2813
        %v2815 = vpop.f32.mrf.mxu0
        %v2816 = vpop.f32.mrf.mxu0
        %v2817 = vadd.f32 0.0, %v2816
        %v2818 = vpop.f32.mrf.mxu0
        %2819 = vmatprep.mubr.bf16.mxu0 0
        %2820 = vmatmul.mubr.bf16.gmra.mxu0 %v1529
        %v2821 = vpop.f32.mrf.mxu0
        %v2822 = vadd.f32 0.0, %v2821
        %v2823 = vpop.f32.mrf.mxu0
        %v2824 = vpop.f32.mrf.mxu0
        %v2825 = vadd.f32 0.0, %v2824
        %v2826 = vpop.f32.mrf.mxu0
        %2827 = vmatprep.mubr.bf16.mxu0 0
        %2828 = vmatmul.mubr.bf16.gmra.mxu0 %v1530
        %v2829 = vpop.f32.mrf.mxu0
        %v2830 = vadd.f32 0.0, %v2829
        %v2831 = vpop.f32.mrf.mxu0
        %v2832 = vpop.f32.mrf.mxu0
        %v2833 = vadd.f32 0.0, %v2832
        %v2834 = vpop.f32.mrf.mxu0
        %2835 = vmatprep.mubr.bf16.mxu0 0
        %2836 = vmatmul.mubr.bf16.gmra.mxu0 %v1531
        %v2837 = vpop.f32.mrf.mxu0
        %v2838 = vadd.f32 0.0, %v2837
        %v2839 = vpop.f32.mrf.mxu0
        %v2840 = vpop.f32.mrf.mxu0
        %v2841 = vadd.f32 0.0, %v2840
        %v2842 = vpop.f32.mrf.mxu0
        %2843 = vmatprep.mubr.bf16.mxu0 0
        %2844 = vmatmul.mubr.bf16.gmra.mxu0 %v1532
        %v2845 = vpop.f32.mrf.mxu0
        %v2846 = vadd.f32 0.0, %v2845
        %v2847 = vpop.f32.mrf.mxu0
        %v2848 = vpop.f32.mrf.mxu0
        %v2849 = vadd.f32 0.0, %v2848
        %v2850 = vpop.f32.mrf.mxu0
        %2851 = vmatprep.mubr.bf16.mxu0 0
        %2852 = vmatmul.mubr.bf16.gmra.mxu0 %v1533
        %v2853 = vpop.f32.mrf.mxu0
        %v2854 = vadd.f32 0.0, %v2853
        %v2855 = vpop.f32.mrf.mxu0
        %v2856 = vpop.f32.mrf.mxu0
        %v2857 = vadd.f32 0.0, %v2856
        %v2858 = vpop.f32.mrf.mxu0
        %2859 = vmatprep.mubr.bf16.mxu0 0
        %2860 = vmatmul.mubr.bf16.gmra.mxu0 %v1534
        %v2861 = vpop.f32.mrf.mxu0
        %v2862 = vadd.f32 0.0, %v2861
        %v2863 = vpop.f32.mrf.mxu0
        %v2864 = vpop.f32.mrf.mxu0
        %v2865 = vadd.f32 0.0, %v2864
        %v2866 = vpop.f32.mrf.mxu0
        %2867 = vdwg.mxu0
        %v2868 = vld [vmem:[#allocation13] sm:$0xf]
        %v2869 = vld [vmem:[#allocation13 + $0x4] sm:$0xf]
        %v2870 = vld [vmem:[#allocation13 + $0x8] sm:$0xf]
        %v2871 = vld [vmem:[#allocation13 + $0xc] sm:$0xf]
        %v2872 = vld [vmem:[#allocation13 + $0x10] sm:$0xf]
        %v2873 = vld [vmem:[#allocation13 + $0x14] sm:$0xf]
        %v2874 = vld [vmem:[#allocation13 + $0x18] sm:$0xf]
        %v2875 = vld [vmem:[#allocation13 + $0x1c] sm:$0xf]
        %v2876 = vld [vmem:[#allocation13 + $0x20] sm:$0xf]
        %v2877 = vld [vmem:[#allocation13 + $0x24] sm:$0xf]
        %v2878 = vld [vmem:[#allocation13 + $0x28] sm:$0xf]
        %v2879 = vld [vmem:[#allocation13 + $0x2c] sm:$0xf]
        %v2880 = vld [vmem:[#allocation13 + $0x30] sm:$0xf]
        %v2881 = vld [vmem:[#allocation13 + $0x34] sm:$0xf]
        %v2882 = vld [vmem:[#allocation13 + $0x38] sm:$0xf]
        %v2883 = vld [vmem:[#allocation13 + $0x3c] sm:$0xf]
        %v2900 = vunpack.c.l.b16 %v2868
        %v2901 = vunpack.c.l.b16 %v2869
        %v2902 = vunpack.c.l.b16 %v2870
        %v2903 = vunpack.c.l.b16 %v2871
        %v2904 = vunpack.c.l.b16 %v2872
        %v2905 = vunpack.c.l.b16 %v2873
        %v2906 = vunpack.c.l.b16 %v2874
        %v2907 = vunpack.c.l.b16 %v2875
        %v2908 = vunpack.c.l.b16 %v2876
        %v2909 = vunpack.c.l.b16 %v2877
        %v2910 = vunpack.c.l.b16 %v2878
        %v2911 = vunpack.c.l.b16 %v2879
        %v2912 = vunpack.c.l.b16 %v2880
        %v2913 = vunpack.c.l.b16 %v2881
        %v2914 = vunpack.c.l.b16 %v2882
        %v2915 = vunpack.c.l.b16 %v2883
        %v2916 = vpack.c.b16 %v2901, %v2900
        %v2917 = vpack.c.b16 %v2903, %v2902
        %v2918 = vpack.c.b16 %v2905, %v2904
        %v2919 = vpack.c.b16 %v2907, %v2906
        %v2920 = vpack.c.b16 %v2909, %v2908
        %v2921 = vpack.c.b16 %v2911, %v2910
        %v2922 = vpack.c.b16 %v2913, %v2912
        %v2923 = vpack.c.b16 %v2915, %v2914
        %2932 = vmatprep.subr.bf16.mxu0 0
        %2933 = vmatpush1.bf16.msra.mxu0 %v2923
        %2934 = vmatprep.subr.bf16.mxu0 0
        %2935 = vmatpush1.bf16.msra.mxu0 %v2922
        %2936 = vmatprep.subr.bf16.mxu0 0
        %2937 = vmatpush1.bf16.msra.mxu0 %v2921
        %2938 = vmatprep.subr.bf16.mxu0 0
        %2939 = vmatpush1.bf16.msra.mxu0 %v2920
        %2940 = vmatprep.subr.bf16.mxu0 0
        %2941 = vmatpush1.bf16.msra.mxu0 %v2919
        %2942 = vmatprep.subr.bf16.mxu0 0
        %2943 = vmatpush1.bf16.msra.mxu0 %v2918
        %2944 = vmatprep.subr.bf16.mxu0 0
        %2945 = vmatpush1.bf16.msra.mxu0 %v2917
        %2946 = vmatprep.subr.bf16.mxu0 0
        %2947 = vmatpush1.bf16.msra.mxu0 %v2916
        %2948 = vmatprep.subr.bf16.mxu0 0
        %2949 = vmatpush2.bf16.msra.mxu0 0
        %2950 = vmatprep.subr.bf16.mxu0 0
        %2951 = vmatpush2.bf16.msra.mxu0 0
        %2952 = vmatprep.subr.bf16.mxu0 0
        %2953 = vmatpush2.bf16.msra.mxu0 0
        %2954 = vmatprep.subr.bf16.mxu0 0
        %2955 = vmatpush2.bf16.msra.mxu0 0
        %2956 = vmatprep.subr.bf16.mxu0 0
        %2957 = vmatpush2.bf16.msra.mxu0 0
        %2958 = vmatprep.subr.bf16.mxu0 0
        %2959 = vmatpush2.bf16.msra.mxu0 0
        %2960 = vmatprep.subr.bf16.mxu0 0
        %2961 = vmatpush2.bf16.msra.mxu0 0
        %2962 = vmatprep.subr.bf16.mxu0 0
        %2963 = vmatpush2.bf16.msra.mxu0 0
        %2964 = vmatprep.mubr.bf16.mxu0 0
        %2965 = vmatmul.mubr.bf16.gmra.mxu0 %v2073
        %v2966 = vpop.f32.mrf.mxu0
        %v2967 = vadd.f32 0.0, %v2966
        %v2968 = vpop.f32.mrf.mxu0
        %v2969 = vpop.f32.mrf.mxu0
        %v2970 = vadd.f32 0.0, %v2969
        %v2971 = vpop.f32.mrf.mxu0
        %2972 = vmatprep.mubr.bf16.mxu0 0
        %2973 = vmatmul.mubr.bf16.gmra.mxu0 %v2074
        %v2974 = vpop.f32.mrf.mxu0
        %v2975 = vadd.f32 0.0, %v2974
        %v2976 = vpop.f32.mrf.mxu0
        %v2977 = vpop.f32.mrf.mxu0
        %v2978 = vadd.f32 0.0, %v2977
        %v2979 = vpop.f32.mrf.mxu0
        %2980 = vmatprep.mubr.bf16.mxu0 0
        %2981 = vmatmul.mubr.bf16.gmra.mxu0 %v2075
        %v2982 = vpop.f32.mrf.mxu0
        %v2983 = vadd.f32 0.0, %v2982
        %v2984 = vpop.f32.mrf.mxu0
        %v2985 = vpop.f32.mrf.mxu0
        %v2986 = vadd.f32 0.0, %v2985
        %v2987 = vpop.f32.mrf.mxu0
        %2988 = vmatprep.mubr.bf16.mxu0 0
        %2989 = vmatmul.mubr.bf16.gmra.mxu0 %v2076
        %v2990 = vpop.f32.mrf.mxu0
        %v2991 = vadd.f32 0.0, %v2990
        %v2992 = vpop.f32.mrf.mxu0
        %v2993 = vpop.f32.mrf.mxu0
        %v2994 = vadd.f32 0.0, %v2993
        %v2995 = vpop.f32.mrf.mxu0
        %2996 = vmatprep.mubr.bf16.mxu0 0
        %2997 = vmatmul.mubr.bf16.gmra.mxu0 %v2077
        %v2998 = vpop.f32.mrf.mxu0
        %v2999 = vadd.f32 0.0, %v2998
        %v3000 = vpop.f32.mrf.mxu0
        %v3001 = vpop.f32.mrf.mxu0
        %v3002 = vadd.f32 0.0, %v3001
        %v3003 = vpop.f32.mrf.mxu0
        %3004 = vmatprep.mubr.bf16.mxu0 0
        %3005 = vmatmul.mubr.bf16.gmra.mxu0 %v2078
        %v3006 = vpop.f32.mrf.mxu0
        %v3007 = vadd.f32 0.0, %v3006
        %v3008 = vpop.f32.mrf.mxu0
        %v3009 = vpop.f32.mrf.mxu0
        %v3010 = vadd.f32 0.0, %v3009
        %v3011 = vpop.f32.mrf.mxu0
        %3012 = vmatprep.mubr.bf16.mxu0 0
        %3013 = vmatmul.mubr.bf16.gmra.mxu0 %v2079
        %v3014 = vpop.f32.mrf.mxu0
        %v3015 = vadd.f32 0.0, %v3014
        %v3016 = vpop.f32.mrf.mxu0
        %v3017 = vpop.f32.mrf.mxu0
        %v3018 = vadd.f32 0.0, %v3017
        %v3019 = vpop.f32.mrf.mxu0
        %3020 = vmatprep.mubr.bf16.mxu0 0
        %3021 = vmatmul.mubr.bf16.gmra.mxu0 %v2080
        %v3022 = vpop.f32.mrf.mxu0
        %v3023 = vadd.f32 0.0, %v3022
        %v3024 = vpop.f32.mrf.mxu0
        %v3025 = vpop.f32.mrf.mxu0
        %v3026 = vadd.f32 0.0, %v3025
        %v3027 = vpop.f32.mrf.mxu0
        %3028 = vmatprep.mubr.bf16.mxu0 0
        %3029 = vmatmul.mubr.bf16.gmra.mxu0 %v2081
        %v3030 = vpop.f32.mrf.mxu0
        %v3031 = vadd.f32 0.0, %v3030
        %v3032 = vpop.f32.mrf.mxu0
        %v3033 = vpop.f32.mrf.mxu0
        %v3034 = vadd.f32 0.0, %v3033
        %v3035 = vpop.f32.mrf.mxu0
        %3036 = vmatprep.mubr.bf16.mxu0 0
        %3037 = vmatmul.mubr.bf16.gmra.mxu0 %v2082
        %v3038 = vpop.f32.mrf.mxu0
        %v3039 = vadd.f32 0.0, %v3038
        %v3040 = vpop.f32.mrf.mxu0
        %v3041 = vpop.f32.mrf.mxu0
        %v3042 = vadd.f32 0.0, %v3041
        %v3043 = vpop.f32.mrf.mxu0
        %3044 = vmatprep.mubr.bf16.mxu0 0
        %3045 = vmatmul.mubr.bf16.gmra.mxu0 %v2083
        %v3046 = vpop.f32.mrf.mxu0
        %v3047 = vadd.f32 0.0, %v3046
        %v3048 = vpop.f32.mrf.mxu0
        %v3049 = vpop.f32.mrf.mxu0
        %v3050 = vadd.f32 0.0, %v3049
        %v3051 = vpop.f32.mrf.mxu0
        %3052 = vmatprep.mubr.bf16.mxu0 0
        %3053 = vmatmul.mubr.bf16.gmra.mxu0 %v2084
        %v3054 = vpop.f32.mrf.mxu0
        %v3055 = vadd.f32 0.0, %v3054
        %v3056 = vpop.f32.mrf.mxu0
        %v3057 = vpop.f32.mrf.mxu0
        %v3058 = vadd.f32 0.0, %v3057
        %v3059 = vpop.f32.mrf.mxu0
        %3060 = vmatprep.mubr.bf16.mxu0 0
        %3061 = vmatmul.mubr.bf16.gmra.mxu0 %v2085
        %v3062 = vpop.f32.mrf.mxu0
        %v3063 = vadd.f32 0.0, %v3062
        %v3064 = vpop.f32.mrf.mxu0
        %v3065 = vpop.f32.mrf.mxu0
        %v3066 = vadd.f32 0.0, %v3065
        %v3067 = vpop.f32.mrf.mxu0
        %3068 = vmatprep.mubr.bf16.mxu0 0
        %3069 = vmatmul.mubr.bf16.gmra.mxu0 %v2086
        %v3070 = vpop.f32.mrf.mxu0
        %v3071 = vadd.f32 0.0, %v3070
        %v3072 = vpop.f32.mrf.mxu0
        %v3073 = vpop.f32.mrf.mxu0
        %v3074 = vadd.f32 0.0, %v3073
        %v3075 = vpop.f32.mrf.mxu0
        %3076 = vmatprep.mubr.bf16.mxu0 0
        %3077 = vmatmul.mubr.bf16.gmra.mxu0 %v2087
        %v3078 = vpop.f32.mrf.mxu0
        %v3079 = vadd.f32 0.0, %v3078
        %v3080 = vpop.f32.mrf.mxu0
        %v3081 = vpop.f32.mrf.mxu0
        %v3082 = vadd.f32 0.0, %v3081
        %v3083 = vpop.f32.mrf.mxu0
        %3084 = vmatprep.mubr.bf16.mxu0 0
        %3085 = vmatmul.mubr.bf16.gmra.mxu0 %v2088
        %v3086 = vpop.f32.mrf.mxu0
        %v3087 = vadd.f32 0.0, %v3086
        %v3088 = vpop.f32.mrf.mxu0
        %v3089 = vpop.f32.mrf.mxu0
        %v3090 = vadd.f32 0.0, %v3089
        %v3091 = vpop.f32.mrf.mxu0
        %3092 = vdwg.mxu0
        %v3093 = vadd.f32 %v2742, %v2967
        %v3094 = vadd.f32 %v2745, %v2970
        %v3095 = vadd.f32 %v2750, %v2975
        %v3096 = vadd.f32 %v2753, %v2978
        %v3097 = vadd.f32 %v2758, %v2983
        %v3098 = vadd.f32 %v2761, %v2986
        %v3099 = vadd.f32 %v2766, %v2991
        %v3100 = vadd.f32 %v2769, %v2994
        %v3101 = vadd.f32 %v2774, %v2999
        %v3102 = vadd.f32 %v2777, %v3002
        %v3103 = vadd.f32 %v2782, %v3007
        %v3104 = vadd.f32 %v2785, %v3010
        %v3105 = vadd.f32 %v2790, %v3015
        %v3106 = vadd.f32 %v2793, %v3018
        %v3107 = vadd.f32 %v2798, %v3023
        %v3108 = vadd.f32 %v2801, %v3026
        %v3109 = vadd.f32 %v2806, %v3031
        %v3110 = vadd.f32 %v2809, %v3034
        %v3111 = vadd.f32 %v2814, %v3039
        %v3112 = vadd.f32 %v2817, %v3042
        %v3113 = vadd.f32 %v2822, %v3047
        %v3114 = vadd.f32 %v2825, %v3050
        %v3115 = vadd.f32 %v2830, %v3055
        %v3116 = vadd.f32 %v2833, %v3058
        %v3117 = vadd.f32 %v2838, %v3063
        %v3118 = vadd.f32 %v2841, %v3066
        %v3119 = vadd.f32 %v2846, %v3071
        %v3120 = vadd.f32 %v2849, %v3074
        %v3121 = vadd.f32 %v2854, %v3079
        %v3122 = vadd.f32 %v2857, %v3082
        %v3123 = vadd.f32 %v2862, %v3087
        %v3124 = vadd.f32 %v2865, %v3090
        %v3125 = vld [vmem:[#allocation14] sm:$0xf]
        %v3126 = vld [vmem:[#allocation14 + $0x4] sm:$0xf]
        %v3127 = vld [vmem:[#allocation14 + $0x8] sm:$0xf]
        %v3128 = vld [vmem:[#allocation14 + $0xc] sm:$0xf]
        %v3129 = vld [vmem:[#allocation14 + $0x10] sm:$0xf]
        %v3130 = vld [vmem:[#allocation14 + $0x14] sm:$0xf]
        %v3131 = vld [vmem:[#allocation14 + $0x18] sm:$0xf]
        %v3132 = vld [vmem:[#allocation14 + $0x1c] sm:$0xf]
        %v3133 = vld [vmem:[#allocation14 + $0x20] sm:$0xf]
        %v3134 = vld [vmem:[#allocation14 + $0x24] sm:$0xf]
        %v3135 = vld [vmem:[#allocation14 + $0x28] sm:$0xf]
        %v3136 = vld [vmem:[#allocation14 + $0x2c] sm:$0xf]
        %v3137 = vld [vmem:[#allocation14 + $0x30] sm:$0xf]
        %v3138 = vld [vmem:[#allocation14 + $0x34] sm:$0xf]
        %v3139 = vld [vmem:[#allocation14 + $0x38] sm:$0xf]
        %v3140 = vld [vmem:[#allocation14 + $0x3c] sm:$0xf]
        %v3157 = vunpack.c.l.b16 %v3125
        %v3158 = vunpack.c.l.b16 %v3126
        %v3159 = vunpack.c.l.b16 %v3127
        %v3160 = vunpack.c.l.b16 %v3128
        %v3161 = vunpack.c.l.b16 %v3129
        %v3162 = vunpack.c.l.b16 %v3130
        %v3163 = vunpack.c.l.b16 %v3131
        %v3164 = vunpack.c.l.b16 %v3132
        %v3165 = vunpack.c.l.b16 %v3133
        %v3166 = vunpack.c.l.b16 %v3134
        %v3167 = vunpack.c.l.b16 %v3135
        %v3168 = vunpack.c.l.b16 %v3136
        %v3169 = vunpack.c.l.b16 %v3137
        %v3170 = vunpack.c.l.b16 %v3138
        %v3171 = vunpack.c.l.b16 %v3139
        %v3172 = vunpack.c.l.b16 %v3140
        %v3173 = vpack.c.b16 %v3158, %v3157
        %v3174 = vpack.c.b16 %v3160, %v3159
        %v3175 = vpack.c.b16 %v3162, %v3161
        %v3176 = vpack.c.b16 %v3164, %v3163
        %v3177 = vpack.c.b16 %v3166, %v3165
        %v3178 = vpack.c.b16 %v3168, %v3167
        %v3179 = vpack.c.b16 %v3170, %v3169
        %v3180 = vpack.c.b16 %v3172, %v3171
        %3189 = vmatprep.subr.bf16.mxu0 0
        %3190 = vmatpush1.bf16.msra.mxu0 %v3180
        %3191 = vmatprep.subr.bf16.mxu0 0
        %3192 = vmatpush1.bf16.msra.mxu0 %v3179
        %3193 = vmatprep.subr.bf16.mxu0 0
        %3194 = vmatpush1.bf16.msra.mxu0 %v3178
        %3195 = vmatprep.subr.bf16.mxu0 0
        %3196 = vmatpush1.bf16.msra.mxu0 %v3177
        %3197 = vmatprep.subr.bf16.mxu0 0
        %3198 = vmatpush1.bf16.msra.mxu0 %v3176
        %3199 = vmatprep.subr.bf16.mxu0 0
        %3200 = vmatpush1.bf16.msra.mxu0 %v3175
        %3201 = vmatprep.subr.bf16.mxu0 0
        %3202 = vmatpush1.bf16.msra.mxu0 %v3174
        %3203 = vmatprep.subr.bf16.mxu0 0
        %3204 = vmatpush1.bf16.msra.mxu0 %v3173
        %3205 = vmatprep.subr.bf16.mxu0 0
        %3206 = vmatpush2.bf16.msra.mxu0 0
        %3207 = vmatprep.subr.bf16.mxu0 0
        %3208 = vmatpush2.bf16.msra.mxu0 0
        %3209 = vmatprep.subr.bf16.mxu0 0
        %3210 = vmatpush2.bf16.msra.mxu0 0
        %3211 = vmatprep.subr.bf16.mxu0 0
        %3212 = vmatpush2.bf16.msra.mxu0 0
        %3213 = vmatprep.subr.bf16.mxu0 0
        %3214 = vmatpush2.bf16.msra.mxu0 0
        %3215 = vmatprep.subr.bf16.mxu0 0
        %3216 = vmatpush2.bf16.msra.mxu0 0
        %3217 = vmatprep.subr.bf16.mxu0 0
        %3218 = vmatpush2.bf16.msra.mxu0 0
        %3219 = vmatprep.subr.bf16.mxu0 0
        %3220 = vmatpush2.bf16.msra.mxu0 0
        %3221 = vmatprep.mubr.bf16.mxu0 0
        %3222 = vmatmul.mubr.bf16.gmra.mxu0 %v2627
        %v3223 = vpop.f32.mrf.mxu0
        %v3224 = vadd.f32 0.0, %v3223
        %v3225 = vpop.f32.mrf.mxu0
        %v3226 = vpop.f32.mrf.mxu0
        %v3227 = vadd.f32 0.0, %v3226
        %v3228 = vpop.f32.mrf.mxu0
        %3229 = vmatprep.mubr.bf16.mxu0 0
        %3230 = vmatmul.mubr.bf16.gmra.mxu0 %v2628
        %v3231 = vpop.f32.mrf.mxu0
        %v3232 = vadd.f32 0.0, %v3231
        %v3233 = vpop.f32.mrf.mxu0
        %v3234 = vpop.f32.mrf.mxu0
        %v3235 = vadd.f32 0.0, %v3234
        %v3236 = vpop.f32.mrf.mxu0
        %3237 = vmatprep.mubr.bf16.mxu0 0
        %3238 = vmatmul.mubr.bf16.gmra.mxu0 %v2629
        %v3239 = vpop.f32.mrf.mxu0
        %v3240 = vadd.f32 0.0, %v3239
        %v3241 = vpop.f32.mrf.mxu0
        %v3242 = vpop.f32.mrf.mxu0
        %v3243 = vadd.f32 0.0, %v3242
        %v3244 = vpop.f32.mrf.mxu0
        %3245 = vmatprep.mubr.bf16.mxu0 0
        %3246 = vmatmul.mubr.bf16.gmra.mxu0 %v2630
        %v3247 = vpop.f32.mrf.mxu0
        %v3248 = vadd.f32 0.0, %v3247
        %v3249 = vpop.f32.mrf.mxu0
        %v3250 = vpop.f32.mrf.mxu0
        %v3251 = vadd.f32 0.0, %v3250
        %v3252 = vpop.f32.mrf.mxu0
        %3253 = vmatprep.mubr.bf16.mxu0 0
        %3254 = vmatmul.mubr.bf16.gmra.mxu0 %v2631
        %v3255 = vpop.f32.mrf.mxu0
        %v3256 = vadd.f32 0.0, %v3255
        %v3257 = vpop.f32.mrf.mxu0
        %v3258 = vpop.f32.mrf.mxu0
        %v3259 = vadd.f32 0.0, %v3258
        %v3260 = vpop.f32.mrf.mxu0
        %3261 = vmatprep.mubr.bf16.mxu0 0
        %3262 = vmatmul.mubr.bf16.gmra.mxu0 %v2632
        %v3263 = vpop.f32.mrf.mxu0
        %v3264 = vadd.f32 0.0, %v3263
        %v3265 = vpop.f32.mrf.mxu0
        %v3266 = vpop.f32.mrf.mxu0
        %v3267 = vadd.f32 0.0, %v3266
        %v3268 = vpop.f32.mrf.mxu0
        %3269 = vmatprep.mubr.bf16.mxu0 0
        %3270 = vmatmul.mubr.bf16.gmra.mxu0 %v2633
        %v3271 = vpop.f32.mrf.mxu0
        %v3272 = vadd.f32 0.0, %v3271
        %v3273 = vpop.f32.mrf.mxu0
        %v3274 = vpop.f32.mrf.mxu0
        %v3275 = vadd.f32 0.0, %v3274
        %v3276 = vpop.f32.mrf.mxu0
        %3277 = vmatprep.mubr.bf16.mxu0 0
        %3278 = vmatmul.mubr.bf16.gmra.mxu0 %v2634
        %v3279 = vpop.f32.mrf.mxu0
        %v3280 = vadd.f32 0.0, %v3279
        %v3281 = vpop.f32.mrf.mxu0
        %v3282 = vpop.f32.mrf.mxu0
        %v3283 = vadd.f32 0.0, %v3282
        %v3284 = vpop.f32.mrf.mxu0
        %3285 = vmatprep.mubr.bf16.mxu0 0
        %3286 = vmatmul.mubr.bf16.gmra.mxu0 %v2635
        %v3287 = vpop.f32.mrf.mxu0
        %v3288 = vadd.f32 0.0, %v3287
        %v3289 = vpop.f32.mrf.mxu0
        %v3290 = vpop.f32.mrf.mxu0
        %v3291 = vadd.f32 0.0, %v3290
        %v3292 = vpop.f32.mrf.mxu0
        %3293 = vmatprep.mubr.bf16.mxu0 0
        %3294 = vmatmul.mubr.bf16.gmra.mxu0 %v2636
        %v3295 = vpop.f32.mrf.mxu0
        %v3296 = vadd.f32 0.0, %v3295
        %v3297 = vpop.f32.mrf.mxu0
        %v3298 = vpop.f32.mrf.mxu0
        %v3299 = vadd.f32 0.0, %v3298
        %v3300 = vpop.f32.mrf.mxu0
        %3301 = vmatprep.mubr.bf16.mxu0 0
        %3302 = vmatmul.mubr.bf16.gmra.mxu0 %v2637
        %v3303 = vpop.f32.mrf.mxu0
        %v3304 = vadd.f32 0.0, %v3303
        %v3305 = vpop.f32.mrf.mxu0
        %v3306 = vpop.f32.mrf.mxu0
        %v3307 = vadd.f32 0.0, %v3306
        %v3308 = vpop.f32.mrf.mxu0
        %3309 = vmatprep.mubr.bf16.mxu0 0
        %3310 = vmatmul.mubr.bf16.gmra.mxu0 %v2638
        %v3311 = vpop.f32.mrf.mxu0
        %v3312 = vadd.f32 0.0, %v3311
        %v3313 = vpop.f32.mrf.mxu0
        %v3314 = vpop.f32.mrf.mxu0
        %v3315 = vadd.f32 0.0, %v3314
        %v3316 = vpop.f32.mrf.mxu0
        %3317 = vmatprep.mubr.bf16.mxu0 0
        %3318 = vmatmul.mubr.bf16.gmra.mxu0 %v2639
        %v3319 = vpop.f32.mrf.mxu0
        %v3320 = vadd.f32 0.0, %v3319
        %v3321 = vpop.f32.mrf.mxu0
        %v3322 = vpop.f32.mrf.mxu0
        %v3323 = vadd.f32 0.0, %v3322
        %v3324 = vpop.f32.mrf.mxu0
        %3325 = vmatprep.mubr.bf16.mxu0 0
        %3326 = vmatmul.mubr.bf16.gmra.mxu0 %v2640
        %v3327 = vpop.f32.mrf.mxu0
        %v3328 = vadd.f32 0.0, %v3327
        %v3329 = vpop.f32.mrf.mxu0
        %v3330 = vpop.f32.mrf.mxu0
        %v3331 = vadd.f32 0.0, %v3330
        %v3332 = vpop.f32.mrf.mxu0
        %3333 = vmatprep.mubr.bf16.mxu0 0
        %3334 = vmatmul.mubr.bf16.gmra.mxu0 %v2641
        %v3335 = vpop.f32.mrf.mxu0
        %v3336 = vadd.f32 0.0, %v3335
        %v3337 = vpop.f32.mrf.mxu0
        %v3338 = vpop.f32.mrf.mxu0
        %v3339 = vadd.f32 0.0, %v3338
        %v3340 = vpop.f32.mrf.mxu0
        %3341 = vmatprep.mubr.bf16.mxu0 0
        %3342 = vmatmul.mubr.bf16.gmra.mxu0 %v2642
        %v3343 = vpop.f32.mrf.mxu0
        %v3344 = vadd.f32 0.0, %v3343
        %v3345 = vpop.f32.mrf.mxu0
        %v3346 = vpop.f32.mrf.mxu0
        %v3347 = vadd.f32 0.0, %v3346
        %v3348 = vpop.f32.mrf.mxu0
        %3349 = vdwg.mxu0
        %v3350 = vadd.f32 %v3093, %v3224
        %v3351 = vadd.f32 %v3094, %v3227
        %v3352 = vadd.f32 %v3095, %v3232
        %v3353 = vadd.f32 %v3096, %v3235
        %v3354 = vadd.f32 %v3097, %v3240
        %v3355 = vadd.f32 %v3098, %v3243
        %v3356 = vadd.f32 %v3099, %v3248
        %v3357 = vadd.f32 %v3100, %v3251
        %v3358 = vadd.f32 %v3101, %v3256
        %v3359 = vadd.f32 %v3102, %v3259
        %v3360 = vadd.f32 %v3103, %v3264
        %v3361 = vadd.f32 %v3104, %v3267
        %v3362 = vadd.f32 %v3105, %v3272
        %v3363 = vadd.f32 %v3106, %v3275
        %v3364 = vadd.f32 %v3107, %v3280
        %v3365 = vadd.f32 %v3108, %v3283
        %v3366 = vadd.f32 %v3109, %v3288
        %v3367 = vadd.f32 %v3110, %v3291
        %v3368 = vadd.f32 %v3111, %v3296
        %v3369 = vadd.f32 %v3112, %v3299
        %v3370 = vadd.f32 %v3113, %v3304
        %v3371 = vadd.f32 %v3114, %v3307
        %v3372 = vadd.f32 %v3115, %v3312
        %v3373 = vadd.f32 %v3116, %v3315
        %v3374 = vadd.f32 %v3117, %v3320
        %v3375 = vadd.f32 %v3118, %v3323
        %v3376 = vadd.f32 %v3119, %v3328
        %v3377 = vadd.f32 %v3120, %v3331
        %v3378 = vadd.f32 %v3121, %v3336
        %v3379 = vadd.f32 %v3122, %v3339
        %v3380 = vadd.f32 %v3123, %v3344
        %v3381 = vadd.f32 %v3124, %v3347
        %v3382 = vld [vmem:[%s11] sm:$0x1]
        %v3384 = vlaneseq
        %v3385 = vshrl.u32 %v3384, 7
        %v3386 = vsub.s32 0, %v3385
        %v3387 = vrot.slane %v3382, %v3386
        %v3389 = vadd.f32 %v3350, %v3387
        %v3390 = vadd.f32 %v3351, %v3387
        %v3391 = vadd.f32 %v3352, %v3387
        %v3392 = vadd.f32 %v3353, %v3387
        %v3393 = vadd.f32 %v3354, %v3387
        %v3394 = vadd.f32 %v3355, %v3387
        %v3395 = vadd.f32 %v3356, %v3387
        %v3396 = vadd.f32 %v3357, %v3387
        %v3397 = vadd.f32 %v3358, %v3387
        %v3398 = vadd.f32 %v3359, %v3387
        %v3399 = vadd.f32 %v3360, %v3387
        %v3400 = vadd.f32 %v3361, %v3387
        %v3401 = vadd.f32 %v3362, %v3387
        %v3402 = vadd.f32 %v3363, %v3387
        %v3403 = vadd.f32 %v3364, %v3387
        %v3404 = vadd.f32 %v3365, %v3387
        %v3405 = vadd.f32 %v3366, %v3387
        %v3406 = vadd.f32 %v3367, %v3387
        %v3407 = vadd.f32 %v3368, %v3387
        %v3408 = vadd.f32 %v3369, %v3387
        %v3409 = vadd.f32 %v3370, %v3387
        %v3410 = vadd.f32 %v3371, %v3387
        %v3411 = vadd.f32 %v3372, %v3387
        %v3412 = vadd.f32 %v3373, %v3387
        %v3413 = vadd.f32 %v3374, %v3387
        %v3414 = vadd.f32 %v3375, %v3387
        %v3415 = vadd.f32 %v3376, %v3387
        %v3416 = vadd.f32 %v3377, %v3387
        %v3417 = vadd.f32 %v3378, %v3387
        %v3418 = vadd.f32 %v3379, %v3387
        %v3419 = vadd.f32 %v3380, %v3387
        %v3420 = vadd.f32 %v3381, %v3387
        %v3421 = vmax.f32 %v3389, 0.0
        %v3422 = vmax.f32 %v3390, 0.0
        %v3423 = vmax.f32 %v3391, 0.0
        %v3424 = vmax.f32 %v3392, 0.0
        %v3425 = vmax.f32 %v3393, 0.0
        %v3426 = vmax.f32 %v3394, 0.0
        %v3427 = vmax.f32 %v3395, 0.0
        %v3428 = vmax.f32 %v3396, 0.0
        %v3429 = vmax.f32 %v3397, 0.0
        %v3430 = vmax.f32 %v3398, 0.0
        %v3431 = vmax.f32 %v3399, 0.0
        %v3432 = vmax.f32 %v3400, 0.0
        %v3433 = vmax.f32 %v3401, 0.0
        %v3434 = vmax.f32 %v3402, 0.0
        %v3435 = vmax.f32 %v3403, 0.0
        %v3436 = vmax.f32 %v3404, 0.0
        %v3437 = vmax.f32 %v3405, 0.0
        %v3438 = vmax.f32 %v3406, 0.0
        %v3439 = vmax.f32 %v3407, 0.0
        %v3440 = vmax.f32 %v3408, 0.0
        %v3441 = vmax.f32 %v3409, 0.0
        %v3442 = vmax.f32 %v3410, 0.0
        %v3443 = vmax.f32 %v3411, 0.0
        %v3444 = vmax.f32 %v3412, 0.0
        %v3445 = vmax.f32 %v3413, 0.0
        %v3446 = vmax.f32 %v3414, 0.0
        %v3447 = vmax.f32 %v3415, 0.0
        %v3448 = vmax.f32 %v3416, 0.0
        %v3449 = vmax.f32 %v3417, 0.0
        %v3450 = vmax.f32 %v3418, 0.0
        %v3451 = vmax.f32 %v3419, 0.0
        %v3452 = vmax.f32 %v3420, 0.0
        %3453 = vst [vmem:[%s560] sm:$0xff] %v3421
        %3454 = vst [vmem:[%s560 + $0x8] sm:$0xff] %v3422
        %3455 = vst [vmem:[%s560 + $0x10] sm:$0xff] %v3423
        %3456 = vst [vmem:[%s560 + $0x18] sm:$0xff] %v3424
        %3457 = vst [vmem:[%s560 + $0x20] sm:$0xff] %v3425
        %3458 = vst [vmem:[%s560 + $0x28] sm:$0xff] %v3426
        %3459 = vst [vmem:[%s560 + $0x30] sm:$0xff] %v3427
        %3460 = vst [vmem:[%s560 + $0x38] sm:$0xff] %v3428
        %3461 = vst [vmem:[%s560 + $0x40] sm:$0xff] %v3429
        %3462 = vst [vmem:[%s560 + $0x48] sm:$0xff] %v3430
        %3463 = vst [vmem:[%s560 + $0x50] sm:$0xff] %v3431
        %3464 = vst [vmem:[%s560 + $0x58] sm:$0xff] %v3432
        %3465 = vst [vmem:[%s560 + $0x60] sm:$0xff] %v3433
        %3466 = vst [vmem:[%s560 + $0x68] sm:$0xff] %v3434
        %3467 = vst [vmem:[%s560 + $0x70] sm:$0xff] %v3435
        %3468 = vst [vmem:[%s560 + $0x78] sm:$0xff] %v3436
        %3469 = vst [vmem:[%s560 + $0x80] sm:$0xff] %v3437
        %3470 = vst [vmem:[%s560 + $0x88] sm:$0xff] %v3438
        %3471 = vst [vmem:[%s560 + $0x90] sm:$0xff] %v3439
        %3472 = vst [vmem:[%s560 + $0x98] sm:$0xff] %v3440
        %3473 = vst [vmem:[%s560 + $0xa0] sm:$0xff] %v3441
        %3474 = vst [vmem:[%s560 + $0xa8] sm:$0xff] %v3442
        %3475 = vst [vmem:[%s560 + $0xb0] sm:$0xff] %v3443
        %3476 = vst [vmem:[%s560 + $0xb8] sm:$0xff] %v3444
        %3477 = vst [vmem:[%s560 + $0xc0] sm:$0xff] %v3445
        %3478 = vst [vmem:[%s560 + $0xc8] sm:$0xff] %v3446
        %3479 = vst [vmem:[%s560 + $0xd0] sm:$0xff] %v3447
        %3480 = vst [vmem:[%s560 + $0xd8] sm:$0xff] %v3448
        %3481 = vst [vmem:[%s560 + $0xe0] sm:$0xff] %v3449
        %3482 = vst [vmem:[%s560 + $0xe8] sm:$0xff] %v3450
        %3483 = vst [vmem:[%s560 + $0xf0] sm:$0xff] %v3451
        %3484 = vst [vmem:[%s560 + $0xf8] sm:$0xff] %v3452
        %s3485 = sand.u32 %s305, 1
        %s3486 = scalar_lea.sflag [#allocation4], %s3485
        %s3487 = sand.u32 %s305, 1
        %s3488 = smul.addr %s3487, 256
        %s3489 = scalar_lea.vmem [#allocation16], %s3488
        // Predicated region
        $region101: #{tpu_custom_call.1} parent=67 // pred_check
          %p3490 = pneg %p315
        $region102: #{tpu_custom_call.1} parent=67 // pred_check_branch
          %3492 = sbr.rel (%p3490) target = $region104
        $region103: #{tpu_custom_call.1} parent=67 // pred_region
          %s3493 = smul.u32 2, %s35
          %s3495 = ssub.s32 4096, 4096
          %3496 = vsyncadd %s3486, %s3495
          %s3497 = smul.addr %s3493, 16
          %s3498 = smul.addr %s3497, 128
          %s3499 = scalar_lea.hbm %s12, %s3498
          %s3500 = sshll.u32 %s3489, 4
          %s3501 = int_to_ptr.vmem [resolvable:$true] %s3500
          %3506 = dma.vmem_to_hbm [thread:$0]  %s3501, 4096, %s3499, %s3486, 128, 128, 8
        $region104: #{tpu_custom_call.1} parent=67 // pred_fallthru
          _
      $region68: #{tpu_custom_call.1} parent=5 // pred_fallthru
        _
      %p3507 = scmp.le.s32.totalorder 2, %s30
      // Predicated region
      $region105: #{tpu_custom_call.1} parent=5 // pred_check
        %p3508 = pneg %p3507
      $region106: #{tpu_custom_call.1} parent=5 // pred_check_branch
        %3510 = sbr.rel (%p3508) target = $region108
      $region107: #{tpu_custom_call.1} parent=5 // pred_region
        %s3511 = ssub.s32 %s30, 2
        // Predicated region
        $region109: #{tpu_custom_call.1} parent=107 // pred_check
          %p3512 = pneg %p321
        $region110: #{tpu_custom_call.1} parent=107 // pred_check_branch
          %3514 = sbr.rel (%p3512) target = $region112
        $region111: #{tpu_custom_call.1} parent=107 // pred_region
          %s3515 = sand.u32 %s306, 1
          %s3516 = scalar_lea.sflag [#allocation4], %s3515
          %s3517 = sand.u32 %s306, 1
          %s3518 = smul.addr %s3517, 256
          %s3519 = scalar_lea.vmem [#allocation16], %s3518
          %3520 = dma.done %s3516, 4096
        $region112: #{tpu_custom_call.1} parent=107 // pred_fallthru
          _
      $region108: #{tpu_custom_call.1} parent=5 // pred_fallthru
        _
    $region6: #{tpu_custom_call.1} parent=1 // loop_footer
      %s34 = sadd.s32 1, %s30
    $region7: #{tpu_custom_call.1} parent=1 // loop_footer_branch
      %29 = sbr.rel target = $region3
    $region8: #{tpu_custom_call.1} parent=1 // loop_exit
      _
    %3521 = vsyncpa [#allocation3], 1
    %s3522 = scalar_lea.sflag [#allocation3], 1
    %3523 = vsyncpa %s3522, 1
    %3524 = vsyncpa [#allocation6], 1
    %s3525 = scalar_lea.sflag [#allocation6], 1
    %3526 = vsyncpa %s3525, 1
    %3527 = vsyncpa [#allocation9], 1
    %3528 = vsyncpa [#allocation12], 1
    %3529 = vsyncpa [#allocation15], 1
    %3530 = vsyncpa [#allocation4], 1
    %s3531 = scalar_lea.sflag [#allocation4], 1
    %3532 = vsyncpa %s3531, 1

</llo_original>
